<compile_context>
chip_gen: v5e
topology: v5e:2x2
jax: 0.10.0
libtpu: 0.0.40
codegen_flags: <defaults>
</compile_context>

<pallas_src>
import functools

import jax
import jax.numpy as jnp
import numpy as np
from jax.experimental import pallas as pl
from jax.experimental.pallas import tpu as pltpu

MATMUL_DTYPE = jnp.float32  # set to jnp.bfloat16 on v6e/v7x (loosen test rtol to ~1e-2)


def _round_up(x, m):
    return ((x + m - 1) // m) * m


# ------------------------------ fused decoder kernel -------------------------
def _decoder_kernel(num_layers, *refs):
    """refs = x, [w_ih_l, w_hh_l, b_l]*L, w_out, b_out, out, seq_a, seq_b, xp."""
    x_ref = refs[0]
    layer_refs = refs[1:1 + 3 * num_layers]
    w_out_ref = refs[1 + 3 * num_layers]
    b_out_ref = refs[2 + 3 * num_layers]
    out_ref = refs[3 + 3 * num_layers]
    seq_a, seq_b, xp_ref = refs[4 + 3 * num_layers:]

    T, Bp, Ep = x_ref.shape
    Hp = seq_a.shape[2]
    bufs = (seq_a, seq_b)

    for l in range(num_layers):
        w_ih = layer_refs[3 * l][...]       # (I_l, 4*Hp)  pre-transposed
        w_hh = layer_refs[3 * l + 1][...]   # (Hp, 4*Hp)   pre-transposed
        b = layer_refs[3 * l + 2][...]      # (1, 4*Hp)    f32
        dst = bufs[l % 2]

        if l == 0:
            xin = x_ref[...].reshape(T * Bp, Ep)
        else:
            xin = bufs[(l - 1) % 2][...].reshape(T * Bp, Hp)

        # Hoisted input projection: one big MXU matmul for the whole sequence.
        proj = jnp.dot(xin.astype(w_ih.dtype), w_ih,
                       preferred_element_type=jnp.float32) + b
        xp_ref[...] = proj.reshape(T, Bp, 4 * Hp)

        def step(t, carry, dst=dst, w_hh=w_hh):
            h, c = carry
            gates = xp_ref[t] + jnp.dot(h.astype(w_hh.dtype), w_hh,
                                        preferred_element_type=jnp.float32)
            # Gate slices are 128-lane-aligned (Hp is a multiple of 128).
            i_g = jax.nn.sigmoid(gates[:, 0 * Hp:1 * Hp])
            f_g = jax.nn.sigmoid(gates[:, 1 * Hp:2 * Hp])
            g_g = jnp.tanh(gates[:, 2 * Hp:3 * Hp])
            o_g = jax.nn.sigmoid(gates[:, 3 * Hp:4 * Hp])
            c_new = f_g * c + i_g * g_g
            h_new = o_g * jnp.tanh(c_new)
            dst[t] = h_new
            return h_new, c_new

        init = (jnp.zeros((Bp, Hp), jnp.float32),
                jnp.zeros((Bp, Hp), jnp.float32))
        jax.lax.fori_loop(0, T, step, init, unroll=True)

    # Output projection: one big matmul over all timesteps.
    h_all = bufs[(num_layers - 1) % 2][...].reshape(T * Bp, Hp)
    logits = jnp.dot(h_all.astype(w_out_ref.dtype), w_out_ref[...],
                     preferred_element_type=jnp.float32) + b_out_ref[...]
    out_ref[...] = logits.reshape(T, Bp, -1)


# ------------------------ one-time weight prep (wrapper) ----------------------
def _pad_gate_matrix(w, in_pad, Hp):
    """PyTorch (4H, I) gate matrix -> per-gate padded, transposed (in_pad, 4*Hp)."""
    H = w.shape[0] // 4
    I = w.shape[1]
    wg = w.reshape(4, H, I)
    wp = jnp.zeros((4, Hp, in_pad), w.dtype).at[:, :H, :I].set(wg)
    return wp.reshape(4 * Hp, in_pad).T


def _pad_gate_bias(b, Hp):
    """(1, 4H) -> per-gate padded (1, 4*Hp)."""
    H = b.shape[1] // 4
    bg = b.reshape(4, H)
    bp = jnp.zeros((4, Hp), jnp.float32).at[:, :H].set(bg)
    return bp.reshape(1, 4 * Hp)


def prepare_decoder_params(params, num_layers, matmul_dtype=MATMUL_DTYPE):
    """Pre-transpose + pad all weights into the lane-aligned kernel layout (once)."""
    E = params["embed"].shape[1]
    H = params["w_hh_0"].shape[1]
    V = params["w_out"].shape[0]
    Ep, Hp, Vp = _round_up(E, 128), _round_up(H, 128), _round_up(V, 128)

    prep = {"embed": params["embed"], "dims": (E, H, V, Ep, Hp, Vp)}
    for l in range(num_layers):
        in_pad = Ep if l == 0 else Hp
        prep[f"w_ih_{l}"] = _pad_gate_matrix(params[f"w_ih_{l}"], in_pad, Hp).astype(matmul_dtype)
        prep[f"w_hh_{l}"] = _pad_gate_matrix(params[f"w_hh_{l}"], Hp, Hp).astype(matmul_dtype)
        prep[f"b_{l}"] = _pad_gate_bias(params[f"b_{l}"], Hp)
    w_out = params["w_out"]                                   # (V, H)
    w_out_p = jnp.zeros((Vp, Hp), w_out.dtype).at[:V, :H].set(w_out)
    prep["w_out"] = w_out_p.T.astype(matmul_dtype)            # (Hp, Vp)
    prep["b_out"] = jnp.zeros((1, Vp), jnp.float32).at[:, :V].set(params["b_out"])
    return prep


# ------------------------------ Decoder forward -------------------------------
def decoder_forward(features, captions, prep, num_layers):
    E, H, V, Ep, Hp, Vp = prep["dims"]
    emb = prep["embed"][captions]                          # (Tcap, B, E) gather = glue
    # dropout: eval-mode identity
    x = jnp.concatenate([features[None], emb], axis=0)     # (T, B, E)
    T, B, _ = x.shape
    Bp = _round_up(max(B, 8), 8)
    x_pad = jnp.zeros((T, Bp, Ep), jnp.float32).at[:, :B, :E].set(x)

    in_arrays = [x_pad]
    in_specs = [pl.BlockSpec((T, Bp, Ep), lambda: (0, 0, 0))]
    for l in range(num_layers):
        for name in (f"w_ih_{l}", f"w_hh_{l}", f"b_{l}"):
            arr = prep[name]
            in_arrays.append(arr)
            in_specs.append(pl.BlockSpec(arr.shape, lambda: (0, 0)))
    for name in ("w_out", "b_out"):
        arr = prep[name]
        in_arrays.append(arr)
        in_specs.append(pl.BlockSpec(arr.shape, lambda: (0, 0)))

    out = pl.pallas_call(
        functools.partial(_decoder_kernel, num_layers),
        out_shape=jax.ShapeDtypeStruct((T, Bp, Vp), jnp.float32),
        in_specs=in_specs,
        out_specs=pl.BlockSpec((T, Bp, Vp), lambda: (0, 0, 0)),
        scratch_shapes=[
            pltpu.VMEM((T, Bp, Hp), jnp.float32),      # hidden sequence buffer A
            pltpu.VMEM((T, Bp, Hp), jnp.float32),      # hidden sequence buffer B
            pltpu.VMEM((T, Bp, 4 * Hp), jnp.float32),  # hoisted input projection
        ],
    )(*in_arrays)
    return out[:, :B, :V]


# -------------------------- pure-JAX reference (check) ------------------------
def decoder_ref(features, captions, params, num_layers):
    emb = params["embed"][captions]
    x = jnp.concatenate([features[None], emb], axis=0)
    T, B, _ = x.shape
    h_seq = x
    for l in range(num_layers):
        H = params[f"w_hh_{l}"].shape[1]
        h = jnp.zeros((B, H), jnp.float32)
        c = jnp.zeros((B, H), jnp.float32)
        outs = []
        for t in range(T):
            gates = (h_seq[t] @ params[f"w_ih_{l}"].T
                     + h @ params[f"w_hh_{l}"].T
                     + params[f"b_{l}"][0])
            i_g = jax.nn.sigmoid(gates[:, 0 * H:1 * H])
            f_g = jax.nn.sigmoid(gates[:, 1 * H:2 * H])
            g_g = jnp.tanh(gates[:, 2 * H:3 * H])
            o_g = jax.nn.sigmoid(gates[:, 3 * H:4 * H])
            c = f_g * c + i_g * g_g
            h = o_g * jnp.tanh(c)
            outs.append(h)
        h_seq = jnp.stack(outs, axis=0)
    out = h_seq.reshape(T * B, -1) @ params["w_out"].T + params["b_out"][0]
    return out.reshape(T, B, -1)


# ----------------------------------- main -------------------------------------
if __name__ == "__main__":
    embed_size, hidden_size, vocab_size, num_layers = 32, 32, 64, 2
    B, seq_len = 2, 8

    key = jax.random.PRNGKey(0)
    keys = jax.random.split(key, 4 + 4 * num_layers)
    k_feat, k_cap, k_emb, k_lin = keys[0], keys[1], keys[2], keys[3]
    lstm_keys = keys[4:]

    scale = 1.0 / np.sqrt(hidden_size)
    params = {
        "embed": jax.random.normal(k_emb, (vocab_size, embed_size), jnp.float32),
        "w_out": jax.random.uniform(k_lin, (vocab_size, hidden_size),
                                    jnp.float32, -scale, scale),
        "b_out": jnp.zeros((1, vocab_size), jnp.float32),
    }
    for l in range(num_layers):
        in_size = embed_size if l == 0 else hidden_size
        k0, k1, k2, k3 = lstm_keys[4 * l:4 * l + 4]
        params[f"w_ih_{l}"] = jax.random.uniform(
            k0, (4 * hidden_size, in_size), jnp.float32, -scale, scale)
        params[f"w_hh_{l}"] = jax.random.uniform(
            k1, (4 * hidden_size, hidden_size), jnp.float32, -scale, scale)
        b_ih = jax.random.uniform(k2, (4 * hidden_size,), jnp.float32, -scale, scale)
        b_hh = jax.random.uniform(k3, (4 * hidden_size,), jnp.float32, -scale, scale)
        params[f"b_{l}"] = (b_ih + b_hh).reshape(1, 4 * hidden_size)

    features = jax.random.normal(k_feat, (B, embed_size), jnp.float32)
    captions = jax.random.randint(k_cap, (seq_len, B), 0, vocab_size, jnp.int32)

    prep = prepare_decoder_params(params, num_layers)          # one-time weight prep
    out = decoder_forward(features, captions, prep, num_layers)
    out = jax.block_until_ready(out)

    ref = decoder_ref(features, captions, params, num_layers)
    np.testing.assert_allclose(np.asarray(out), np.asarray(ref),
                               rtol=1e-4, atol=1e-4)
    assert out.shape == (seq_len + 1, B, vocab_size)
    print("KERNEL_OK")
</pallas_src>

<mosaic_0001>
module attributes {stable_mosaic.version = 11 : i64} {
  func.func @_decoder_kernel(%arg0: memref<9x8x128xf32, #tpu.memory_space<vmem>>, %arg1: memref<128x512xf32, #tpu.memory_space<vmem>>, %arg2: memref<128x512xf32, #tpu.memory_space<vmem>>, %arg3: memref<1x512xf32, #tpu.memory_space<vmem>>, %arg4: memref<128x512xf32, #tpu.memory_space<vmem>>, %arg5: memref<128x512xf32, #tpu.memory_space<vmem>>, %arg6: memref<1x512xf32, #tpu.memory_space<vmem>>, %arg7: memref<128x128xf32, #tpu.memory_space<vmem>>, %arg8: memref<1x128xf32, #tpu.memory_space<vmem>>, %arg9: memref<9x8x128xf32, #tpu.memory_space<vmem>>, %arg10: memref<9x8x128xf32, #tpu.memory_space<vmem>>, %arg11: memref<9x8x128xf32, #tpu.memory_space<vmem>>, %arg12: memref<9x8x512xf32, #tpu.memory_space<vmem>>) attributes {dimension_semantics = [], scalar_prefetch = 0 : i64, scratch_operands = 3 : i64, tpu.core_type = #tpu.core_type<tc>} {
    %c0 = arith.constant 0 : index
    %c0_0 = arith.constant 0 : index
    %0 = vector.load %arg1[%c0, %c0_0] : memref<128x512xf32, #tpu.memory_space<vmem>>, vector<128x512xf32>
    %c0_1 = arith.constant 0 : index
    %c0_2 = arith.constant 0 : index
    %1 = vector.load %arg2[%c0_1, %c0_2] : memref<128x512xf32, #tpu.memory_space<vmem>>, vector<128x512xf32>
    %c0_3 = arith.constant 0 : index
    %c0_4 = arith.constant 0 : index
    %2 = vector.load %arg3[%c0_3, %c0_4] : memref<1x512xf32, #tpu.memory_space<vmem>>, vector<1x512xf32>
    %c0_5 = arith.constant 0 : index
    %c0_6 = arith.constant 0 : index
    %c0_7 = arith.constant 0 : index
    %3 = vector.load %arg0[%c0_5, %c0_6, %c0_7] : memref<9x8x128xf32, #tpu.memory_space<vmem>>, vector<9x8x128xf32>
    %4 = vector.shape_cast %3 : vector<9x8x128xf32> to vector<72x128xf32>
    %cst = arith.constant dense<0.000000e+00> : vector<72x512xf32>
    %5 = tpu.matmul %4, %0, %cst {dimension_numbers = #tpu.dot_dimension_numbers<[1], [0], [0], [1], [0, 0, 1, 1], [], []>} : vector<72x128xf32>, vector<128x512xf32>, vector<72x512xf32> -> vector<72x512xf32>
    %6 = vector.broadcast %2 : vector<1x512xf32> to vector<72x512xf32>
    %7 = arith.addf %5, %6 : vector<72x512xf32>
    %8 = vector.shape_cast %7 : vector<72x512xf32> to vector<9x8x512xf32>
    %c0_8 = arith.constant 0 : index
    %c0_9 = arith.constant 0 : index
    %c0_10 = arith.constant 0 : index
    %9 = vector.load %arg12[%c0_8, %c0_9, %c0_10] : memref<9x8x512xf32, #tpu.memory_space<vmem>>, vector<9x8x512xf32>
    tpu.vector_store %arg12[%c0_8, %c0_9, %c0_10], %8 {strides = array<i32>} : memref<9x8x512xf32, #tpu.memory_space<vmem>>, vector<9x8x512xf32>,
    %cst_11 = arith.constant 0.000000e+00 : f32
    %10 = vector.broadcast %cst_11 : f32 to vector<8x128xf32>
    %cst_12 = arith.constant 0.000000e+00 : f32
    %11 = vector.broadcast %cst_12 : f32 to vector<8x128xf32>
    %c0_i32 = arith.constant 0 : i32
    %12 = arith.index_cast %c0_i32 : i32 to index
    %c0_13 = arith.constant 0 : index
    %c0_14 = arith.constant 0 : index
    %13 = vector.load %arg12[%12, %c0_13, %c0_14] : memref<9x8x512xf32, #tpu.memory_space<vmem>>, vector<1x8x512xf32>
    %14 = vector.shape_cast %13 : vector<1x8x512xf32> to vector<8x512xf32>
    %cst_15 = arith.constant dense<0.000000e+00> : vector<8x512xf32>
    %15 = tpu.matmul %10, %1, %cst_15 {dimension_numbers = #tpu.dot_dimension_numbers<[1], [0], [0], [1], [0, 0, 1, 1], [], []>} : vector<8x128xf32>, vector<128x512xf32>, vector<8x512xf32> -> vector<8x512xf32>
    %16 = arith.addf %14, %15 : vector<8x512xf32>
    %17 = vector.extract_strided_slice %16 {offsets = [0, 0], sizes = [8, 128], strides = [1, 1]} : vector<8x512xf32> to vector<8x128xf32>
    %18 = arith.negf %17 : vector<8x128xf32>
    %19 = math.exp %18 : vector<8x128xf32>
    %cst_16 = arith.constant 1.000000e+00 : f32
    %20 = vector.broadcast %cst_16 : f32 to vector<8x128xf32>
    %21 = arith.addf %20, %19 : vector<8x128xf32>
    %22 = arith.divf %20, %21 : vector<8x128xf32>
    %23 = vector.extract_strided_slice %16 {offsets = [0, 128], sizes = [8, 128], strides = [1, 1]} : vector<8x512xf32> to vector<8x128xf32>
    %24 = arith.negf %23 : vector<8x128xf32>
    %25 = math.exp %24 : vector<8x128xf32>
    %cst_17 = arith.constant 1.000000e+00 : f32
    %26 = vector.broadcast %cst_17 : f32 to vector<8x128xf32>
    %27 = arith.addf %26, %25 : vector<8x128xf32>
    %28 = arith.divf %26, %27 : vector<8x128xf32>
    %29 = vector.extract_strided_slice %16 {offsets = [0, 256], sizes = [8, 128], strides = [1, 1]} : vector<8x512xf32> to vector<8x128xf32>
    %30 = math.tanh %29 : vector<8x128xf32>
    %31 = vector.extract_strided_slice %16 {offsets = [0, 384], sizes = [8, 128], strides = [1, 1]} : vector<8x512xf32> to vector<8x128xf32>
    %32 = arith.negf %31 : vector<8x128xf32>
    %33 = math.exp %32 : vector<8x128xf32>
    %cst_18 = arith.constant 1.000000e+00 : f32
    %34 = vector.broadcast %cst_18 : f32 to vector<8x128xf32>
    %35 = arith.addf %34, %33 : vector<8x128xf32>
    %36 = arith.divf %34, %35 : vector<8x128xf32>
    %37 = arith.mulf %28, %11 : vector<8x128xf32>
    %38 = arith.mulf %22, %30 : vector<8x128xf32>
    %39 = arith.addf %37, %38 : vector<8x128xf32>
    %40 = math.tanh %39 : vector<8x128xf32>
    %41 = arith.mulf %36, %40 : vector<8x128xf32>
    %42 = arith.index_cast %c0_i32 : i32 to index
    %c0_19 = arith.constant 0 : index
    %c0_20 = arith.constant 0 : index
    %43 = vector.load %arg10[%42, %c0_19, %c0_20] : memref<9x8x128xf32, #tpu.memory_space<vmem>>, vector<1x8x128xf32>
    %44 = vector.shape_cast %43 : vector<1x8x128xf32> to vector<8x128xf32>
    %45 = vector.shape_cast %41 : vector<8x128xf32> to vector<1x8x128xf32>
    tpu.vector_store %arg10[%42, %c0_19, %c0_20], %45 {strides = array<i32>} : memref<9x8x128xf32, #tpu.memory_space<vmem>>, vector<1x8x128xf32>,
    %c1_i32 = arith.constant 1 : i32
    %46 = arith.index_cast %c1_i32 : i32 to index
    %c0_21 = arith.constant 0 : index
    %c0_22 = arith.constant 0 : index
    %47 = vector.load %arg12[%46, %c0_21, %c0_22] : memref<9x8x512xf32, #tpu.memory_space<vmem>>, vector<1x8x512xf32>
    %48 = vector.shape_cast %47 : vector<1x8x512xf32> to vector<8x512xf32>
    %cst_23 = arith.constant dense<0.000000e+00> : vector<8x512xf32>
    %49 = tpu.matmul %41, %1, %cst_23 {dimension_numbers = #tpu.dot_dimension_numbers<[1], [0], [0], [1], [0, 0, 1, 1], [], []>} : vector<8x128xf32>, vector<128x512xf32>, vector<8x512xf32> -> vector<8x512xf32>
    %50 = arith.addf %48, %49 : vector<8x512xf32>
    %51 = vector.extract_strided_slice %50 {offsets = [0, 0], sizes = [8, 128], strides = [1, 1]} : vector<8x512xf32> to vector<8x128xf32>
    %52 = arith.negf %51 : vector<8x128xf32>
    %53 = math.exp %52 : vector<8x128xf32>
    %cst_24 = arith.constant 1.000000e+00 : f32
    %54 = vector.broadcast %cst_24 : f32 to vector<8x128xf32>
    %55 = arith.addf %54, %53 : vector<8x128xf32>
    %56 = arith.divf %54, %55 : vector<8x128xf32>
    %57 = vector.extract_strided_slice %50 {offsets = [0, 128], sizes = [8, 128], strides = [1, 1]} : vector<8x512xf32> to vector<8x128xf32>
    %58 = arith.negf %57 : vector<8x128xf32>
    %59 = math.exp %58 : vector<8x128xf32>
    %cst_25 = arith.constant 1.000000e+00 : f32
    %60 = vector.broadcast %cst_25 : f32 to vector<8x128xf32>
    %61 = arith.addf %60, %59 : vector<8x128xf32>
    %62 = arith.divf %60, %61 : vector<8x128xf32>
    %63 = vector.extract_strided_slice %50 {offsets = [0, 256], sizes = [8, 128], strides = [1, 1]} : vector<8x512xf32> to vector<8x128xf32>
    %64 = math.tanh %63 : vector<8x128xf32>
    %65 = vector.extract_strided_slice %50 {offsets = [0, 384], sizes = [8, 128], strides = [1, 1]} : vector<8x512xf32> to vector<8x128xf32>
    %66 = arith.negf %65 : vector<8x128xf32>
    %67 = math.exp %66 : vector<8x128xf32>
    %cst_26 = arith.constant 1.000000e+00 : f32
    %68 = vector.broadcast %cst_26 : f32 to vector<8x128xf32>
    %69 = arith.addf %68, %67 : vector<8x128xf32>
    %70 = arith.divf %68, %69 : vector<8x128xf32>
    %71 = arith.mulf %62, %39 : vector<8x128xf32>
    %72 = arith.mulf %56, %64 : vector<8x128xf32>
    %73 = arith.addf %71, %72 : vector<8x128xf32>
    %74 = math.tanh %73 : vector<8x128xf32>
    %75 = arith.mulf %70, %74 : vector<8x128xf32>
    %76 = arith.index_cast %c1_i32 : i32 to index
    %c0_27 = arith.constant 0 : index
    %c0_28 = arith.constant 0 : index
    %77 = vector.load %arg10[%76, %c0_27, %c0_28] : memref<9x8x128xf32, #tpu.memory_space<vmem>>, vector<1x8x128xf32>
    %78 = vector.shape_cast %77 : vector<1x8x128xf32> to vector<8x128xf32>
    %79 = vector.shape_cast %75 : vector<8x128xf32> to vector<1x8x128xf32>
    tpu.vector_store %arg10[%76, %c0_27, %c0_28], %79 {strides = array<i32>} : memref<9x8x128xf32, #tpu.memory_space<vmem>>, vector<1x8x128xf32>,
    %c2_i32 = arith.constant 2 : i32
    %80 = arith.index_cast %c2_i32 : i32 to index
    %c0_29 = arith.constant 0 : index
    %c0_30 = arith.constant 0 : index
    %81 = vector.load %arg12[%80, %c0_29, %c0_30] : memref<9x8x512xf32, #tpu.memory_space<vmem>>, vector<1x8x512xf32>
    %82 = vector.shape_cast %81 : vector<1x8x512xf32> to vector<8x512xf32>
    %cst_31 = arith.constant dense<0.000000e+00> : vector<8x512xf32>
    %83 = tpu.matmul %75, %1, %cst_31 {dimension_numbers = #tpu.dot_dimension_numbers<[1], [0], [0], [1], [0, 0, 1, 1], [], []>} : vector<8x128xf32>, vector<128x512xf32>, vector<8x512xf32> -> vector<8x512xf32>
    %84 = arith.addf %82, %83 : vector<8x512xf32>
    %85 = vector.extract_strided_slice %84 {offsets = [0, 0], sizes = [8, 128], strides = [1, 1]} : vector<8x512xf32> to vector<8x128xf32>
    %86 = arith.negf %85 : vector<8x128xf32>
    %87 = math.exp %86 : vector<8x128xf32>
    %cst_32 = arith.constant 1.000000e+00 : f32
    %88 = vector.broadcast %cst_32 : f32 to vector<8x128xf32>
    %89 = arith.addf %88, %87 : vector<8x128xf32>
    %90 = arith.divf %88, %89 : vector<8x128xf32>
    %91 = vector.extract_strided_slice %84 {offsets = [0, 128], sizes = [8, 128], strides = [1, 1]} : vector<8x512xf32> to vector<8x128xf32>
    %92 = arith.negf %91 : vector<8x128xf32>
    %93 = math.exp %92 : vector<8x128xf32>
    %cst_33 = arith.constant 1.000000e+00 : f32
    %94 = vector.broadcast %cst_33 : f32 to vector<8x128xf32>
    %95 = arith.addf %94, %93 : vector<8x128xf32>
    %96 = arith.divf %94, %95 : vector<8x128xf32>
    %97 = vector.extract_strided_slice %84 {offsets = [0, 256], sizes = [8, 128], strides = [1, 1]} : vector<8x512xf32> to vector<8x128xf32>
    %98 = math.tanh %97 : vector<8x128xf32>
    %99 = vector.extract_strided_slice %84 {offsets = [0, 384], sizes = [8, 128], strides = [1, 1]} : vector<8x512xf32> to vector<8x128xf32>
    %100 = arith.negf %99 : vector<8x128xf32>
    %101 = math.exp %100 : vector<8x128xf32>
    %cst_34 = arith.constant 1.000000e+00 : f32
    %102 = vector.broadcast %cst_34 : f32 to vector<8x128xf32>
    %103 = arith.addf %102, %101 : vector<8x128xf32>
    %104 = arith.divf %102, %103 : vector<8x128xf32>
    %105 = arith.mulf %96, %73 : vector<8x128xf32>
    %106 = arith.mulf %90, %98 : vector<8x128xf32>
    %107 = arith.addf %105, %106 : vector<8x128xf32>
    %108 = math.tanh %107 : vector<8x128xf32>
    %109 = arith.mulf %104, %108 : vector<8x128xf32>
    %110 = arith.index_cast %c2_i32 : i32 to index
    %c0_35 = arith.constant 0 : index
    %c0_36 = arith.constant 0 : index
    %111 = vector.load %arg10[%110, %c0_35, %c0_36] : memref<9x8x128xf32, #tpu.memory_space<vmem>>, vector<1x8x128xf32>
    %112 = vector.shape_cast %111 : vector<1x8x128xf32> to vector<8x128xf32>
    %113 = vector.shape_cast %109 : vector<8x128xf32> to vector<1x8x128xf32>
    tpu.vector_store %arg10[%110, %c0_35, %c0_36], %113 {strides = array<i32>} : memref<9x8x128xf32, #tpu.memory_space<vmem>>, vector<1x8x128xf32>,
    %c3_i32 = arith.constant 3 : i32
    %114 = arith.index_cast %c3_i32 : i32 to index
    %c0_37 = arith.constant 0 : index
    %c0_38 = arith.constant 0 : index
    %115 = vector.load %arg12[%114, %c0_37, %c0_38] : memref<9x8x512xf32, #tpu.memory_space<vmem>>, vector<1x8x512xf32>
    %116 = vector.shape_cast %115 : vector<1x8x512xf32> to vector<8x512xf32>
    %cst_39 = arith.constant dense<0.000000e+00> : vector<8x512xf32>
    %117 = tpu.matmul %109, %1, %cst_39 {dimension_numbers = #tpu.dot_dimension_numbers<[1], [0], [0], [1], [0, 0, 1, 1], [], []>} : vector<8x128xf32>, vector<128x512xf32>, vector<8x512xf32> -> vector<8x512xf32>
    %118 = arith.addf %116, %117 : vector<8x512xf32>
    %119 = vector.extract_strided_slice %118 {offsets = [0, 0], sizes = [8, 128], strides = [1, 1]} : vector<8x512xf32> to vector<8x128xf32>
    %120 = arith.negf %119 : vector<8x128xf32>
    %121 = math.exp %120 : vector<8x128xf32>
    %cst_40 = arith.constant 1.000000e+00 : f32
    %122 = vector.broadcast %cst_40 : f32 to vector<8x128xf32>
    %123 = arith.addf %122, %121 : vector<8x128xf32>
    %124 = arith.divf %122, %123 : vector<8x128xf32>
    %125 = vector.extract_strided_slice %118 {offsets = [0, 128], sizes = [8, 128], strides = [1, 1]} : vector<8x512xf32> to vector<8x128xf32>
    %126 = arith.negf %125 : vector<8x128xf32>
    %127 = math.exp %126 : vector<8x128xf32>
    %cst_41 = arith.constant 1.000000e+00 : f32
    %128 = vector.broadcast %cst_41 : f32 to vector<8x128xf32>
    %129 = arith.addf %128, %127 : vector<8x128xf32>
    %130 = arith.divf %128, %129 : vector<8x128xf32>
    %131 = vector.extract_strided_slice %118 {offsets = [0, 256], sizes = [8, 128], strides = [1, 1]} : vector<8x512xf32> to vector<8x128xf32>
    %132 = math.tanh %131 : vector<8x128xf32>
    %133 = vector.extract_strided_slice %118 {offsets = [0, 384], sizes = [8, 128], strides = [1, 1]} : vector<8x512xf32> to vector<8x128xf32>
    %134 = arith.negf %133 : vector<8x128xf32>
    %135 = math.exp %134 : vector<8x128xf32>
    %cst_42 = arith.constant 1.000000e+00 : f32
    %136 = vector.broadcast %cst_42 : f32 to vector<8x128xf32>
    %137 = arith.addf %136, %135 : vector<8x128xf32>
    %138 = arith.divf %136, %137 : vector<8x128xf32>
    %139 = arith.mulf %130, %107 : vector<8x128xf32>
    %140 = arith.mulf %124, %132 : vector<8x128xf32>
    %141 = arith.addf %139, %140 : vector<8x128xf32>
    %142 = math.tanh %141 : vector<8x128xf32>
    %143 = arith.mulf %138, %142 : vector<8x128xf32>
    %144 = arith.index_cast %c3_i32 : i32 to index
    %c0_43 = arith.constant 0 : index
    %c0_44 = arith.constant 0 : index
    %145 = vector.load %arg10[%144, %c0_43, %c0_44] : memref<9x8x128xf32, #tpu.memory_space<vmem>>, vector<1x8x128xf32>
    %146 = vector.shape_cast %145 : vector<1x8x128xf32> to vector<8x128xf32>
    %147 = vector.shape_cast %143 : vector<8x128xf32> to vector<1x8x128xf32>
    tpu.vector_store %arg10[%144, %c0_43, %c0_44], %147 {strides = array<i32>} : memref<9x8x128xf32, #tpu.memory_space<vmem>>, vector<1x8x128xf32>,
    %c4_i32 = arith.constant 4 : i32
    %148 = arith.index_cast %c4_i32 : i32 to index
    %c0_45 = arith.constant 0 : index
    %c0_46 = arith.constant 0 : index
    %149 = vector.load %arg12[%148, %c0_45, %c0_46] : memref<9x8x512xf32, #tpu.memory_space<vmem>>, vector<1x8x512xf32>
    %150 = vector.shape_cast %149 : vector<1x8x512xf32> to vector<8x512xf32>
    %cst_47 = arith.constant dense<0.000000e+00> : vector<8x512xf32>
    %151 = tpu.matmul %143, %1, %cst_47 {dimension_numbers = #tpu.dot_dimension_numbers<[1], [0], [0], [1], [0, 0, 1, 1], [], []>} : vector<8x128xf32>, vector<128x512xf32>, vector<8x512xf32> -> vector<8x512xf32>
    %152 = arith.addf %150, %151 : vector<8x512xf32>
    %153 = vector.extract_strided_slice %152 {offsets = [0, 0], sizes = [8, 128], strides = [1, 1]} : vector<8x512xf32> to vector<8x128xf32>
    %154 = arith.negf %153 : vector<8x128xf32>
    %155 = math.exp %154 : vector<8x128xf32>
    %cst_48 = arith.constant 1.000000e+00 : f32
    %156 = vector.broadcast %cst_48 : f32 to vector<8x128xf32>
    %157 = arith.addf %156, %155 : vector<8x128xf32>
    %158 = arith.divf %156, %157 : vector<8x128xf32>
    %159 = vector.extract_strided_slice %152 {offsets = [0, 128], sizes = [8, 128], strides = [1, 1]} : vector<8x512xf32> to vector<8x128xf32>
    %160 = arith.negf %159 : vector<8x128xf32>
    %161 = math.exp %160 : vector<8x128xf32>
    %cst_49 = arith.constant 1.000000e+00 : f32
    %162 = vector.broadcast %cst_49 : f32 to vector<8x128xf32>
    %163 = arith.addf %162, %161 : vector<8x128xf32>
    %164 = arith.divf %162, %163 : vector<8x128xf32>
    %165 = vector.extract_strided_slice %152 {offsets = [0, 256], sizes = [8, 128], strides = [1, 1]} : vector<8x512xf32> to vector<8x128xf32>
    %166 = math.tanh %165 : vector<8x128xf32>
    %167 = vector.extract_strided_slice %152 {offsets = [0, 384], sizes = [8, 128], strides = [1, 1]} : vector<8x512xf32> to vector<8x128xf32>
    %168 = arith.negf %167 : vector<8x128xf32>
    %169 = math.exp %168 : vector<8x128xf32>
    %cst_50 = arith.constant 1.000000e+00 : f32
    %170 = vector.broadcast %cst_50 : f32 to vector<8x128xf32>
    %171 = arith.addf %170, %169 : vector<8x128xf32>
    %172 = arith.divf %170, %171 : vector<8x128xf32>
    %173 = arith.mulf %164, %141 : vector<8x128xf32>
    %174 = arith.mulf %158, %166 : vector<8x128xf32>
    %175 = arith.addf %173, %174 : vector<8x128xf32>
    %176 = math.tanh %175 : vector<8x128xf32>
    %177 = arith.mulf %172, %176 : vector<8x128xf32>
    %178 = arith.index_cast %c4_i32 : i32 to index
    %c0_51 = arith.constant 0 : index
    %c0_52 = arith.constant 0 : index
    %179 = vector.load %arg10[%178, %c0_51, %c0_52] : memref<9x8x128xf32, #tpu.memory_space<vmem>>, vector<1x8x128xf32>
    %180 = vector.shape_cast %179 : vector<1x8x128xf32> to vector<8x128xf32>
    %181 = vector.shape_cast %177 : vector<8x128xf32> to vector<1x8x128xf32>
    tpu.vector_store %arg10[%178, %c0_51, %c0_52], %181 {strides = array<i32>} : memref<9x8x128xf32, #tpu.memory_space<vmem>>, vector<1x8x128xf32>,
    %c5_i32 = arith.constant 5 : i32
    %182 = arith.index_cast %c5_i32 : i32 to index
    %c0_53 = arith.constant 0 : index
    %c0_54 = arith.constant 0 : index
    %183 = vector.load %arg12[%182, %c0_53, %c0_54] : memref<9x8x512xf32, #tpu.memory_space<vmem>>, vector<1x8x512xf32>
    %184 = vector.shape_cast %183 : vector<1x8x512xf32> to vector<8x512xf32>
    %cst_55 = arith.constant dense<0.000000e+00> : vector<8x512xf32>
    %185 = tpu.matmul %177, %1, %cst_55 {dimension_numbers = #tpu.dot_dimension_numbers<[1], [0], [0], [1], [0, 0, 1, 1], [], []>} : vector<8x128xf32>, vector<128x512xf32>, vector<8x512xf32> -> vector<8x512xf32>
    %186 = arith.addf %184, %185 : vector<8x512xf32>
    %187 = vector.extract_strided_slice %186 {offsets = [0, 0], sizes = [8, 128], strides = [1, 1]} : vector<8x512xf32> to vector<8x128xf32>
    %188 = arith.negf %187 : vector<8x128xf32>
    %189 = math.exp %188 : vector<8x128xf32>
    %cst_56 = arith.constant 1.000000e+00 : f32
    %190 = vector.broadcast %cst_56 : f32 to vector<8x128xf32>
    %191 = arith.addf %190, %189 : vector<8x128xf32>
    %192 = arith.divf %190, %191 : vector<8x128xf32>
    %193 = vector.extract_strided_slice %186 {offsets = [0, 128], sizes = [8, 128], strides = [1, 1]} : vector<8x512xf32> to vector<8x128xf32>
    %194 = arith.negf %193 : vector<8x128xf32>
    %195 = math.exp %194 : vector<8x128xf32>
    %cst_57 = arith.constant 1.000000e+00 : f32
    %196 = vector.broadcast %cst_57 : f32 to vector<8x128xf32>
    %197 = arith.addf %196, %195 : vector<8x128xf32>
    %198 = arith.divf %196, %197 : vector<8x128xf32>
    %199 = vector.extract_strided_slice %186 {offsets = [0, 256], sizes = [8, 128], strides = [1, 1]} : vector<8x512xf32> to vector<8x128xf32>
    %200 = math.tanh %199 : vector<8x128xf32>
    %201 = vector.extract_strided_slice %186 {offsets = [0, 384], sizes = [8, 128], strides = [1, 1]} : vector<8x512xf32> to vector<8x128xf32>
    %202 = arith.negf %201 : vector<8x128xf32>
    %203 = math.exp %202 : vector<8x128xf32>
    %cst_58 = arith.constant 1.000000e+00 : f32
    %204 = vector.broadcast %cst_58 : f32 to vector<8x128xf32>
    %205 = arith.addf %204, %203 : vector<8x128xf32>
    %206 = arith.divf %204, %205 : vector<8x128xf32>
    %207 = arith.mulf %198, %175 : vector<8x128xf32>
    %208 = arith.mulf %192, %200 : vector<8x128xf32>
    %209 = arith.addf %207, %208 : vector<8x128xf32>
    %210 = math.tanh %209 : vector<8x128xf32>
    %211 = arith.mulf %206, %210 : vector<8x128xf32>
    %212 = arith.index_cast %c5_i32 : i32 to index
    %c0_59 = arith.constant 0 : index
    %c0_60 = arith.constant 0 : index
    %213 = vector.load %arg10[%212, %c0_59, %c0_60] : memref<9x8x128xf32, #tpu.memory_space<vmem>>, vector<1x8x128xf32>
    %214 = vector.shape_cast %213 : vector<1x8x128xf32> to vector<8x128xf32>
    %215 = vector.shape_cast %211 : vector<8x128xf32> to vector<1x8x128xf32>
    tpu.vector_store %arg10[%212, %c0_59, %c0_60], %215 {strides = array<i32>} : memref<9x8x128xf32, #tpu.memory_space<vmem>>, vector<1x8x128xf32>,
    %c6_i32 = arith.constant 6 : i32
    %216 = arith.index_cast %c6_i32 : i32 to index
    %c0_61 = arith.constant 0 : index
    %c0_62 = arith.constant 0 : index
    %217 = vector.load %arg12[%216, %c0_61, %c0_62] : memref<9x8x512xf32, #tpu.memory_space<vmem>>, vector<1x8x512xf32>
    %218 = vector.shape_cast %217 : vector<1x8x512xf32> to vector<8x512xf32>
    %cst_63 = arith.constant dense<0.000000e+00> : vector<8x512xf32>
    %219 = tpu.matmul %211, %1, %cst_63 {dimension_numbers = #tpu.dot_dimension_numbers<[1], [0], [0], [1], [0, 0, 1, 1], [], []>} : vector<8x128xf32>, vector<128x512xf32>, vector<8x512xf32> -> vector<8x512xf32>
    %220 = arith.addf %218, %219 : vector<8x512xf32>
    %221 = vector.extract_strided_slice %220 {offsets = [0, 0], sizes = [8, 128], strides = [1, 1]} : vector<8x512xf32> to vector<8x128xf32>
    %222 = arith.negf %221 : vector<8x128xf32>
    %223 = math.exp %222 : vector<8x128xf32>
    %cst_64 = arith.constant 1.000000e+00 : f32
    %224 = vector.broadcast %cst_64 : f32 to vector<8x128xf32>
    %225 = arith.addf %224, %223 : vector<8x128xf32>
    %226 = arith.divf %224, %225 : vector<8x128xf32>
    %227 = vector.extract_strided_slice %220 {offsets = [0, 128], sizes = [8, 128], strides = [1, 1]} : vector<8x512xf32> to vector<8x128xf32>
    %228 = arith.negf %227 : vector<8x128xf32>
    %229 = math.exp %228 : vector<8x128xf32>
    %cst_65 = arith.constant 1.000000e+00 : f32
    %230 = vector.broadcast %cst_65 : f32 to vector<8x128xf32>
    %231 = arith.addf %230, %229 : vector<8x128xf32>
    %232 = arith.divf %230, %231 : vector<8x128xf32>
    %233 = vector.extract_strided_slice %220 {offsets = [0, 256], sizes = [8, 128], strides = [1, 1]} : vector<8x512xf32> to vector<8x128xf32>
    %234 = math.tanh %233 : vector<8x128xf32>
    %235 = vector.extract_strided_slice %220 {offsets = [0, 384], sizes = [8, 128], strides = [1, 1]} : vector<8x512xf32> to vector<8x128xf32>
    %236 = arith.negf %235 : vector<8x128xf32>
    %237 = math.exp %236 : vector<8x128xf32>
    %cst_66 = arith.constant 1.000000e+00 : f32
    %238 = vector.broadcast %cst_66 : f32 to vector<8x128xf32>
    %239 = arith.addf %238, %237 : vector<8x128xf32>
    %240 = arith.divf %238, %239 : vector<8x128xf32>
    %241 = arith.mulf %232, %209 : vector<8x128xf32>
    %242 = arith.mulf %226, %234 : vector<8x128xf32>
    %243 = arith.addf %241, %242 : vector<8x128xf32>
    %244 = math.tanh %243 : vector<8x128xf32>
    %245 = arith.mulf %240, %244 : vector<8x128xf32>
    %246 = arith.index_cast %c6_i32 : i32 to index
    %c0_67 = arith.constant 0 : index
    %c0_68 = arith.constant 0 : index
    %247 = vector.load %arg10[%246, %c0_67, %c0_68] : memref<9x8x128xf32, #tpu.memory_space<vmem>>, vector<1x8x128xf32>
    %248 = vector.shape_cast %247 : vector<1x8x128xf32> to vector<8x128xf32>
    %249 = vector.shape_cast %245 : vector<8x128xf32> to vector<1x8x128xf32>
    tpu.vector_store %arg10[%246, %c0_67, %c0_68], %249 {strides = array<i32>} : memref<9x8x128xf32, #tpu.memory_space<vmem>>, vector<1x8x128xf32>,
    %c7_i32 = arith.constant 7 : i32
    %250 = arith.index_cast %c7_i32 : i32 to index
    %c0_69 = arith.constant 0 : index
    %c0_70 = arith.constant 0 : index
    %251 = vector.load %arg12[%250, %c0_69, %c0_70] : memref<9x8x512xf32, #tpu.memory_space<vmem>>, vector<1x8x512xf32>
    %252 = vector.shape_cast %251 : vector<1x8x512xf32> to vector<8x512xf32>
    %cst_71 = arith.constant dense<0.000000e+00> : vector<8x512xf32>
    %253 = tpu.matmul %245, %1, %cst_71 {dimension_numbers = #tpu.dot_dimension_numbers<[1], [0], [0], [1], [0, 0, 1, 1], [], []>} : vector<8x128xf32>, vector<128x512xf32>, vector<8x512xf32> -> vector<8x512xf32>
    %254 = arith.addf %252, %253 : vector<8x512xf32>
    %255 = vector.extract_strided_slice %254 {offsets = [0, 0], sizes = [8, 128], strides = [1, 1]} : vector<8x512xf32> to vector<8x128xf32>
    %256 = arith.negf %255 : vector<8x128xf32>
    %257 = math.exp %256 : vector<8x128xf32>
    %cst_72 = arith.constant 1.000000e+00 : f32
    %258 = vector.broadcast %cst_72 : f32 to vector<8x128xf32>
    %259 = arith.addf %258, %257 : vector<8x128xf32>
    %260 = arith.divf %258, %259 : vector<8x128xf32>
    %261 = vector.extract_strided_slice %254 {offsets = [0, 128], sizes = [8, 128], strides = [1, 1]} : vector<8x512xf32> to vector<8x128xf32>
    %262 = arith.negf %261 : vector<8x128xf32>
    %263 = math.exp %262 : vector<8x128xf32>
    %cst_73 = arith.constant 1.000000e+00 : f32
    %264 = vector.broadcast %cst_73 : f32 to vector<8x128xf32>
    %265 = arith.addf %264, %263 : vector<8x128xf32>
    %266 = arith.divf %264, %265 : vector<8x128xf32>
    %267 = vector.extract_strided_slice %254 {offsets = [0, 256], sizes = [8, 128], strides = [1, 1]} : vector<8x512xf32> to vector<8x128xf32>
    %268 = math.tanh %267 : vector<8x128xf32>
    %269 = vector.extract_strided_slice %254 {offsets = [0, 384], sizes = [8, 128], strides = [1, 1]} : vector<8x512xf32> to vector<8x128xf32>
    %270 = arith.negf %269 : vector<8x128xf32>
    %271 = math.exp %270 : vector<8x128xf32>
    %cst_74 = arith.constant 1.000000e+00 : f32
    %272 = vector.broadcast %cst_74 : f32 to vector<8x128xf32>
    %273 = arith.addf %272, %271 : vector<8x128xf32>
    %274 = arith.divf %272, %273 : vector<8x128xf32>
    %275 = arith.mulf %266, %243 : vector<8x128xf32>
    %276 = arith.mulf %260, %268 : vector<8x128xf32>
    %277 = arith.addf %275, %276 : vector<8x128xf32>
    %278 = math.tanh %277 : vector<8x128xf32>
    %279 = arith.mulf %274, %278 : vector<8x128xf32>
    %280 = arith.index_cast %c7_i32 : i32 to index
    %c0_75 = arith.constant 0 : index
    %c0_76 = arith.constant 0 : index
    %281 = vector.load %arg10[%280, %c0_75, %c0_76] : memref<9x8x128xf32, #tpu.memory_space<vmem>>, vector<1x8x128xf32>
    %282 = vector.shape_cast %281 : vector<1x8x128xf32> to vector<8x128xf32>
    %283 = vector.shape_cast %279 : vector<8x128xf32> to vector<1x8x128xf32>
    tpu.vector_store %arg10[%280, %c0_75, %c0_76], %283 {strides = array<i32>} : memref<9x8x128xf32, #tpu.memory_space<vmem>>, vector<1x8x128xf32>,
    %c8_i32 = arith.constant 8 : i32
    %284 = arith.index_cast %c8_i32 : i32 to index
    %c0_77 = arith.constant 0 : index
    %c0_78 = arith.constant 0 : index
    %285 = vector.load %arg12[%284, %c0_77, %c0_78] : memref<9x8x512xf32, #tpu.memory_space<vmem>>, vector<1x8x512xf32>
    %286 = vector.shape_cast %285 : vector<1x8x512xf32> to vector<8x512xf32>
    %cst_79 = arith.constant dense<0.000000e+00> : vector<8x512xf32>
    %287 = tpu.matmul %279, %1, %cst_79 {dimension_numbers = #tpu.dot_dimension_numbers<[1], [0], [0], [1], [0, 0, 1, 1], [], []>} : vector<8x128xf32>, vector<128x512xf32>, vector<8x512xf32> -> vector<8x512xf32>
    %288 = arith.addf %286, %287 : vector<8x512xf32>
    %289 = vector.extract_strided_slice %288 {offsets = [0, 0], sizes = [8, 128], strides = [1, 1]} : vector<8x512xf32> to vector<8x128xf32>
    %290 = arith.negf %289 : vector<8x128xf32>
    %291 = math.exp %290 : vector<8x128xf32>
    %cst_80 = arith.constant 1.000000e+00 : f32
    %292 = vector.broadcast %cst_80 : f32 to vector<8x128xf32>
    %293 = arith.addf %292, %291 : vector<8x128xf32>
    %294 = arith.divf %292, %293 : vector<8x128xf32>
    %295 = vector.extract_strided_slice %288 {offsets = [0, 128], sizes = [8, 128], strides = [1, 1]} : vector<8x512xf32> to vector<8x128xf32>
    %296 = arith.negf %295 : vector<8x128xf32>
    %297 = math.exp %296 : vector<8x128xf32>
    %cst_81 = arith.constant 1.000000e+00 : f32
    %298 = vector.broadcast %cst_81 : f32 to vector<8x128xf32>
    %299 = arith.addf %298, %297 : vector<8x128xf32>
    %300 = arith.divf %298, %299 : vector<8x128xf32>
    %301 = vector.extract_strided_slice %288 {offsets = [0, 256], sizes = [8, 128], strides = [1, 1]} : vector<8x512xf32> to vector<8x128xf32>
    %302 = math.tanh %301 : vector<8x128xf32>
    %303 = vector.extract_strided_slice %288 {offsets = [0, 384], sizes = [8, 128], strides = [1, 1]} : vector<8x512xf32> to vector<8x128xf32>
    %304 = arith.negf %303 : vector<8x128xf32>
    %305 = math.exp %304 : vector<8x128xf32>
    %cst_82 = arith.constant 1.000000e+00 : f32
    %306 = vector.broadcast %cst_82 : f32 to vector<8x128xf32>
    %307 = arith.addf %306, %305 : vector<8x128xf32>
    %308 = arith.divf %306, %307 : vector<8x128xf32>
    %309 = arith.mulf %300, %277 : vector<8x128xf32>
    %310 = arith.mulf %294, %302 : vector<8x128xf32>
    %311 = arith.addf %309, %310 : vector<8x128xf32>
    %312 = math.tanh %311 : vector<8x128xf32>
    %313 = arith.mulf %308, %312 : vector<8x128xf32>
    %314 = arith.index_cast %c8_i32 : i32 to index
    %c0_83 = arith.constant 0 : index
    %c0_84 = arith.constant 0 : index
    %315 = vector.load %arg10[%314, %c0_83, %c0_84] : memref<9x8x128xf32, #tpu.memory_space<vmem>>, vector<1x8x128xf32>
    %316 = vector.shape_cast %315 : vector<1x8x128xf32> to vector<8x128xf32>
    %317 = vector.shape_cast %313 : vector<8x128xf32> to vector<1x8x128xf32>
    tpu.vector_store %arg10[%314, %c0_83, %c0_84], %317 {strides = array<i32>} : memref<9x8x128xf32, #tpu.memory_space<vmem>>, vector<1x8x128xf32>,
    %c9_i32 = arith.constant 9 : i32
    %c0_85 = arith.constant 0 : index
    %c0_86 = arith.constant 0 : index
    %318 = vector.load %arg4[%c0_85, %c0_86] : memref<128x512xf32, #tpu.memory_space<vmem>>, vector<128x512xf32>
    %c0_87 = arith.constant 0 : index
    %c0_88 = arith.constant 0 : index
    %319 = vector.load %arg5[%c0_87, %c0_88] : memref<128x512xf32, #tpu.memory_space<vmem>>, vector<128x512xf32>
    %c0_89 = arith.constant 0 : index
    %c0_90 = arith.constant 0 : index
    %320 = vector.load %arg6[%c0_89, %c0_90] : memref<1x512xf32, #tpu.memory_space<vmem>>, vector<1x512xf32>
    %c0_91 = arith.constant 0 : index
    %c0_92 = arith.constant 0 : index
    %c0_93 = arith.constant 0 : index
    %321 = vector.load %arg10[%c0_91, %c0_92, %c0_93] : memref<9x8x128xf32, #tpu.memory_space<vmem>>, vector<9x8x128xf32>
    %322 = vector.shape_cast %321 : vector<9x8x128xf32> to vector<72x128xf32>
    %cst_94 = arith.constant dense<0.000000e+00> : vector<72x512xf32>
    %323 = tpu.matmul %322, %318, %cst_94 {dimension_numbers = #tpu.dot_dimension_numbers<[1], [0], [0], [1], [0, 0, 1, 1], [], []>} : vector<72x128xf32>, vector<128x512xf32>, vector<72x512xf32> -> vector<72x512xf32>
    %324 = vector.broadcast %320 : vector<1x512xf32> to vector<72x512xf32>
    %325 = arith.addf %323, %324 : vector<72x512xf32>
    %326 = vector.shape_cast %325 : vector<72x512xf32> to vector<9x8x512xf32>
    %c0_95 = arith.constant 0 : index
    %c0_96 = arith.constant 0 : index
    %c0_97 = arith.constant 0 : index
    %327 = vector.load %arg12[%c0_95, %c0_96, %c0_97] : memref<9x8x512xf32, #tpu.memory_space<vmem>>, vector<9x8x512xf32>
    tpu.vector_store %arg12[%c0_95, %c0_96, %c0_97], %326 {strides = array<i32>} : memref<9x8x512xf32, #tpu.memory_space<vmem>>, vector<9x8x512xf32>,
    %cst_98 = arith.constant 0.000000e+00 : f32
    %328 = vector.broadcast %cst_98 : f32 to vector<8x128xf32>
    %cst_99 = arith.constant 0.000000e+00 : f32
    %329 = vector.broadcast %cst_99 : f32 to vector<8x128xf32>
    %c0_i32_100 = arith.constant 0 : i32
    %330 = arith.index_cast %c0_i32_100 : i32 to index
    %c0_101 = arith.constant 0 : index
    %c0_102 = arith.constant 0 : index
    %331 = vector.load %arg12[%330, %c0_101, %c0_102] : memref<9x8x512xf32, #tpu.memory_space<vmem>>, vector<1x8x512xf32>
    %332 = vector.shape_cast %331 : vector<1x8x512xf32> to vector<8x512xf32>
    %cst_103 = arith.constant dense<0.000000e+00> : vector<8x512xf32>
    %333 = tpu.matmul %328, %319, %cst_103 {dimension_numbers = #tpu.dot_dimension_numbers<[1], [0], [0], [1], [0, 0, 1, 1], [], []>} : vector<8x128xf32>, vector<128x512xf32>, vector<8x512xf32> -> vector<8x512xf32>
    %334 = arith.addf %332, %333 : vector<8x512xf32>
    %335 = vector.extract_strided_slice %334 {offsets = [0, 0], sizes = [8, 128], strides = [1, 1]} : vector<8x512xf32> to vector<8x128xf32>
    %336 = arith.negf %335 : vector<8x128xf32>
    %337 = math.exp %336 : vector<8x128xf32>
    %cst_104 = arith.constant 1.000000e+00 : f32
    %338 = vector.broadcast %cst_104 : f32 to vector<8x128xf32>
    %339 = arith.addf %338, %337 : vector<8x128xf32>
    %340 = arith.divf %338, %339 : vector<8x128xf32>
    %341 = vector.extract_strided_slice %334 {offsets = [0, 128], sizes = [8, 128], strides = [1, 1]} : vector<8x512xf32> to vector<8x128xf32>
    %342 = arith.negf %341 : vector<8x128xf32>
    %343 = math.exp %342 : vector<8x128xf32>
    %cst_105 = arith.constant 1.000000e+00 : f32
    %344 = vector.broadcast %cst_105 : f32 to vector<8x128xf32>
    %345 = arith.addf %344, %343 : vector<8x128xf32>
    %346 = arith.divf %344, %345 : vector<8x128xf32>
    %347 = vector.extract_strided_slice %334 {offsets = [0, 256], sizes = [8, 128], strides = [1, 1]} : vector<8x512xf32> to vector<8x128xf32>
    %348 = math.tanh %347 : vector<8x128xf32>
    %349 = vector.extract_strided_slice %334 {offsets = [0, 384], sizes = [8, 128], strides = [1, 1]} : vector<8x512xf32> to vector<8x128xf32>
    %350 = arith.negf %349 : vector<8x128xf32>
    %351 = math.exp %350 : vector<8x128xf32>
    %cst_106 = arith.constant 1.000000e+00 : f32
    %352 = vector.broadcast %cst_106 : f32 to vector<8x128xf32>
    %353 = arith.addf %352, %351 : vector<8x128xf32>
    %354 = arith.divf %352, %353 : vector<8x128xf32>
    %355 = arith.mulf %346, %329 : vector<8x128xf32>
    %356 = arith.mulf %340, %348 : vector<8x128xf32>
    %357 = arith.addf %355, %356 : vector<8x128xf32>
    %358 = math.tanh %357 : vector<8x128xf32>
    %359 = arith.mulf %354, %358 : vector<8x128xf32>
    %360 = arith.index_cast %c0_i32_100 : i32 to index
    %c0_107 = arith.constant 0 : index
    %c0_108 = arith.constant 0 : index
    %361 = vector.load %arg11[%360, %c0_107, %c0_108] : memref<9x8x128xf32, #tpu.memory_space<vmem>>, vector<1x8x128xf32>
    %362 = vector.shape_cast %361 : vector<1x8x128xf32> to vector<8x128xf32>
    %363 = vector.shape_cast %359 : vector<8x128xf32> to vector<1x8x128xf32>
    tpu.vector_store %arg11[%360, %c0_107, %c0_108], %363 {strides = array<i32>} : memref<9x8x128xf32, #tpu.memory_space<vmem>>, vector<1x8x128xf32>,
    %c1_i32_109 = arith.constant 1 : i32
    %364 = arith.index_cast %c1_i32_109 : i32 to index
    %c0_110 = arith.constant 0 : index
    %c0_111 = arith.constant 0 : index
    %365 = vector.load %arg12[%364, %c0_110, %c0_111] : memref<9x8x512xf32, #tpu.memory_space<vmem>>, vector<1x8x512xf32>
    %366 = vector.shape_cast %365 : vector<1x8x512xf32> to vector<8x512xf32>
    %cst_112 = arith.constant dense<0.000000e+00> : vector<8x512xf32>
    %367 = tpu.matmul %359, %319, %cst_112 {dimension_numbers = #tpu.dot_dimension_numbers<[1], [0], [0], [1], [0, 0, 1, 1], [], []>} : vector<8x128xf32>, vector<128x512xf32>, vector<8x512xf32> -> vector<8x512xf32>
    %368 = arith.addf %366, %367 : vector<8x512xf32>
    %369 = vector.extract_strided_slice %368 {offsets = [0, 0], sizes = [8, 128], strides = [1, 1]} : vector<8x512xf32> to vector<8x128xf32>
    %370 = arith.negf %369 : vector<8x128xf32>
    %371 = math.exp %370 : vector<8x128xf32>
    %cst_113 = arith.constant 1.000000e+00 : f32
    %372 = vector.broadcast %cst_113 : f32 to vector<8x128xf32>
    %373 = arith.addf %372, %371 : vector<8x128xf32>
    %374 = arith.divf %372, %373 : vector<8x128xf32>
    %375 = vector.extract_strided_slice %368 {offsets = [0, 128], sizes = [8, 128], strides = [1, 1]} : vector<8x512xf32> to vector<8x128xf32>
    %376 = arith.negf %375 : vector<8x128xf32>
    %377 = math.exp %376 : vector<8x128xf32>
    %cst_114 = arith.constant 1.000000e+00 : f32
    %378 = vector.broadcast %cst_114 : f32 to vector<8x128xf32>
    %379 = arith.addf %378, %377 : vector<8x128xf32>
    %380 = arith.divf %378, %379 : vector<8x128xf32>
    %381 = vector.extract_strided_slice %368 {offsets = [0, 256], sizes = [8, 128], strides = [1, 1]} : vector<8x512xf32> to vector<8x128xf32>
    %382 = math.tanh %381 : vector<8x128xf32>
    %383 = vector.extract_strided_slice %368 {offsets = [0, 384], sizes = [8, 128], strides = [1, 1]} : vector<8x512xf32> to vector<8x128xf32>
    %384 = arith.negf %383 : vector<8x128xf32>
    %385 = math.exp %384 : vector<8x128xf32>
    %cst_115 = arith.constant 1.000000e+00 : f32
    %386 = vector.broadcast %cst_115 : f32 to vector<8x128xf32>
    %387 = arith.addf %386, %385 : vector<8x128xf32>
    %388 = arith.divf %386, %387 : vector<8x128xf32>
    %389 = arith.mulf %380, %357 : vector<8x128xf32>
    %390 = arith.mulf %374, %382 : vector<8x128xf32>
    %391 = arith.addf %389, %390 : vector<8x128xf32>
    %392 = math.tanh %391 : vector<8x128xf32>
    %393 = arith.mulf %388, %392 : vector<8x128xf32>
    %394 = arith.index_cast %c1_i32_109 : i32 to index
    %c0_116 = arith.constant 0 : index
    %c0_117 = arith.constant 0 : index
    %395 = vector.load %arg11[%394, %c0_116, %c0_117] : memref<9x8x128xf32, #tpu.memory_space<vmem>>, vector<1x8x128xf32>
    %396 = vector.shape_cast %395 : vector<1x8x128xf32> to vector<8x128xf32>
    %397 = vector.shape_cast %393 : vector<8x128xf32> to vector<1x8x128xf32>
    tpu.vector_store %arg11[%394, %c0_116, %c0_117], %397 {strides = array<i32>} : memref<9x8x128xf32, #tpu.memory_space<vmem>>, vector<1x8x128xf32>,
    %c2_i32_118 = arith.constant 2 : i32
    %398 = arith.index_cast %c2_i32_118 : i32 to index
    %c0_119 = arith.constant 0 : index
    %c0_120 = arith.constant 0 : index
    %399 = vector.load %arg12[%398, %c0_119, %c0_120] : memref<9x8x512xf32, #tpu.memory_space<vmem>>, vector<1x8x512xf32>
    %400 = vector.shape_cast %399 : vector<1x8x512xf32> to vector<8x512xf32>
    %cst_121 = arith.constant dense<0.000000e+00> : vector<8x512xf32>
    %401 = tpu.matmul %393, %319, %cst_121 {dimension_numbers = #tpu.dot_dimension_numbers<[1], [0], [0], [1], [0, 0, 1, 1], [], []>} : vector<8x128xf32>, vector<128x512xf32>, vector<8x512xf32> -> vector<8x512xf32>
    %402 = arith.addf %400, %401 : vector<8x512xf32>
    %403 = vector.extract_strided_slice %402 {offsets = [0, 0], sizes = [8, 128], strides = [1, 1]} : vector<8x512xf32> to vector<8x128xf32>
    %404 = arith.negf %403 : vector<8x128xf32>
    %405 = math.exp %404 : vector<8x128xf32>
    %cst_122 = arith.constant 1.000000e+00 : f32
    %406 = vector.broadcast %cst_122 : f32 to vector<8x128xf32>
    %407 = arith.addf %406, %405 : vector<8x128xf32>
    %408 = arith.divf %406, %407 : vector<8x128xf32>
    %409 = vector.extract_strided_slice %402 {offsets = [0, 128], sizes = [8, 128], strides = [1, 1]} : vector<8x512xf32> to vector<8x128xf32>
    %410 = arith.negf %409 : vector<8x128xf32>
    %411 = math.exp %410 : vector<8x128xf32>
    %cst_123 = arith.constant 1.000000e+00 : f32
    %412 = vector.broadcast %cst_123 : f32 to vector<8x128xf32>
    %413 = arith.addf %412, %411 : vector<8x128xf32>
    %414 = arith.divf %412, %413 : vector<8x128xf32>
    %415 = vector.extract_strided_slice %402 {offsets = [0, 256], sizes = [8, 128], strides = [1, 1]} : vector<8x512xf32> to vector<8x128xf32>
    %416 = math.tanh %415 : vector<8x128xf32>
    %417 = vector.extract_strided_slice %402 {offsets = [0, 384], sizes = [8, 128], strides = [1, 1]} : vector<8x512xf32> to vector<8x128xf32>
    %418 = arith.negf %417 : vector<8x128xf32>
    %419 = math.exp %418 : vector<8x128xf32>
    %cst_124 = arith.constant 1.000000e+00 : f32
    %420 = vector.broadcast %cst_124 : f32 to vector<8x128xf32>
    %421 = arith.addf %420, %419 : vector<8x128xf32>
    %422 = arith.divf %420, %421 : vector<8x128xf32>
    %423 = arith.mulf %414, %391 : vector<8x128xf32>
    %424 = arith.mulf %408, %416 : vector<8x128xf32>
    %425 = arith.addf %423, %424 : vector<8x128xf32>
    %426 = math.tanh %425 : vector<8x128xf32>
    %427 = arith.mulf %422, %426 : vector<8x128xf32>
    %428 = arith.index_cast %c2_i32_118 : i32 to index
    %c0_125 = arith.constant 0 : index
    %c0_126 = arith.constant 0 : index
    %429 = vector.load %arg11[%428, %c0_125, %c0_126] : memref<9x8x128xf32, #tpu.memory_space<vmem>>, vector<1x8x128xf32>
    %430 = vector.shape_cast %429 : vector<1x8x128xf32> to vector<8x128xf32>
    %431 = vector.shape_cast %427 : vector<8x128xf32> to vector<1x8x128xf32>
    tpu.vector_store %arg11[%428, %c0_125, %c0_126], %431 {strides = array<i32>} : memref<9x8x128xf32, #tpu.memory_space<vmem>>, vector<1x8x128xf32>,
    %c3_i32_127 = arith.constant 3 : i32
    %432 = arith.index_cast %c3_i32_127 : i32 to index
    %c0_128 = arith.constant 0 : index
    %c0_129 = arith.constant 0 : index
    %433 = vector.load %arg12[%432, %c0_128, %c0_129] : memref<9x8x512xf32, #tpu.memory_space<vmem>>, vector<1x8x512xf32>
    %434 = vector.shape_cast %433 : vector<1x8x512xf32> to vector<8x512xf32>
    %cst_130 = arith.constant dense<0.000000e+00> : vector<8x512xf32>
    %435 = tpu.matmul %427, %319, %cst_130 {dimension_numbers = #tpu.dot_dimension_numbers<[1], [0], [0], [1], [0, 0, 1, 1], [], []>} : vector<8x128xf32>, vector<128x512xf32>, vector<8x512xf32> -> vector<8x512xf32>
    %436 = arith.addf %434, %435 : vector<8x512xf32>
    %437 = vector.extract_strided_slice %436 {offsets = [0, 0], sizes = [8, 128], strides = [1, 1]} : vector<8x512xf32> to vector<8x128xf32>
    %438 = arith.negf %437 : vector<8x128xf32>
    %439 = math.exp %438 : vector<8x128xf32>
    %cst_131 = arith.constant 1.000000e+00 : f32
    %440 = vector.broadcast %cst_131 : f32 to vector<8x128xf32>
    %441 = arith.addf %440, %439 : vector<8x128xf32>
    %442 = arith.divf %440, %441 : vector<8x128xf32>
    %443 = vector.extract_strided_slice %436 {offsets = [0, 128], sizes = [8, 128], strides = [1, 1]} : vector<8x512xf32> to vector<8x128xf32>
    %444 = arith.negf %443 : vector<8x128xf32>
    %445 = math.exp %444 : vector<8x128xf32>
    %cst_132 = arith.constant 1.000000e+00 : f32
    %446 = vector.broadcast %cst_132 : f32 to vector<8x128xf32>
    %447 = arith.addf %446, %445 : vector<8x128xf32>
    %448 = arith.divf %446, %447 : vector<8x128xf32>
    %449 = vector.extract_strided_slice %436 {offsets = [0, 256], sizes = [8, 128], strides = [1, 1]} : vector<8x512xf32> to vector<8x128xf32>
    %450 = math.tanh %449 : vector<8x128xf32>
    %451 = vector.extract_strided_slice %436 {offsets = [0, 384], sizes = [8, 128], strides = [1, 1]} : vector<8x512xf32> to vector<8x128xf32>
    %452 = arith.negf %451 : vector<8x128xf32>
    %453 = math.exp %452 : vector<8x128xf32>
    %cst_133 = arith.constant 1.000000e+00 : f32
    %454 = vector.broadcast %cst_133 : f32 to vector<8x128xf32>
    %455 = arith.addf %454, %453 : vector<8x128xf32>
    %456 = arith.divf %454, %455 : vector<8x128xf32>
    %457 = arith.mulf %448, %425 : vector<8x128xf32>
    %458 = arith.mulf %442, %450 : vector<8x128xf32>
    %459 = arith.addf %457, %458 : vector<8x128xf32>
    %460 = math.tanh %459 : vector<8x128xf32>
    %461 = arith.mulf %456, %460 : vector<8x128xf32>
    %462 = arith.index_cast %c3_i32_127 : i32 to index
    %c0_134 = arith.constant 0 : index
    %c0_135 = arith.constant 0 : index
    %463 = vector.load %arg11[%462, %c0_134, %c0_135] : memref<9x8x128xf32, #tpu.memory_space<vmem>>, vector<1x8x128xf32>
    %464 = vector.shape_cast %463 : vector<1x8x128xf32> to vector<8x128xf32>
    %465 = vector.shape_cast %461 : vector<8x128xf32> to vector<1x8x128xf32>
    tpu.vector_store %arg11[%462, %c0_134, %c0_135], %465 {strides = array<i32>} : memref<9x8x128xf32, #tpu.memory_space<vmem>>, vector<1x8x128xf32>,
    %c4_i32_136 = arith.constant 4 : i32
    %466 = arith.index_cast %c4_i32_136 : i32 to index
    %c0_137 = arith.constant 0 : index
    %c0_138 = arith.constant 0 : index
    %467 = vector.load %arg12[%466, %c0_137, %c0_138] : memref<9x8x512xf32, #tpu.memory_space<vmem>>, vector<1x8x512xf32>
    %468 = vector.shape_cast %467 : vector<1x8x512xf32> to vector<8x512xf32>
    %cst_139 = arith.constant dense<0.000000e+00> : vector<8x512xf32>
    %469 = tpu.matmul %461, %319, %cst_139 {dimension_numbers = #tpu.dot_dimension_numbers<[1], [0], [0], [1], [0, 0, 1, 1], [], []>} : vector<8x128xf32>, vector<128x512xf32>, vector<8x512xf32> -> vector<8x512xf32>
    %470 = arith.addf %468, %469 : vector<8x512xf32>
    %471 = vector.extract_strided_slice %470 {offsets = [0, 0], sizes = [8, 128], strides = [1, 1]} : vector<8x512xf32> to vector<8x128xf32>
    %472 = arith.negf %471 : vector<8x128xf32>
    %473 = math.exp %472 : vector<8x128xf32>
    %cst_140 = arith.constant 1.000000e+00 : f32
    %474 = vector.broadcast %cst_140 : f32 to vector<8x128xf32>
    %475 = arith.addf %474, %473 : vector<8x128xf32>
    %476 = arith.divf %474, %475 : vector<8x128xf32>
    %477 = vector.extract_strided_slice %470 {offsets = [0, 128], sizes = [8, 128], strides = [1, 1]} : vector<8x512xf32> to vector<8x128xf32>
    %478 = arith.negf %477 : vector<8x128xf32>
    %479 = math.exp %478 : vector<8x128xf32>
    %cst_141 = arith.constant 1.000000e+00 : f32
    %480 = vector.broadcast %cst_141 : f32 to vector<8x128xf32>
    %481 = arith.addf %480, %479 : vector<8x128xf32>
    %482 = arith.divf %480, %481 : vector<8x128xf32>
    %483 = vector.extract_strided_slice %470 {offsets = [0, 256], sizes = [8, 128], strides = [1, 1]} : vector<8x512xf32> to vector<8x128xf32>
    %484 = math.tanh %483 : vector<8x128xf32>
    %485 = vector.extract_strided_slice %470 {offsets = [0, 384], sizes = [8, 128], strides = [1, 1]} : vector<8x512xf32> to vector<8x128xf32>
    %486 = arith.negf %485 : vector<8x128xf32>
    %487 = math.exp %486 : vector<8x128xf32>
    %cst_142 = arith.constant 1.000000e+00 : f32
    %488 = vector.broadcast %cst_142 : f32 to vector<8x128xf32>
    %489 = arith.addf %488, %487 : vector<8x128xf32>
    %490 = arith.divf %488, %489 : vector<8x128xf32>
    %491 = arith.mulf %482, %459 : vector<8x128xf32>
    %492 = arith.mulf %476, %484 : vector<8x128xf32>
    %493 = arith.addf %491, %492 : vector<8x128xf32>
    %494 = math.tanh %493 : vector<8x128xf32>
    %495 = arith.mulf %490, %494 : vector<8x128xf32>
    %496 = arith.index_cast %c4_i32_136 : i32 to index
    %c0_143 = arith.constant 0 : index
    %c0_144 = arith.constant 0 : index
    %497 = vector.load %arg11[%496, %c0_143, %c0_144] : memref<9x8x128xf32, #tpu.memory_space<vmem>>, vector<1x8x128xf32>
    %498 = vector.shape_cast %497 : vector<1x8x128xf32> to vector<8x128xf32>
    %499 = vector.shape_cast %495 : vector<8x128xf32> to vector<1x8x128xf32>
    tpu.vector_store %arg11[%496, %c0_143, %c0_144], %499 {strides = array<i32>} : memref<9x8x128xf32, #tpu.memory_space<vmem>>, vector<1x8x128xf32>,
    %c5_i32_145 = arith.constant 5 : i32
    %500 = arith.index_cast %c5_i32_145 : i32 to index
    %c0_146 = arith.constant 0 : index
    %c0_147 = arith.constant 0 : index
    %501 = vector.load %arg12[%500, %c0_146, %c0_147] : memref<9x8x512xf32, #tpu.memory_space<vmem>>, vector<1x8x512xf32>
    %502 = vector.shape_cast %501 : vector<1x8x512xf32> to vector<8x512xf32>
    %cst_148 = arith.constant dense<0.000000e+00> : vector<8x512xf32>
    %503 = tpu.matmul %495, %319, %cst_148 {dimension_numbers = #tpu.dot_dimension_numbers<[1], [0], [0], [1], [0, 0, 1, 1], [], []>} : vector<8x128xf32>, vector<128x512xf32>, vector<8x512xf32> -> vector<8x512xf32>
    %504 = arith.addf %502, %503 : vector<8x512xf32>
    %505 = vector.extract_strided_slice %504 {offsets = [0, 0], sizes = [8, 128], strides = [1, 1]} : vector<8x512xf32> to vector<8x128xf32>
    %506 = arith.negf %505 : vector<8x128xf32>
    %507 = math.exp %506 : vector<8x128xf32>
    %cst_149 = arith.constant 1.000000e+00 : f32
    %508 = vector.broadcast %cst_149 : f32 to vector<8x128xf32>
    %509 = arith.addf %508, %507 : vector<8x128xf32>
    %510 = arith.divf %508, %509 : vector<8x128xf32>
    %511 = vector.extract_strided_slice %504 {offsets = [0, 128], sizes = [8, 128], strides = [1, 1]} : vector<8x512xf32> to vector<8x128xf32>
    %512 = arith.negf %511 : vector<8x128xf32>
    %513 = math.exp %512 : vector<8x128xf32>
    %cst_150 = arith.constant 1.000000e+00 : f32
    %514 = vector.broadcast %cst_150 : f32 to vector<8x128xf32>
    %515 = arith.addf %514, %513 : vector<8x128xf32>
    %516 = arith.divf %514, %515 : vector<8x128xf32>
    %517 = vector.extract_strided_slice %504 {offsets = [0, 256], sizes = [8, 128], strides = [1, 1]} : vector<8x512xf32> to vector<8x128xf32>
    %518 = math.tanh %517 : vector<8x128xf32>
    %519 = vector.extract_strided_slice %504 {offsets = [0, 384], sizes = [8, 128], strides = [1, 1]} : vector<8x512xf32> to vector<8x128xf32>
    %520 = arith.negf %519 : vector<8x128xf32>
    %521 = math.exp %520 : vector<8x128xf32>
    %cst_151 = arith.constant 1.000000e+00 : f32
    %522 = vector.broadcast %cst_151 : f32 to vector<8x128xf32>
    %523 = arith.addf %522, %521 : vector<8x128xf32>
    %524 = arith.divf %522, %523 : vector<8x128xf32>
    %525 = arith.mulf %516, %493 : vector<8x128xf32>
    %526 = arith.mulf %510, %518 : vector<8x128xf32>
    %527 = arith.addf %525, %526 : vector<8x128xf32>
    %528 = math.tanh %527 : vector<8x128xf32>
    %529 = arith.mulf %524, %528 : vector<8x128xf32>
    %530 = arith.index_cast %c5_i32_145 : i32 to index
    %c0_152 = arith.constant 0 : index
    %c0_153 = arith.constant 0 : index
    %531 = vector.load %arg11[%530, %c0_152, %c0_153] : memref<9x8x128xf32, #tpu.memory_space<vmem>>, vector<1x8x128xf32>
    %532 = vector.shape_cast %531 : vector<1x8x128xf32> to vector<8x128xf32>
    %533 = vector.shape_cast %529 : vector<8x128xf32> to vector<1x8x128xf32>
    tpu.vector_store %arg11[%530, %c0_152, %c0_153], %533 {strides = array<i32>} : memref<9x8x128xf32, #tpu.memory_space<vmem>>, vector<1x8x128xf32>,
    %c6_i32_154 = arith.constant 6 : i32
    %534 = arith.index_cast %c6_i32_154 : i32 to index
    %c0_155 = arith.constant 0 : index
    %c0_156 = arith.constant 0 : index
    %535 = vector.load %arg12[%534, %c0_155, %c0_156] : memref<9x8x512xf32, #tpu.memory_space<vmem>>, vector<1x8x512xf32>
    %536 = vector.shape_cast %535 : vector<1x8x512xf32> to vector<8x512xf32>
    %cst_157 = arith.constant dense<0.000000e+00> : vector<8x512xf32>
    %537 = tpu.matmul %529, %319, %cst_157 {dimension_numbers = #tpu.dot_dimension_numbers<[1], [0], [0], [1], [0, 0, 1, 1], [], []>} : vector<8x128xf32>, vector<128x512xf32>, vector<8x512xf32> -> vector<8x512xf32>
    %538 = arith.addf %536, %537 : vector<8x512xf32>
    %539 = vector.extract_strided_slice %538 {offsets = [0, 0], sizes = [8, 128], strides = [1, 1]} : vector<8x512xf32> to vector<8x128xf32>
    %540 = arith.negf %539 : vector<8x128xf32>
    %541 = math.exp %540 : vector<8x128xf32>
    %cst_158 = arith.constant 1.000000e+00 : f32
    %542 = vector.broadcast %cst_158 : f32 to vector<8x128xf32>
    %543 = arith.addf %542, %541 : vector<8x128xf32>
    %544 = arith.divf %542, %543 : vector<8x128xf32>
    %545 = vector.extract_strided_slice %538 {offsets = [0, 128], sizes = [8, 128], strides = [1, 1]} : vector<8x512xf32> to vector<8x128xf32>
    %546 = arith.negf %545 : vector<8x128xf32>
    %547 = math.exp %546 : vector<8x128xf32>
    %cst_159 = arith.constant 1.000000e+00 : f32
    %548 = vector.broadcast %cst_159 : f32 to vector<8x128xf32>
    %549 = arith.addf %548, %547 : vector<8x128xf32>
    %550 = arith.divf %548, %549 : vector<8x128xf32>
    %551 = vector.extract_strided_slice %538 {offsets = [0, 256], sizes = [8, 128], strides = [1, 1]} : vector<8x512xf32> to vector<8x128xf32>
    %552 = math.tanh %551 : vector<8x128xf32>
    %553 = vector.extract_strided_slice %538 {offsets = [0, 384], sizes = [8, 128], strides = [1, 1]} : vector<8x512xf32> to vector<8x128xf32>
    %554 = arith.negf %553 : vector<8x128xf32>
    %555 = math.exp %554 : vector<8x128xf32>
    %cst_160 = arith.constant 1.000000e+00 : f32
    %556 = vector.broadcast %cst_160 : f32 to vector<8x128xf32>
    %557 = arith.addf %556, %555 : vector<8x128xf32>
    %558 = arith.divf %556, %557 : vector<8x128xf32>
    %559 = arith.mulf %550, %527 : vector<8x128xf32>
    %560 = arith.mulf %544, %552 : vector<8x128xf32>
    %561 = arith.addf %559, %560 : vector<8x128xf32>
    %562 = math.tanh %561 : vector<8x128xf32>
    %563 = arith.mulf %558, %562 : vector<8x128xf32>
    %564 = arith.index_cast %c6_i32_154 : i32 to index
    %c0_161 = arith.constant 0 : index
    %c0_162 = arith.constant 0 : index
    %565 = vector.load %arg11[%564, %c0_161, %c0_162] : memref<9x8x128xf32, #tpu.memory_space<vmem>>, vector<1x8x128xf32>
    %566 = vector.shape_cast %565 : vector<1x8x128xf32> to vector<8x128xf32>
    %567 = vector.shape_cast %563 : vector<8x128xf32> to vector<1x8x128xf32>
    tpu.vector_store %arg11[%564, %c0_161, %c0_162], %567 {strides = array<i32>} : memref<9x8x128xf32, #tpu.memory_space<vmem>>, vector<1x8x128xf32>,
    %c7_i32_163 = arith.constant 7 : i32
    %568 = arith.index_cast %c7_i32_163 : i32 to index
    %c0_164 = arith.constant 0 : index
    %c0_165 = arith.constant 0 : index
    %569 = vector.load %arg12[%568, %c0_164, %c0_165] : memref<9x8x512xf32, #tpu.memory_space<vmem>>, vector<1x8x512xf32>
    %570 = vector.shape_cast %569 : vector<1x8x512xf32> to vector<8x512xf32>
    %cst_166 = arith.constant dense<0.000000e+00> : vector<8x512xf32>
    %571 = tpu.matmul %563, %319, %cst_166 {dimension_numbers = #tpu.dot_dimension_numbers<[1], [0], [0], [1], [0, 0, 1, 1], [], []>} : vector<8x128xf32>, vector<128x512xf32>, vector<8x512xf32> -> vector<8x512xf32>
    %572 = arith.addf %570, %571 : vector<8x512xf32>
    %573 = vector.extract_strided_slice %572 {offsets = [0, 0], sizes = [8, 128], strides = [1, 1]} : vector<8x512xf32> to vector<8x128xf32>
    %574 = arith.negf %573 : vector<8x128xf32>
    %575 = math.exp %574 : vector<8x128xf32>
    %cst_167 = arith.constant 1.000000e+00 : f32
    %576 = vector.broadcast %cst_167 : f32 to vector<8x128xf32>
    %577 = arith.addf %576, %575 : vector<8x128xf32>
    %578 = arith.divf %576, %577 : vector<8x128xf32>
    %579 = vector.extract_strided_slice %572 {offsets = [0, 128], sizes = [8, 128], strides = [1, 1]} : vector<8x512xf32> to vector<8x128xf32>
    %580 = arith.negf %579 : vector<8x128xf32>
    %581 = math.exp %580 : vector<8x128xf32>
    %cst_168 = arith.constant 1.000000e+00 : f32
    %582 = vector.broadcast %cst_168 : f32 to vector<8x128xf32>
    %583 = arith.addf %582, %581 : vector<8x128xf32>
    %584 = arith.divf %582, %583 : vector<8x128xf32>
    %585 = vector.extract_strided_slice %572 {offsets = [0, 256], sizes = [8, 128], strides = [1, 1]} : vector<8x512xf32> to vector<8x128xf32>
    %586 = math.tanh %585 : vector<8x128xf32>
    %587 = vector.extract_strided_slice %572 {offsets = [0, 384], sizes = [8, 128], strides = [1, 1]} : vector<8x512xf32> to vector<8x128xf32>
    %588 = arith.negf %587 : vector<8x128xf32>
    %589 = math.exp %588 : vector<8x128xf32>
    %cst_169 = arith.constant 1.000000e+00 : f32
    %590 = vector.broadcast %cst_169 : f32 to vector<8x128xf32>
    %591 = arith.addf %590, %589 : vector<8x128xf32>
    %592 = arith.divf %590, %591 : vector<8x128xf32>
    %593 = arith.mulf %584, %561 : vector<8x128xf32>
    %594 = arith.mulf %578, %586 : vector<8x128xf32>
    %595 = arith.addf %593, %594 : vector<8x128xf32>
    %596 = math.tanh %595 : vector<8x128xf32>
    %597 = arith.mulf %592, %596 : vector<8x128xf32>
    %598 = arith.index_cast %c7_i32_163 : i32 to index
    %c0_170 = arith.constant 0 : index
    %c0_171 = arith.constant 0 : index
    %599 = vector.load %arg11[%598, %c0_170, %c0_171] : memref<9x8x128xf32, #tpu.memory_space<vmem>>, vector<1x8x128xf32>
    %600 = vector.shape_cast %599 : vector<1x8x128xf32> to vector<8x128xf32>
    %601 = vector.shape_cast %597 : vector<8x128xf32> to vector<1x8x128xf32>
    tpu.vector_store %arg11[%598, %c0_170, %c0_171], %601 {strides = array<i32>} : memref<9x8x128xf32, #tpu.memory_space<vmem>>, vector<1x8x128xf32>,
    %c8_i32_172 = arith.constant 8 : i32
    %602 = arith.index_cast %c8_i32_172 : i32 to index
    %c0_173 = arith.constant 0 : index
    %c0_174 = arith.constant 0 : index
    %603 = vector.load %arg12[%602, %c0_173, %c0_174] : memref<9x8x512xf32, #tpu.memory_space<vmem>>, vector<1x8x512xf32>
    %604 = vector.shape_cast %603 : vector<1x8x512xf32> to vector<8x512xf32>
    %cst_175 = arith.constant dense<0.000000e+00> : vector<8x512xf32>
    %605 = tpu.matmul %597, %319, %cst_175 {dimension_numbers = #tpu.dot_dimension_numbers<[1], [0], [0], [1], [0, 0, 1, 1], [], []>} : vector<8x128xf32>, vector<128x512xf32>, vector<8x512xf32> -> vector<8x512xf32>
    %606 = arith.addf %604, %605 : vector<8x512xf32>
    %607 = vector.extract_strided_slice %606 {offsets = [0, 0], sizes = [8, 128], strides = [1, 1]} : vector<8x512xf32> to vector<8x128xf32>
    %608 = arith.negf %607 : vector<8x128xf32>
    %609 = math.exp %608 : vector<8x128xf32>
    %cst_176 = arith.constant 1.000000e+00 : f32
    %610 = vector.broadcast %cst_176 : f32 to vector<8x128xf32>
    %611 = arith.addf %610, %609 : vector<8x128xf32>
    %612 = arith.divf %610, %611 : vector<8x128xf32>
    %613 = vector.extract_strided_slice %606 {offsets = [0, 128], sizes = [8, 128], strides = [1, 1]} : vector<8x512xf32> to vector<8x128xf32>
    %614 = arith.negf %613 : vector<8x128xf32>
    %615 = math.exp %614 : vector<8x128xf32>
    %cst_177 = arith.constant 1.000000e+00 : f32
    %616 = vector.broadcast %cst_177 : f32 to vector<8x128xf32>
    %617 = arith.addf %616, %615 : vector<8x128xf32>
    %618 = arith.divf %616, %617 : vector<8x128xf32>
    %619 = vector.extract_strided_slice %606 {offsets = [0, 256], sizes = [8, 128], strides = [1, 1]} : vector<8x512xf32> to vector<8x128xf32>
    %620 = math.tanh %619 : vector<8x128xf32>
    %621 = vector.extract_strided_slice %606 {offsets = [0, 384], sizes = [8, 128], strides = [1, 1]} : vector<8x512xf32> to vector<8x128xf32>
    %622 = arith.negf %621 : vector<8x128xf32>
    %623 = math.exp %622 : vector<8x128xf32>
    %cst_178 = arith.constant 1.000000e+00 : f32
    %624 = vector.broadcast %cst_178 : f32 to vector<8x128xf32>
    %625 = arith.addf %624, %623 : vector<8x128xf32>
    %626 = arith.divf %624, %625 : vector<8x128xf32>
    %627 = arith.mulf %618, %595 : vector<8x128xf32>
    %628 = arith.mulf %612, %620 : vector<8x128xf32>
    %629 = arith.addf %627, %628 : vector<8x128xf32>
    %630 = math.tanh %629 : vector<8x128xf32>
    %631 = arith.mulf %626, %630 : vector<8x128xf32>
    %632 = arith.index_cast %c8_i32_172 : i32 to index
    %c0_179 = arith.constant 0 : index
    %c0_180 = arith.constant 0 : index
    %633 = vector.load %arg11[%632, %c0_179, %c0_180] : memref<9x8x128xf32, #tpu.memory_space<vmem>>, vector<1x8x128xf32>
    %634 = vector.shape_cast %633 : vector<1x8x128xf32> to vector<8x128xf32>
    %635 = vector.shape_cast %631 : vector<8x128xf32> to vector<1x8x128xf32>
    tpu.vector_store %arg11[%632, %c0_179, %c0_180], %635 {strides = array<i32>} : memref<9x8x128xf32, #tpu.memory_space<vmem>>, vector<1x8x128xf32>,
    %c9_i32_181 = arith.constant 9 : i32
    %c0_182 = arith.constant 0 : index
    %c0_183 = arith.constant 0 : index
    %c0_184 = arith.constant 0 : index
    %636 = vector.load %arg11[%c0_182, %c0_183, %c0_184] : memref<9x8x128xf32, #tpu.memory_space<vmem>>, vector<9x8x128xf32>
    %637 = vector.shape_cast %636 : vector<9x8x128xf32> to vector<72x128xf32>
    %c0_185 = arith.constant 0 : index
    %c0_186 = arith.constant 0 : index
    %638 = vector.load %arg7[%c0_185, %c0_186] : memref<128x128xf32, #tpu.memory_space<vmem>>, vector<128x128xf32>
    %cst_187 = arith.constant dense<0.000000e+00> : vector<72x128xf32>
    %639 = tpu.matmul %637, %638, %cst_187 {dimension_numbers = #tpu.dot_dimension_numbers<[1], [0], [0], [1], [0, 0, 1, 1], [], []>} : vector<72x128xf32>, vector<128x128xf32>, vector<72x128xf32> -> vector<72x128xf32>
    %c0_188 = arith.constant 0 : index
    %c0_189 = arith.constant 0 : index
    %640 = vector.load %arg8[%c0_188, %c0_189] : memref<1x128xf32, #tpu.memory_space<vmem>>, vector<1x128xf32>
    %641 = vector.broadcast %640 : vector<1x128xf32> to vector<72x128xf32>
    %642 = arith.addf %639, %641 : vector<72x128xf32>
    %643 = vector.shape_cast %642 : vector<72x128xf32> to vector<9x8x128xf32>
    %c0_190 = arith.constant 0 : index
    %c0_191 = arith.constant 0 : index
    %c0_192 = arith.constant 0 : index
    %644 = vector.load %arg9[%c0_190, %c0_191, %c0_192] : memref<9x8x128xf32, #tpu.memory_space<vmem>>, vector<9x8x128xf32>
    tpu.vector_store %arg9[%c0_190, %c0_191, %c0_192], %643 {strides = array<i32>} : memref<9x8x128xf32, #tpu.memory_space<vmem>>, vector<9x8x128xf32>,
    return
  }
}

</mosaic_0001>

<llo_original>
// kernel: tpu_custom_call.1
$region0: #{tpu_custom_call.1}
  #allocation0 [shape = 'u32[]', space=smem, size = 0x4, offset = 0x4, fixed_abs, tag = 'smem constant byte address 0x4 - core index']
  #allocation1 [shape = 'u32[72,128]{1,0:T(1,128)}', space=vmem, size = 0x9000, scoped, tag = 'internal scratch']
  #allocation2 [shape = 'f32[9,8,128]{2,1,0:T(8,128)}', space=vmem, size = 0x9000, scoped, tag = 'scratch operand']
  #allocation3 [shape = 'f32[9,8,128]{2,1,0:T(8,128)}', space=vmem, size = 0x9000, scoped, tag = 'scratch operand']
  #allocation4 [shape = 'f32[9,8,512]{2,1,0:T(8,128)}', space=vmem, size = 0x24000, scoped, tag = 'scratch operand']
  %s0 = inlined_call_operand.hbm [shape: f32[9,8,128], index: 0, kind: input, shape index: {}]
  %s1 = inlined_call_operand.hbm [shape: f32[128,512], index: 1, kind: input, shape index: {}]
  %s2 = inlined_call_operand.hbm [shape: f32[128,512], index: 2, kind: input, shape index: {}]
  %s3 = inlined_call_operand.hbm [shape: f32[1,512], index: 3, kind: input, shape index: {}]
  %s4 = inlined_call_operand.hbm [shape: f32[128,512], index: 4, kind: input, shape index: {}]
  %s5 = inlined_call_operand.hbm [shape: f32[128,512], index: 5, kind: input, shape index: {}]
  %s6 = inlined_call_operand.vmem [shape: f32[1,512], index: 6, kind: input, shape index: {}]
  %s7 = inlined_call_operand.hbm [shape: f32[128,128], index: 7, kind: input, shape index: {}]
  %s8 = inlined_call_operand.vmem [shape: f32[1,128], index: 8, kind: input, shape index: {}]
  %s9 = inlined_call_operand.hbm [shape: f32[9,8,128], index: 9, kind: output, shape index: {}]
  %s10 = sld [smem:[#allocation0]]
  $region74: #{tpu_custom_call.1} parent=0
    _
  %s12 = ssub.s32 1, %s10
  %s13 = scalar_select 0, %s12, %s10
  $region1: #{tpu_custom_call.1} parent=0
    #allocation5 [shape = 'u8[36864]{0}', space=vmem, size = 0x9000, scoped, tag = 'input window, operand 0, single buffered']
    #allocation6 [shape = 's32[1]{0}', space=sflag, size = 0x4, scoped, tag = 'scoped memory for tpu_custom_call.1']
    #allocation7 [shape = 's32[1]{0}', space=sflag, size = 0x4, scoped, tag = 'scoped memory for tpu_custom_call.1']
    #allocation8 [shape = 'u8[262144]{0}', space=vmem, size = 0x40000, scoped, tag = 'input window, operand 1, single buffered']
    #allocation9 [shape = 's32[1]{0}', space=sflag, size = 0x4, scoped, tag = 'scoped memory for tpu_custom_call.1']
    #allocation10 [shape = 'u8[262144]{0}', space=vmem, size = 0x40000, scoped, tag = 'input window, operand 2, single buffered']
    #allocation11 [shape = 'u8[2048]{0}', space=vmem, size = 0x800, scoped, tag = 'input window, operand 3, single buffered']
    #allocation12 [shape = 's32[1]{0}', space=sflag, size = 0x4, scoped, tag = 'scoped memory for tpu_custom_call.1']
    #allocation13 [shape = 'u8[262144]{0}', space=vmem, size = 0x40000, scoped, tag = 'input window, operand 4, single buffered']
    #allocation14 [shape = 'u8[262144]{0}', space=vmem, size = 0x40000, scoped, tag = 'input window, operand 5, single buffered']
    #allocation15 [shape = 's32[1]{0}', space=sflag, size = 0x4, scoped, tag = 'scoped memory for tpu_custom_call.1']
    #allocation16 [shape = 'u8[65536]{0}', space=vmem, size = 0x10000, scoped, tag = 'input window, operand 7, single buffered']
    #allocation17 [shape = 'u8[36864]{0}', space=vmem, size = 0x9000, scoped, tag = 'output window, operand 0, single buffered']
    %14 = vsyncpa [#allocation6], 0
    %15 = vsyncpa [#allocation9], 0
    %16 = vsyncpa [#allocation12], 0
    %17 = vsyncpa [#allocation15], 0
    %18 = vsyncpa [#allocation7], 0
    // Predicated region
    $region2: #{tpu_custom_call.1} parent=1 // pred_check
      _
    $region3: #{tpu_custom_call.1} parent=1 // pred_check_branch
      %20 = sbr.rel (0) target = $region5
    $region4: #{tpu_custom_call.1} parent=1 // pred_region
      %22 = vsyncadd [#allocation6], 0
      %s23 = sshll.u32 %s0, 4
      %s24 = int_to_ptr.hbm [resolvable:$true] %s23
      %s25 = sshll.u32 [#allocation5], 4
      %s26 = int_to_ptr.vmem [resolvable:$true] %s25
      %31 = dma.hbm_to_vmem [thread:$0]  %s24, 1152, %s26, [#allocation6], 128, 128, 8
    $region5: #{tpu_custom_call.1} parent=1 // pred_fallthru
      _
    // Predicated region
    $region6: #{tpu_custom_call.1} parent=1 // pred_check
      _
    $region7: #{tpu_custom_call.1} parent=1 // pred_check_branch
      %33 = sbr.rel (0) target = $region9
    $region8: #{tpu_custom_call.1} parent=1 // pred_region
      %35 = vsyncadd [#allocation9], 0
      %s36 = sshll.u32 %s1, 4
      %s37 = int_to_ptr.hbm [resolvable:$true] %s36
      %s38 = sshll.u32 [#allocation8], 4
      %s39 = int_to_ptr.vmem [resolvable:$true] %s38
      %44 = dma.hbm_to_vmem [thread:$0]  %s37, 8192, %s39, [#allocation9], 512, 512, 32
    $region9: #{tpu_custom_call.1} parent=1 // pred_fallthru
      _
    // Predicated region
    $region10: #{tpu_custom_call.1} parent=1 // pred_check
      _
    $region11: #{tpu_custom_call.1} parent=1 // pred_check_branch
      %46 = sbr.rel (0) target = $region13
    $region12: #{tpu_custom_call.1} parent=1 // pred_region
      %48 = vsyncadd [#allocation9], 0
      %s49 = sshll.u32 %s2, 4
      %s50 = int_to_ptr.hbm [resolvable:$true] %s49
      %s51 = sshll.u32 [#allocation10], 4
      %s52 = int_to_ptr.vmem [resolvable:$true] %s51
      %57 = dma.hbm_to_vmem [thread:$0]  %s50, 8192, %s52, [#allocation9], 512, 512, 32
    $region13: #{tpu_custom_call.1} parent=1 // pred_fallthru
      _
    // Predicated region
    $region14: #{tpu_custom_call.1} parent=1 // pred_check
      _
    $region15: #{tpu_custom_call.1} parent=1 // pred_check_branch
      %59 = sbr.rel (0) target = $region17
    $region16: #{tpu_custom_call.1} parent=1 // pred_region
      %61 = vsyncadd [#allocation12], 0
      %s63 = sshll.u32 %s3, 4
      %s64 = int_to_ptr.hbm [resolvable:$true] %s63
      %s65 = sshll.u32 [#allocation11], 4
      %s66 = int_to_ptr.vmem [resolvable:$true] %s65
      %68 = dma.hbm_to_vmem [thread:$0]  %s64, 64, %s66, [#allocation12]
    $region17: #{tpu_custom_call.1} parent=1 // pred_fallthru
      _
    // Predicated region
    $region18: #{tpu_custom_call.1} parent=1 // pred_check
      _
    $region19: #{tpu_custom_call.1} parent=1 // pred_check_branch
      %70 = sbr.rel (0) target = $region21
    $region20: #{tpu_custom_call.1} parent=1 // pred_region
      %72 = vsyncadd [#allocation12], 0
      %s73 = sshll.u32 %s4, 4
      %s74 = int_to_ptr.hbm [resolvable:$true] %s73
      %s75 = sshll.u32 [#allocation13], 4
      %s76 = int_to_ptr.vmem [resolvable:$true] %s75
      %81 = dma.hbm_to_vmem [thread:$0]  %s74, 8192, %s76, [#allocation12], 512, 512, 32
    $region21: #{tpu_custom_call.1} parent=1 // pred_fallthru
      _
    // Predicated region
    $region22: #{tpu_custom_call.1} parent=1 // pred_check
      _
    $region23: #{tpu_custom_call.1} parent=1 // pred_check_branch
      %83 = sbr.rel (0) target = $region25
    $region24: #{tpu_custom_call.1} parent=1 // pred_region
      %85 = vsyncadd [#allocation15], 0
      %s86 = sshll.u32 %s5, 4
      %s87 = int_to_ptr.hbm [resolvable:$true] %s86
      %s88 = sshll.u32 [#allocation14], 4
      %s89 = int_to_ptr.vmem [resolvable:$true] %s88
      %94 = dma.hbm_to_vmem [thread:$0]  %s87, 8192, %s89, [#allocation15], 512, 512, 32
    $region25: #{tpu_custom_call.1} parent=1 // pred_fallthru
      _
    // Predicated region
    $region26: #{tpu_custom_call.1} parent=1 // pred_check
      _
    $region27: #{tpu_custom_call.1} parent=1 // pred_check_branch
      %96 = sbr.rel (0) target = $region29
    $region28: #{tpu_custom_call.1} parent=1 // pred_region
      _
    $region29: #{tpu_custom_call.1} parent=1 // pred_fallthru
      _
    // Predicated region
    $region30: #{tpu_custom_call.1} parent=1 // pred_check
      _
    $region31: #{tpu_custom_call.1} parent=1 // pred_check_branch
      %98 = sbr.rel (0) target = $region33
    $region32: #{tpu_custom_call.1} parent=1 // pred_region
      %100 = vsyncadd [#allocation15], 0
      %s101 = sshll.u32 %s7, 4
      %s102 = int_to_ptr.hbm [resolvable:$true] %s101
      %s103 = sshll.u32 [#allocation16], 4
      %s104 = int_to_ptr.vmem [resolvable:$true] %s103
      %109 = dma.hbm_to_vmem [thread:$0]  %s102, 2048, %s104, [#allocation15], 128, 128, 8
    $region33: #{tpu_custom_call.1} parent=1 // pred_fallthru
      _
    // Predicated region
    $region34: #{tpu_custom_call.1} parent=1 // pred_check
      _
    $region35: #{tpu_custom_call.1} parent=1 // pred_check_branch
      %111 = sbr.rel (0) target = $region37
    $region36: #{tpu_custom_call.1} parent=1 // pred_region
      _
    $region37: #{tpu_custom_call.1} parent=1 // pred_fallthru
      _
    // Predicated region
    $region38: #{tpu_custom_call.1} parent=1 // pred_check
      _
    $region39: #{tpu_custom_call.1} parent=1 // pred_check_branch
      %113 = sbr.rel (0) target = $region41
    $region40: #{tpu_custom_call.1} parent=1 // pred_region
      %115 = dma.done [#allocation6], 1152
    $region41: #{tpu_custom_call.1} parent=1 // pred_fallthru
      _
    // Predicated region
    $region42: #{tpu_custom_call.1} parent=1 // pred_check
      _
    $region43: #{tpu_custom_call.1} parent=1 // pred_check_branch
      %117 = sbr.rel (0) target = $region45
    $region44: #{tpu_custom_call.1} parent=1 // pred_region
      %119 = dma.done [#allocation9], 8192
    $region45: #{tpu_custom_call.1} parent=1 // pred_fallthru
      _
    // Predicated region
    $region46: #{tpu_custom_call.1} parent=1 // pred_check
      _
    $region47: #{tpu_custom_call.1} parent=1 // pred_check_branch
      %121 = sbr.rel (0) target = $region49
    $region48: #{tpu_custom_call.1} parent=1 // pred_region
      %123 = dma.done [#allocation9], 8192
    $region49: #{tpu_custom_call.1} parent=1 // pred_fallthru
      _
    // Predicated region
    $region50: #{tpu_custom_call.1} parent=1 // pred_check
      _
    $region51: #{tpu_custom_call.1} parent=1 // pred_check_branch
      %125 = sbr.rel (0) target = $region53
    $region52: #{tpu_custom_call.1} parent=1 // pred_region
      %127 = dma.done [#allocation12], 64
    $region53: #{tpu_custom_call.1} parent=1 // pred_fallthru
      _
    // Predicated region
    $region54: #{tpu_custom_call.1} parent=1 // pred_check
      _
    $region55: #{tpu_custom_call.1} parent=1 // pred_check_branch
      %129 = sbr.rel (0) target = $region57
    $region56: #{tpu_custom_call.1} parent=1 // pred_region
      %131 = dma.done [#allocation12], 8192
    $region57: #{tpu_custom_call.1} parent=1 // pred_fallthru
      _
    // Predicated region
    $region58: #{tpu_custom_call.1} parent=1 // pred_check
      _
    $region59: #{tpu_custom_call.1} parent=1 // pred_check_branch
      %133 = sbr.rel (0) target = $region61
    $region60: #{tpu_custom_call.1} parent=1 // pred_region
      %135 = dma.done [#allocation15], 8192
    $region61: #{tpu_custom_call.1} parent=1 // pred_fallthru
      _
    // Predicated region
    $region62: #{tpu_custom_call.1} parent=1 // pred_check
      _
    $region63: #{tpu_custom_call.1} parent=1 // pred_check_branch
      %137 = sbr.rel (0) target = $region65
    $region64: #{tpu_custom_call.1} parent=1 // pred_region
      %139 = dma.done [#allocation15], 2048
    $region65: #{tpu_custom_call.1} parent=1 // pred_fallthru
      _
    %v140 = vld [vmem:[#allocation8] sm:$0xff]
    %v141 = vld [vmem:[#allocation8 + $0x8] sm:$0xff]
    %v142 = vld [vmem:[#allocation8 + $0x10] sm:$0xff]
    %v143 = vld [vmem:[#allocation8 + $0x18] sm:$0xff]
    %v144 = vld [vmem:[#allocation8 + $0x20] sm:$0xff]
    %v145 = vld [vmem:[#allocation8 + $0x28] sm:$0xff]
    %v146 = vld [vmem:[#allocation8 + $0x30] sm:$0xff]
    %v147 = vld [vmem:[#allocation8 + $0x38] sm:$0xff]
    %v148 = vld [vmem:[#allocation8 + $0x40] sm:$0xff]
    %v149 = vld [vmem:[#allocation8 + $0x48] sm:$0xff]
    %v150 = vld [vmem:[#allocation8 + $0x50] sm:$0xff]
    %v151 = vld [vmem:[#allocation8 + $0x58] sm:$0xff]
    %v152 = vld [vmem:[#allocation8 + $0x60] sm:$0xff]
    %v153 = vld [vmem:[#allocation8 + $0x68] sm:$0xff]
    %v154 = vld [vmem:[#allocation8 + $0x70] sm:$0xff]
    %v155 = vld [vmem:[#allocation8 + $0x78] sm:$0xff]
    %v156 = vld [vmem:[#allocation8 + $0x80] sm:$0xff]
    %v157 = vld [vmem:[#allocation8 + $0x88] sm:$0xff]
    %v158 = vld [vmem:[#allocation8 + $0x90] sm:$0xff]
    %v159 = vld [vmem:[#allocation8 + $0x98] sm:$0xff]
    %v160 = vld [vmem:[#allocation8 + $0xa0] sm:$0xff]
    %v161 = vld [vmem:[#allocation8 + $0xa8] sm:$0xff]
    %v162 = vld [vmem:[#allocation8 + $0xb0] sm:$0xff]
    %v163 = vld [vmem:[#allocation8 + $0xb8] sm:$0xff]
    %v164 = vld [vmem:[#allocation8 + $0xc0] sm:$0xff]
    %v165 = vld [vmem:[#allocation8 + $0xc8] sm:$0xff]
    %v166 = vld [vmem:[#allocation8 + $0xd0] sm:$0xff]
    %v167 = vld [vmem:[#allocation8 + $0xd8] sm:$0xff]
    %v168 = vld [vmem:[#allocation8 + $0xe0] sm:$0xff]
    %v169 = vld [vmem:[#allocation8 + $0xe8] sm:$0xff]
    %v170 = vld [vmem:[#allocation8 + $0xf0] sm:$0xff]
    %v171 = vld [vmem:[#allocation8 + $0xf8] sm:$0xff]
    %v172 = vld [vmem:[#allocation8 + $0x100] sm:$0xff]
    %v173 = vld [vmem:[#allocation8 + $0x108] sm:$0xff]
    %v174 = vld [vmem:[#allocation8 + $0x110] sm:$0xff]
    %v175 = vld [vmem:[#allocation8 + $0x118] sm:$0xff]
    %v176 = vld [vmem:[#allocation8 + $0x120] sm:$0xff]
    %v177 = vld [vmem:[#allocation8 + $0x128] sm:$0xff]
    %v178 = vld [vmem:[#allocation8 + $0x130] sm:$0xff]
    %v179 = vld [vmem:[#allocation8 + $0x138] sm:$0xff]
    %v180 = vld [vmem:[#allocation8 + $0x140] sm:$0xff]
    %v181 = vld [vmem:[#allocation8 + $0x148] sm:$0xff]
    %v182 = vld [vmem:[#allocation8 + $0x150] sm:$0xff]
    %v183 = vld [vmem:[#allocation8 + $0x158] sm:$0xff]
    %v184 = vld [vmem:[#allocation8 + $0x160] sm:$0xff]
    %v185 = vld [vmem:[#allocation8 + $0x168] sm:$0xff]
    %v186 = vld [vmem:[#allocation8 + $0x170] sm:$0xff]
    %v187 = vld [vmem:[#allocation8 + $0x178] sm:$0xff]
    %v188 = vld [vmem:[#allocation8 + $0x180] sm:$0xff]
    %v189 = vld [vmem:[#allocation8 + $0x188] sm:$0xff]
    %v190 = vld [vmem:[#allocation8 + $0x190] sm:$0xff]
    %v191 = vld [vmem:[#allocation8 + $0x198] sm:$0xff]
    %v192 = vld [vmem:[#allocation8 + $0x1a0] sm:$0xff]
    %v193 = vld [vmem:[#allocation8 + $0x1a8] sm:$0xff]
    %v194 = vld [vmem:[#allocation8 + $0x1b0] sm:$0xff]
    %v195 = vld [vmem:[#allocation8 + $0x1b8] sm:$0xff]
    %v196 = vld [vmem:[#allocation8 + $0x1c0] sm:$0xff]
    %v197 = vld [vmem:[#allocation8 + $0x1c8] sm:$0xff]
    %v198 = vld [vmem:[#allocation8 + $0x1d0] sm:$0xff]
    %v199 = vld [vmem:[#allocation8 + $0x1d8] sm:$0xff]
    %v200 = vld [vmem:[#allocation8 + $0x1e0] sm:$0xff]
    %v201 = vld [vmem:[#allocation8 + $0x1e8] sm:$0xff]
    %v202 = vld [vmem:[#allocation8 + $0x1f0] sm:$0xff]
    %v203 = vld [vmem:[#allocation8 + $0x1f8] sm:$0xff]
    %v204 = vld [vmem:[#allocation10] sm:$0xff]
    %v205 = vld [vmem:[#allocation10 + $0x8] sm:$0xff]
    %v206 = vld [vmem:[#allocation10 + $0x10] sm:$0xff]
    %v207 = vld [vmem:[#allocation10 + $0x18] sm:$0xff]
    %v208 = vld [vmem:[#allocation10 + $0x20] sm:$0xff]
    %v209 = vld [vmem:[#allocation10 + $0x28] sm:$0xff]
    %v210 = vld [vmem:[#allocation10 + $0x30] sm:$0xff]
    %v211 = vld [vmem:[#allocation10 + $0x38] sm:$0xff]
    %v212 = vld [vmem:[#allocation10 + $0x40] sm:$0xff]
    %v213 = vld [vmem:[#allocation10 + $0x48] sm:$0xff]
    %v214 = vld [vmem:[#allocation10 + $0x50] sm:$0xff]
    %v215 = vld [vmem:[#allocation10 + $0x58] sm:$0xff]
    %v216 = vld [vmem:[#allocation10 + $0x60] sm:$0xff]
    %v217 = vld [vmem:[#allocation10 + $0x68] sm:$0xff]
    %v218 = vld [vmem:[#allocation10 + $0x70] sm:$0xff]
    %v219 = vld [vmem:[#allocation10 + $0x78] sm:$0xff]
    %v220 = vld [vmem:[#allocation10 + $0x80] sm:$0xff]
    %v221 = vld [vmem:[#allocation10 + $0x88] sm:$0xff]
    %v222 = vld [vmem:[#allocation10 + $0x90] sm:$0xff]
    %v223 = vld [vmem:[#allocation10 + $0x98] sm:$0xff]
    %v224 = vld [vmem:[#allocation10 + $0xa0] sm:$0xff]
    %v225 = vld [vmem:[#allocation10 + $0xa8] sm:$0xff]
    %v226 = vld [vmem:[#allocation10 + $0xb0] sm:$0xff]
    %v227 = vld [vmem:[#allocation10 + $0xb8] sm:$0xff]
    %v228 = vld [vmem:[#allocation10 + $0xc0] sm:$0xff]
    %v229 = vld [vmem:[#allocation10 + $0xc8] sm:$0xff]
    %v230 = vld [vmem:[#allocation10 + $0xd0] sm:$0xff]
    %v231 = vld [vmem:[#allocation10 + $0xd8] sm:$0xff]
    %v232 = vld [vmem:[#allocation10 + $0xe0] sm:$0xff]
    %v233 = vld [vmem:[#allocation10 + $0xe8] sm:$0xff]
    %v234 = vld [vmem:[#allocation10 + $0xf0] sm:$0xff]
    %v235 = vld [vmem:[#allocation10 + $0xf8] sm:$0xff]
    %v236 = vld [vmem:[#allocation10 + $0x100] sm:$0xff]
    %v237 = vld [vmem:[#allocation10 + $0x108] sm:$0xff]
    %v238 = vld [vmem:[#allocation10 + $0x110] sm:$0xff]
    %v239 = vld [vmem:[#allocation10 + $0x118] sm:$0xff]
    %v240 = vld [vmem:[#allocation10 + $0x120] sm:$0xff]
    %v241 = vld [vmem:[#allocation10 + $0x128] sm:$0xff]
    %v242 = vld [vmem:[#allocation10 + $0x130] sm:$0xff]
    %v243 = vld [vmem:[#allocation10 + $0x138] sm:$0xff]
    %v244 = vld [vmem:[#allocation10 + $0x140] sm:$0xff]
    %v245 = vld [vmem:[#allocation10 + $0x148] sm:$0xff]
    %v246 = vld [vmem:[#allocation10 + $0x150] sm:$0xff]
    %v247 = vld [vmem:[#allocation10 + $0x158] sm:$0xff]
    %v248 = vld [vmem:[#allocation10 + $0x160] sm:$0xff]
    %v249 = vld [vmem:[#allocation10 + $0x168] sm:$0xff]
    %v250 = vld [vmem:[#allocation10 + $0x170] sm:$0xff]
    %v251 = vld [vmem:[#allocation10 + $0x178] sm:$0xff]
    %v252 = vld [vmem:[#allocation10 + $0x180] sm:$0xff]
    %v253 = vld [vmem:[#allocation10 + $0x188] sm:$0xff]
    %v254 = vld [vmem:[#allocation10 + $0x190] sm:$0xff]
    %v255 = vld [vmem:[#allocation10 + $0x198] sm:$0xff]
    %v256 = vld [vmem:[#allocation10 + $0x1a0] sm:$0xff]
    %v257 = vld [vmem:[#allocation10 + $0x1a8] sm:$0xff]
    %v258 = vld [vmem:[#allocation10 + $0x1b0] sm:$0xff]
    %v259 = vld [vmem:[#allocation10 + $0x1b8] sm:$0xff]
    %v260 = vld [vmem:[#allocation10 + $0x1c0] sm:$0xff]
    %v261 = vld [vmem:[#allocation10 + $0x1c8] sm:$0xff]
    %v262 = vld [vmem:[#allocation10 + $0x1d0] sm:$0xff]
    %v263 = vld [vmem:[#allocation10 + $0x1d8] sm:$0xff]
    %v264 = vld [vmem:[#allocation10 + $0x1e0] sm:$0xff]
    %v265 = vld [vmem:[#allocation10 + $0x1e8] sm:$0xff]
    %v266 = vld [vmem:[#allocation10 + $0x1f0] sm:$0xff]
    %v267 = vld [vmem:[#allocation10 + $0x1f8] sm:$0xff]
    %v268 = vld [vmem:[#allocation11] sm:$0xf]
    %v269 = vld [vmem:[#allocation5] sm:$0xff]
    %v270 = vld [vmem:[#allocation5 + $0x8] sm:$0xff]
    %v271 = vld [vmem:[#allocation5 + $0x10] sm:$0xff]
    %v272 = vld [vmem:[#allocation5 + $0x18] sm:$0xff]
    %v273 = vld [vmem:[#allocation5 + $0x20] sm:$0xff]
    %v274 = vld [vmem:[#allocation5 + $0x28] sm:$0xff]
    %v275 = vld [vmem:[#allocation5 + $0x30] sm:$0xff]
    %v276 = vld [vmem:[#allocation5 + $0x38] sm:$0xff]
    %v277 = vld [vmem:[#allocation5 + $0x40] sm:$0xff]
    %v279 = vperm.slane %v268, 0
    %v280 = vperm.slane %v268, 1
    %v281 = vperm.slane %v268, 2
    %v282 = vperm.slane %v268, 3
    %287 = vmatpush.msra.mxu0 %v200
    %288 = vmatpush.msra.mxu0 %v196
    %289 = vmatpush.msra.mxu0 %v192
    %290 = vmatpush.msra.mxu0 %v188
    %291 = vmatpush.msra.mxu0 %v184
    %292 = vmatpush.msra.mxu0 %v180
    %293 = vmatpush.msra.mxu0 %v176
    %294 = vmatpush.msra.mxu0 %v172
    %295 = vmatpush.msra.mxu0 %v168
    %296 = vmatpush.msra.mxu0 %v164
    %297 = vmatpush.msra.mxu0 %v160
    %298 = vmatpush.msra.mxu0 %v156
    %299 = vmatpush.msra.mxu0 %v152
    %300 = vmatpush.msra.mxu0 %v148
    %301 = vmatpush.msra.mxu0 %v144
    %302 = vmatpush.msra.mxu0 %v140
    %303 = vmatmul.f32.gmra.mxu0 %v269
    %v304 = vpop.f32.mrf.mxu0
    %v305 = vadd.f32 %v279, %v304
    %306 = vmatmul.f32.gmra.mxu0 %v270
    %v307 = vpop.f32.mrf.mxu0
    %v308 = vadd.f32 %v279, %v307
    %309 = vmatmul.f32.gmra.mxu0 %v271
    %v310 = vpop.f32.mrf.mxu0
    %v311 = vadd.f32 %v279, %v310
    %312 = vmatmul.f32.gmra.mxu0 %v272
    %v313 = vpop.f32.mrf.mxu0
    %v314 = vadd.f32 %v279, %v313
    %315 = vmatmul.f32.gmra.mxu0 %v273
    %v316 = vpop.f32.mrf.mxu0
    %v317 = vadd.f32 %v279, %v316
    %318 = vmatmul.f32.gmra.mxu0 %v274
    %v319 = vpop.f32.mrf.mxu0
    %v320 = vadd.f32 %v279, %v319
    %321 = vmatmul.f32.gmra.mxu0 %v275
    %v322 = vpop.f32.mrf.mxu0
    %v323 = vadd.f32 %v279, %v322
    %324 = vmatmul.f32.gmra.mxu0 %v276
    %v325 = vpop.f32.mrf.mxu0
    %v326 = vadd.f32 %v279, %v325
    %327 = vmatmul.f32.gmra.mxu0 %v277
    %v328 = vpop.f32.mrf.mxu0
    %v329 = vadd.f32 %v279, %v328
    %330 = vdwg.mxu0
    %331 = vmatpush.msra.mxu0 %v201
    %332 = vmatpush.msra.mxu0 %v197
    %333 = vmatpush.msra.mxu0 %v193
    %334 = vmatpush.msra.mxu0 %v189
    %335 = vmatpush.msra.mxu0 %v185
    %336 = vmatpush.msra.mxu0 %v181
    %337 = vmatpush.msra.mxu0 %v177
    %338 = vmatpush.msra.mxu0 %v173
    %339 = vmatpush.msra.mxu0 %v169
    %340 = vmatpush.msra.mxu0 %v165
    %341 = vmatpush.msra.mxu0 %v161
    %342 = vmatpush.msra.mxu0 %v157
    %343 = vmatpush.msra.mxu0 %v153
    %344 = vmatpush.msra.mxu0 %v149
    %345 = vmatpush.msra.mxu0 %v145
    %346 = vmatpush.msra.mxu0 %v141
    %347 = vmatmul.f32.gmra.mxu0 %v269
    %v348 = vpop.f32.mrf.mxu0
    %v349 = vadd.f32 %v280, %v348
    %350 = vmatmul.f32.gmra.mxu0 %v270
    %v351 = vpop.f32.mrf.mxu0
    %v352 = vadd.f32 %v280, %v351
    %353 = vmatmul.f32.gmra.mxu0 %v271
    %v354 = vpop.f32.mrf.mxu0
    %v355 = vadd.f32 %v280, %v354
    %356 = vmatmul.f32.gmra.mxu0 %v272
    %v357 = vpop.f32.mrf.mxu0
    %v358 = vadd.f32 %v280, %v357
    %359 = vmatmul.f32.gmra.mxu0 %v273
    %v360 = vpop.f32.mrf.mxu0
    %v361 = vadd.f32 %v280, %v360
    %362 = vmatmul.f32.gmra.mxu0 %v274
    %v363 = vpop.f32.mrf.mxu0
    %v364 = vadd.f32 %v280, %v363
    %365 = vmatmul.f32.gmra.mxu0 %v275
    %v366 = vpop.f32.mrf.mxu0
    %v367 = vadd.f32 %v280, %v366
    %368 = vmatmul.f32.gmra.mxu0 %v276
    %v369 = vpop.f32.mrf.mxu0
    %v370 = vadd.f32 %v280, %v369
    %371 = vmatmul.f32.gmra.mxu0 %v277
    %v372 = vpop.f32.mrf.mxu0
    %v373 = vadd.f32 %v280, %v372
    %374 = vdwg.mxu0
    %375 = vmatpush.msra.mxu0 %v202
    %376 = vmatpush.msra.mxu0 %v198
    %377 = vmatpush.msra.mxu0 %v194
    %378 = vmatpush.msra.mxu0 %v190
    %379 = vmatpush.msra.mxu0 %v186
    %380 = vmatpush.msra.mxu0 %v182
    %381 = vmatpush.msra.mxu0 %v178
    %382 = vmatpush.msra.mxu0 %v174
    %383 = vmatpush.msra.mxu0 %v170
    %384 = vmatpush.msra.mxu0 %v166
    %385 = vmatpush.msra.mxu0 %v162
    %386 = vmatpush.msra.mxu0 %v158
    %387 = vmatpush.msra.mxu0 %v154
    %388 = vmatpush.msra.mxu0 %v150
    %389 = vmatpush.msra.mxu0 %v146
    %390 = vmatpush.msra.mxu0 %v142
    %391 = vmatmul.f32.gmra.mxu0 %v269
    %v392 = vpop.f32.mrf.mxu0
    %v393 = vadd.f32 %v281, %v392
    %394 = vmatmul.f32.gmra.mxu0 %v270
    %v395 = vpop.f32.mrf.mxu0
    %v396 = vadd.f32 %v281, %v395
    %397 = vmatmul.f32.gmra.mxu0 %v271
    %v398 = vpop.f32.mrf.mxu0
    %v399 = vadd.f32 %v281, %v398
    %400 = vmatmul.f32.gmra.mxu0 %v272
    %v401 = vpop.f32.mrf.mxu0
    %v402 = vadd.f32 %v281, %v401
    %403 = vmatmul.f32.gmra.mxu0 %v273
    %v404 = vpop.f32.mrf.mxu0
    %v405 = vadd.f32 %v281, %v404
    %406 = vmatmul.f32.gmra.mxu0 %v274
    %v407 = vpop.f32.mrf.mxu0
    %v408 = vadd.f32 %v281, %v407
    %409 = vmatmul.f32.gmra.mxu0 %v275
    %v410 = vpop.f32.mrf.mxu0
    %v411 = vadd.f32 %v281, %v410
    %412 = vmatmul.f32.gmra.mxu0 %v276
    %v413 = vpop.f32.mrf.mxu0
    %v414 = vadd.f32 %v281, %v413
    %415 = vmatmul.f32.gmra.mxu0 %v277
    %v416 = vpop.f32.mrf.mxu0
    %v417 = vadd.f32 %v281, %v416
    %418 = vdwg.mxu0
    %419 = vmatpush.msra.mxu0 %v203
    %420 = vmatpush.msra.mxu0 %v199
    %421 = vmatpush.msra.mxu0 %v195
    %422 = vmatpush.msra.mxu0 %v191
    %423 = vmatpush.msra.mxu0 %v187
    %424 = vmatpush.msra.mxu0 %v183
    %425 = vmatpush.msra.mxu0 %v179
    %426 = vmatpush.msra.mxu0 %v175
    %427 = vmatpush.msra.mxu0 %v171
    %428 = vmatpush.msra.mxu0 %v167
    %429 = vmatpush.msra.mxu0 %v163
    %430 = vmatpush.msra.mxu0 %v159
    %431 = vmatpush.msra.mxu0 %v155
    %432 = vmatpush.msra.mxu0 %v151
    %433 = vmatpush.msra.mxu0 %v147
    %434 = vmatpush.msra.mxu0 %v143
    %435 = vmatmul.f32.gmra.mxu0 %v269
    %v436 = vpop.f32.mrf.mxu0
    %v437 = vadd.f32 %v282, %v436
    %438 = vmatmul.f32.gmra.mxu0 %v270
    %v439 = vpop.f32.mrf.mxu0
    %v440 = vadd.f32 %v282, %v439
    %441 = vmatmul.f32.gmra.mxu0 %v271
    %v442 = vpop.f32.mrf.mxu0
    %v443 = vadd.f32 %v282, %v442
    %444 = vmatmul.f32.gmra.mxu0 %v272
    %v445 = vpop.f32.mrf.mxu0
    %v446 = vadd.f32 %v282, %v445
    %447 = vmatmul.f32.gmra.mxu0 %v273
    %v448 = vpop.f32.mrf.mxu0
    %v449 = vadd.f32 %v282, %v448
    %450 = vmatmul.f32.gmra.mxu0 %v274
    %v451 = vpop.f32.mrf.mxu0
    %v452 = vadd.f32 %v282, %v451
    %453 = vmatmul.f32.gmra.mxu0 %v275
    %v454 = vpop.f32.mrf.mxu0
    %v455 = vadd.f32 %v282, %v454
    %456 = vmatmul.f32.gmra.mxu0 %v276
    %v457 = vpop.f32.mrf.mxu0
    %v458 = vadd.f32 %v282, %v457
    %459 = vmatmul.f32.gmra.mxu0 %v277
    %v460 = vpop.f32.mrf.mxu0
    %v461 = vadd.f32 %v282, %v460
    %462 = vdwg.mxu0
    %463 = vst [vmem:[#allocation4] sm:$0xff] %v305
    %464 = vst [vmem:[#allocation4 + $0x8] sm:$0xff] %v349
    %465 = vst [vmem:[#allocation4 + $0x10] sm:$0xff] %v393
    %466 = vst [vmem:[#allocation4 + $0x18] sm:$0xff] %v437
    %467 = vst [vmem:[#allocation4 + $0x20] sm:$0xff] %v308
    %468 = vst [vmem:[#allocation4 + $0x28] sm:$0xff] %v352
    %469 = vst [vmem:[#allocation4 + $0x30] sm:$0xff] %v396
    %470 = vst [vmem:[#allocation4 + $0x38] sm:$0xff] %v440
    %471 = vst [vmem:[#allocation4 + $0x40] sm:$0xff] %v311
    %472 = vst [vmem:[#allocation4 + $0x48] sm:$0xff] %v355
    %473 = vst [vmem:[#allocation4 + $0x50] sm:$0xff] %v399
    %474 = vst [vmem:[#allocation4 + $0x58] sm:$0xff] %v443
    %475 = vst [vmem:[#allocation4 + $0x60] sm:$0xff] %v314
    %476 = vst [vmem:[#allocation4 + $0x68] sm:$0xff] %v358
    %477 = vst [vmem:[#allocation4 + $0x70] sm:$0xff] %v402
    %478 = vst [vmem:[#allocation4 + $0x78] sm:$0xff] %v446
    %479 = vst [vmem:[#allocation4 + $0x80] sm:$0xff] %v317
    %480 = vst [vmem:[#allocation4 + $0x88] sm:$0xff] %v361
    %481 = vst [vmem:[#allocation4 + $0x90] sm:$0xff] %v405
    %482 = vst [vmem:[#allocation4 + $0x98] sm:$0xff] %v449
    %483 = vst [vmem:[#allocation4 + $0xa0] sm:$0xff] %v320
    %484 = vst [vmem:[#allocation4 + $0xa8] sm:$0xff] %v364
    %485 = vst [vmem:[#allocation4 + $0xb0] sm:$0xff] %v408
    %486 = vst [vmem:[#allocation4 + $0xb8] sm:$0xff] %v452
    %487 = vst [vmem:[#allocation4 + $0xc0] sm:$0xff] %v323
    %488 = vst [vmem:[#allocation4 + $0xc8] sm:$0xff] %v367
    %489 = vst [vmem:[#allocation4 + $0xd0] sm:$0xff] %v411
    %490 = vst [vmem:[#allocation4 + $0xd8] sm:$0xff] %v455
    %491 = vst [vmem:[#allocation4 + $0xe0] sm:$0xff] %v326
    %492 = vst [vmem:[#allocation4 + $0xe8] sm:$0xff] %v370
    %493 = vst [vmem:[#allocation4 + $0xf0] sm:$0xff] %v414
    %494 = vst [vmem:[#allocation4 + $0xf8] sm:$0xff] %v458
    %495 = vst [vmem:[#allocation4 + $0x100] sm:$0xff] %v329
    %496 = vst [vmem:[#allocation4 + $0x108] sm:$0xff] %v373
    %497 = vst [vmem:[#allocation4 + $0x110] sm:$0xff] %v417
    %498 = vst [vmem:[#allocation4 + $0x118] sm:$0xff] %v461
    %v499 = vld [vmem:[#allocation4] sm:$0xff]
    %v500 = vld [vmem:[#allocation4 + $0x8] sm:$0xff]
    %v501 = vld [vmem:[#allocation4 + $0x10] sm:$0xff]
    %v502 = vld [vmem:[#allocation4 + $0x18] sm:$0xff]
    %503 = vmatpush.msra.mxu0 %v264
    %504 = vmatpush.msra.mxu0 %v260
    %505 = vmatpush.msra.mxu0 %v256
    %506 = vmatpush.msra.mxu0 %v252
    %507 = vmatpush.msra.mxu0 %v248
    %508 = vmatpush.msra.mxu0 %v244
    %509 = vmatpush.msra.mxu0 %v240
    %510 = vmatpush.msra.mxu0 %v236
    %511 = vmatpush.msra.mxu0 %v232
    %512 = vmatpush.msra.mxu0 %v228
    %513 = vmatpush.msra.mxu0 %v224
    %514 = vmatpush.msra.mxu0 %v220
    %515 = vmatpush.msra.mxu0 %v216
    %516 = vmatpush.msra.mxu0 %v212
    %517 = vmatpush.msra.mxu0 %v208
    %518 = vmatpush.msra.mxu0 %v204
    %519 = vmatmul.f32.gmra.mxu0 0.0
    %v520 = vpop.f32.mrf.mxu0
    %v521 = vadd.f32 0.0, %v520
    %522 = vdwg.mxu0
    %523 = vmatpush.msra.mxu0 %v265
    %524 = vmatpush.msra.mxu0 %v261
    %525 = vmatpush.msra.mxu0 %v257
    %526 = vmatpush.msra.mxu0 %v253
    %527 = vmatpush.msra.mxu0 %v249
    %528 = vmatpush.msra.mxu0 %v245
    %529 = vmatpush.msra.mxu0 %v241
    %530 = vmatpush.msra.mxu0 %v237
    %531 = vmatpush.msra.mxu0 %v233
    %532 = vmatpush.msra.mxu0 %v229
    %533 = vmatpush.msra.mxu0 %v225
    %534 = vmatpush.msra.mxu0 %v221
    %535 = vmatpush.msra.mxu0 %v217
    %536 = vmatpush.msra.mxu0 %v213
    %537 = vmatpush.msra.mxu0 %v209
    %538 = vmatpush.msra.mxu0 %v205
    %539 = vmatmul.f32.gmra.mxu0 0.0
    %v540 = vpop.f32.mrf.mxu0
    %v541 = vadd.f32 0.0, %v540
    %542 = vdwg.mxu0
    %543 = vmatpush.msra.mxu0 %v266
    %544 = vmatpush.msra.mxu0 %v262
    %545 = vmatpush.msra.mxu0 %v258
    %546 = vmatpush.msra.mxu0 %v254
    %547 = vmatpush.msra.mxu0 %v250
    %548 = vmatpush.msra.mxu0 %v246
    %549 = vmatpush.msra.mxu0 %v242
    %550 = vmatpush.msra.mxu0 %v238
    %551 = vmatpush.msra.mxu0 %v234
    %552 = vmatpush.msra.mxu0 %v230
    %553 = vmatpush.msra.mxu0 %v226
    %554 = vmatpush.msra.mxu0 %v222
    %555 = vmatpush.msra.mxu0 %v218
    %556 = vmatpush.msra.mxu0 %v214
    %557 = vmatpush.msra.mxu0 %v210
    %558 = vmatpush.msra.mxu0 %v206
    %559 = vmatmul.f32.gmra.mxu0 0.0
    %v560 = vpop.f32.mrf.mxu0
    %v561 = vadd.f32 0.0, %v560
    %562 = vdwg.mxu0
    %563 = vmatpush.msra.mxu0 %v267
    %564 = vmatpush.msra.mxu0 %v263
    %565 = vmatpush.msra.mxu0 %v259
    %566 = vmatpush.msra.mxu0 %v255
    %567 = vmatpush.msra.mxu0 %v251
    %568 = vmatpush.msra.mxu0 %v247
    %569 = vmatpush.msra.mxu0 %v243
    %570 = vmatpush.msra.mxu0 %v239
    %571 = vmatpush.msra.mxu0 %v235
    %572 = vmatpush.msra.mxu0 %v231
    %573 = vmatpush.msra.mxu0 %v227
    %574 = vmatpush.msra.mxu0 %v223
    %575 = vmatpush.msra.mxu0 %v219
    %576 = vmatpush.msra.mxu0 %v215
    %577 = vmatpush.msra.mxu0 %v211
    %578 = vmatpush.msra.mxu0 %v207
    %579 = vmatmul.f32.gmra.mxu0 0.0
    %v580 = vpop.f32.mrf.mxu0
    %v581 = vadd.f32 0.0, %v580
    %582 = vdwg.mxu0
    %v583 = vadd.f32 %v499, %v521
    %v584 = vadd.f32 %v500, %v541
    %v585 = vadd.f32 %v501, %v561
    %v586 = vadd.f32 %v502, %v581
    %v587 = vxor.u32 %v583, 2147483648
    %v588 = vmul.f32 %v587, 1.442695
    %v589 = vpow.pop %v588
    %v590 = vadd.f32 %v589, 1.0
    %v591 = vrcp.pop %v590
    %v592 = vmul.f32 %v590, %v591
    %v593 = vsub.f32 1.0, %v592
    %v594 = vmul.f32 %v591, %v593
    %v595 = vadd.f32 %v591, %v594
    %vm596 = vweird.f32 %v590
    %vm597 = vweird.f32 %v591
    %vm598 = vmor %vm596, %vm597
    %v599 = vsel %vm598, %v591, %v595
    %v600 = vand.u32 2147483647, %v590
    %vm601 = vcmp.eq.f32.partialorder %v600, 8.507059e+37
    %v602 = vand.u32 %v590, 2147483648
    %v603 = vor.u32 1.1754944e-38, %v602
    %v604 = vsel %vm601, %v603, %v599
    %v605 = vmul.f32 1.0, %v604
    %v606 = vxor.u32 %v584, 2147483648
    %v607 = vmul.f32 %v606, 1.442695
    %v608 = vpow.pop %v607
    %v609 = vadd.f32 %v608, 1.0
    %v610 = vrcp.pop %v609
    %v611 = vmul.f32 %v609, %v610
    %v612 = vsub.f32 1.0, %v611
    %v613 = vmul.f32 %v610, %v612
    %v614 = vadd.f32 %v610, %v613
    %vm615 = vweird.f32 %v609
    %vm616 = vweird.f32 %v610
    %vm617 = vmor %vm615, %vm616
    %v618 = vsel %vm617, %v610, %v614
    %v619 = vand.u32 2147483647, %v609
    %vm620 = vcmp.eq.f32.partialorder %v619, 8.507059e+37
    %v621 = vand.u32 %v609, 2147483648
    %v622 = vor.u32 1.1754944e-38, %v621
    %v623 = vsel %vm620, %v622, %v618
    %v624 = vmul.f32 1.0, %v623
    %v625 = vtanh.pop %v585
    %v626 = vxor.u32 %v586, 2147483648
    %v627 = vmul.f32 %v626, 1.442695
    %v628 = vpow.pop %v627
    %v629 = vadd.f32 %v628, 1.0
    %v630 = vrcp.pop %v629
    %v631 = vmul.f32 %v629, %v630
    %v632 = vsub.f32 1.0, %v631
    %v633 = vmul.f32 %v630, %v632
    %v634 = vadd.f32 %v630, %v633
    %vm635 = vweird.f32 %v629
    %vm636 = vweird.f32 %v630
    %vm637 = vmor %vm635, %vm636
    %v638 = vsel %vm637, %v630, %v634
    %v639 = vand.u32 2147483647, %v629
    %vm640 = vcmp.eq.f32.partialorder %v639, 8.507059e+37
    %v641 = vand.u32 %v629, 2147483648
    %v642 = vor.u32 1.1754944e-38, %v641
    %v643 = vsel %vm640, %v642, %v638
    %v644 = vmul.f32 1.0, %v643
    %v645 = vmul.f32 %v624, 0.0
    %v646 = vmul.f32 %v605, %v625
    %v647 = vadd.f32 %v645, %v646
    %v648 = vtanh.pop %v647
    %v649 = vmul.f32 %v644, %v648
    %650 = vst [vmem:[#allocation2] sm:$0xff] %v649
    %s651 = scalar_lea.vmem [#allocation4], 32
    %v652 = vld [vmem:[%s651] sm:$0xff]
    %v653 = vld [vmem:[%s651 + $0x8] sm:$0xff]
    %v654 = vld [vmem:[%s651 + $0x10] sm:$0xff]
    %v655 = vld [vmem:[%s651 + $0x18] sm:$0xff]
    %656 = vmatpush.msra.mxu0 %v264
    %657 = vmatpush.msra.mxu0 %v260
    %658 = vmatpush.msra.mxu0 %v256
    %659 = vmatpush.msra.mxu0 %v252
    %660 = vmatpush.msra.mxu0 %v248
    %661 = vmatpush.msra.mxu0 %v244
    %662 = vmatpush.msra.mxu0 %v240
    %663 = vmatpush.msra.mxu0 %v236
    %664 = vmatpush.msra.mxu0 %v232
    %665 = vmatpush.msra.mxu0 %v228
    %666 = vmatpush.msra.mxu0 %v224
    %667 = vmatpush.msra.mxu0 %v220
    %668 = vmatpush.msra.mxu0 %v216
    %669 = vmatpush.msra.mxu0 %v212
    %670 = vmatpush.msra.mxu0 %v208
    %671 = vmatpush.msra.mxu0 %v204
    %672 = vmatmul.f32.gmra.mxu0 %v649
    %v673 = vpop.f32.mrf.mxu0
    %v674 = vadd.f32 0.0, %v673
    %675 = vdwg.mxu0
    %676 = vmatpush.msra.mxu0 %v265
    %677 = vmatpush.msra.mxu0 %v261
    %678 = vmatpush.msra.mxu0 %v257
    %679 = vmatpush.msra.mxu0 %v253
    %680 = vmatpush.msra.mxu0 %v249
    %681 = vmatpush.msra.mxu0 %v245
    %682 = vmatpush.msra.mxu0 %v241
    %683 = vmatpush.msra.mxu0 %v237
    %684 = vmatpush.msra.mxu0 %v233
    %685 = vmatpush.msra.mxu0 %v229
    %686 = vmatpush.msra.mxu0 %v225
    %687 = vmatpush.msra.mxu0 %v221
    %688 = vmatpush.msra.mxu0 %v217
    %689 = vmatpush.msra.mxu0 %v213
    %690 = vmatpush.msra.mxu0 %v209
    %691 = vmatpush.msra.mxu0 %v205
    %692 = vmatmul.f32.gmra.mxu0 %v649
    %v693 = vpop.f32.mrf.mxu0
    %v694 = vadd.f32 0.0, %v693
    %695 = vdwg.mxu0
    %696 = vmatpush.msra.mxu0 %v266
    %697 = vmatpush.msra.mxu0 %v262
    %698 = vmatpush.msra.mxu0 %v258
    %699 = vmatpush.msra.mxu0 %v254
    %700 = vmatpush.msra.mxu0 %v250
    %701 = vmatpush.msra.mxu0 %v246
    %702 = vmatpush.msra.mxu0 %v242
    %703 = vmatpush.msra.mxu0 %v238
    %704 = vmatpush.msra.mxu0 %v234
    %705 = vmatpush.msra.mxu0 %v230
    %706 = vmatpush.msra.mxu0 %v226
    %707 = vmatpush.msra.mxu0 %v222
    %708 = vmatpush.msra.mxu0 %v218
    %709 = vmatpush.msra.mxu0 %v214
    %710 = vmatpush.msra.mxu0 %v210
    %711 = vmatpush.msra.mxu0 %v206
    %712 = vmatmul.f32.gmra.mxu0 %v649
    %v713 = vpop.f32.mrf.mxu0
    %v714 = vadd.f32 0.0, %v713
    %715 = vdwg.mxu0
    %716 = vmatpush.msra.mxu0 %v267
    %717 = vmatpush.msra.mxu0 %v263
    %718 = vmatpush.msra.mxu0 %v259
    %719 = vmatpush.msra.mxu0 %v255
    %720 = vmatpush.msra.mxu0 %v251
    %721 = vmatpush.msra.mxu0 %v247
    %722 = vmatpush.msra.mxu0 %v243
    %723 = vmatpush.msra.mxu0 %v239
    %724 = vmatpush.msra.mxu0 %v235
    %725 = vmatpush.msra.mxu0 %v231
    %726 = vmatpush.msra.mxu0 %v227
    %727 = vmatpush.msra.mxu0 %v223
    %728 = vmatpush.msra.mxu0 %v219
    %729 = vmatpush.msra.mxu0 %v215
    %730 = vmatpush.msra.mxu0 %v211
    %731 = vmatpush.msra.mxu0 %v207
    %732 = vmatmul.f32.gmra.mxu0 %v649
    %v733 = vpop.f32.mrf.mxu0
    %v734 = vadd.f32 0.0, %v733
    %735 = vdwg.mxu0
    %v736 = vadd.f32 %v652, %v674
    %v737 = vadd.f32 %v653, %v694
    %v738 = vadd.f32 %v654, %v714
    %v739 = vadd.f32 %v655, %v734
    %v740 = vxor.u32 %v736, 2147483648
    %v741 = vmul.f32 %v740, 1.442695
    %v742 = vpow.pop %v741
    %v743 = vadd.f32 %v742, 1.0
    %v744 = vrcp.pop %v743
    %v745 = vmul.f32 %v743, %v744
    %v746 = vsub.f32 1.0, %v745
    %v747 = vmul.f32 %v744, %v746
    %v748 = vadd.f32 %v744, %v747
    %vm749 = vweird.f32 %v743
    %vm750 = vweird.f32 %v744
    %vm751 = vmor %vm749, %vm750
    %v752 = vsel %vm751, %v744, %v748
    %v753 = vand.u32 2147483647, %v743
    %vm754 = vcmp.eq.f32.partialorder %v753, 8.507059e+37
    %v755 = vand.u32 %v743, 2147483648
    %v756 = vor.u32 1.1754944e-38, %v755
    %v757 = vsel %vm754, %v756, %v752
    %v758 = vmul.f32 1.0, %v757
    %v759 = vxor.u32 %v737, 2147483648
    %v760 = vmul.f32 %v759, 1.442695
    %v761 = vpow.pop %v760
    %v762 = vadd.f32 %v761, 1.0
    %v763 = vrcp.pop %v762
    %v764 = vmul.f32 %v762, %v763
    %v765 = vsub.f32 1.0, %v764
    %v766 = vmul.f32 %v763, %v765
    %v767 = vadd.f32 %v763, %v766
    %vm768 = vweird.f32 %v762
    %vm769 = vweird.f32 %v763
    %vm770 = vmor %vm768, %vm769
    %v771 = vsel %vm770, %v763, %v767
    %v772 = vand.u32 2147483647, %v762
    %vm773 = vcmp.eq.f32.partialorder %v772, 8.507059e+37
    %v774 = vand.u32 %v762, 2147483648
    %v775 = vor.u32 1.1754944e-38, %v774
    %v776 = vsel %vm773, %v775, %v771
    %v777 = vmul.f32 1.0, %v776
    %v778 = vtanh.pop %v738
    %v779 = vxor.u32 %v739, 2147483648
    %v780 = vmul.f32 %v779, 1.442695
    %v781 = vpow.pop %v780
    %v782 = vadd.f32 %v781, 1.0
    %v783 = vrcp.pop %v782
    %v784 = vmul.f32 %v782, %v783
    %v785 = vsub.f32 1.0, %v784
    %v786 = vmul.f32 %v783, %v785
    %v787 = vadd.f32 %v783, %v786
    %vm788 = vweird.f32 %v782
    %vm789 = vweird.f32 %v783
    %vm790 = vmor %vm788, %vm789
    %v791 = vsel %vm790, %v783, %v787
    %v792 = vand.u32 2147483647, %v782
    %vm793 = vcmp.eq.f32.partialorder %v792, 8.507059e+37
    %v794 = vand.u32 %v782, 2147483648
    %v795 = vor.u32 1.1754944e-38, %v794
    %v796 = vsel %vm793, %v795, %v791
    %v797 = vmul.f32 1.0, %v796
    %v798 = vmul.f32 %v777, %v647
    %v799 = vmul.f32 %v758, %v778
    %v800 = vadd.f32 %v798, %v799
    %v801 = vtanh.pop %v800
    %v802 = vmul.f32 %v797, %v801
    %s803 = scalar_lea.vmem [#allocation2], 8
    %804 = vst [vmem:[%s803] sm:$0xff] %v802
    %s805 = scalar_lea.vmem [#allocation4], 64
    %v806 = vld [vmem:[%s805] sm:$0xff]
    %v807 = vld [vmem:[%s805 + $0x8] sm:$0xff]
    %v808 = vld [vmem:[%s805 + $0x10] sm:$0xff]
    %v809 = vld [vmem:[%s805 + $0x18] sm:$0xff]
    %810 = vmatpush.msra.mxu0 %v264
    %811 = vmatpush.msra.mxu0 %v260
    %812 = vmatpush.msra.mxu0 %v256
    %813 = vmatpush.msra.mxu0 %v252
    %814 = vmatpush.msra.mxu0 %v248
    %815 = vmatpush.msra.mxu0 %v244
    %816 = vmatpush.msra.mxu0 %v240
    %817 = vmatpush.msra.mxu0 %v236
    %818 = vmatpush.msra.mxu0 %v232
    %819 = vmatpush.msra.mxu0 %v228
    %820 = vmatpush.msra.mxu0 %v224
    %821 = vmatpush.msra.mxu0 %v220
    %822 = vmatpush.msra.mxu0 %v216
    %823 = vmatpush.msra.mxu0 %v212
    %824 = vmatpush.msra.mxu0 %v208
    %825 = vmatpush.msra.mxu0 %v204
    %826 = vmatmul.f32.gmra.mxu0 %v802
    %v827 = vpop.f32.mrf.mxu0
    %v828 = vadd.f32 0.0, %v827
    %829 = vdwg.mxu0
    %830 = vmatpush.msra.mxu0 %v265
    %831 = vmatpush.msra.mxu0 %v261
    %832 = vmatpush.msra.mxu0 %v257
    %833 = vmatpush.msra.mxu0 %v253
    %834 = vmatpush.msra.mxu0 %v249
    %835 = vmatpush.msra.mxu0 %v245
    %836 = vmatpush.msra.mxu0 %v241
    %837 = vmatpush.msra.mxu0 %v237
    %838 = vmatpush.msra.mxu0 %v233
    %839 = vmatpush.msra.mxu0 %v229
    %840 = vmatpush.msra.mxu0 %v225
    %841 = vmatpush.msra.mxu0 %v221
    %842 = vmatpush.msra.mxu0 %v217
    %843 = vmatpush.msra.mxu0 %v213
    %844 = vmatpush.msra.mxu0 %v209
    %845 = vmatpush.msra.mxu0 %v205
    %846 = vmatmul.f32.gmra.mxu0 %v802
    %v847 = vpop.f32.mrf.mxu0
    %v848 = vadd.f32 0.0, %v847
    %849 = vdwg.mxu0
    %850 = vmatpush.msra.mxu0 %v266
    %851 = vmatpush.msra.mxu0 %v262
    %852 = vmatpush.msra.mxu0 %v258
    %853 = vmatpush.msra.mxu0 %v254
    %854 = vmatpush.msra.mxu0 %v250
    %855 = vmatpush.msra.mxu0 %v246
    %856 = vmatpush.msra.mxu0 %v242
    %857 = vmatpush.msra.mxu0 %v238
    %858 = vmatpush.msra.mxu0 %v234
    %859 = vmatpush.msra.mxu0 %v230
    %860 = vmatpush.msra.mxu0 %v226
    %861 = vmatpush.msra.mxu0 %v222
    %862 = vmatpush.msra.mxu0 %v218
    %863 = vmatpush.msra.mxu0 %v214
    %864 = vmatpush.msra.mxu0 %v210
    %865 = vmatpush.msra.mxu0 %v206
    %866 = vmatmul.f32.gmra.mxu0 %v802
    %v867 = vpop.f32.mrf.mxu0
    %v868 = vadd.f32 0.0, %v867
    %869 = vdwg.mxu0
    %870 = vmatpush.msra.mxu0 %v267
    %871 = vmatpush.msra.mxu0 %v263
    %872 = vmatpush.msra.mxu0 %v259
    %873 = vmatpush.msra.mxu0 %v255
    %874 = vmatpush.msra.mxu0 %v251
    %875 = vmatpush.msra.mxu0 %v247
    %876 = vmatpush.msra.mxu0 %v243
    %877 = vmatpush.msra.mxu0 %v239
    %878 = vmatpush.msra.mxu0 %v235
    %879 = vmatpush.msra.mxu0 %v231
    %880 = vmatpush.msra.mxu0 %v227
    %881 = vmatpush.msra.mxu0 %v223
    %882 = vmatpush.msra.mxu0 %v219
    %883 = vmatpush.msra.mxu0 %v215
    %884 = vmatpush.msra.mxu0 %v211
    %885 = vmatpush.msra.mxu0 %v207
    %886 = vmatmul.f32.gmra.mxu0 %v802
    %v887 = vpop.f32.mrf.mxu0
    %v888 = vadd.f32 0.0, %v887
    %889 = vdwg.mxu0
    %v890 = vadd.f32 %v806, %v828
    %v891 = vadd.f32 %v807, %v848
    %v892 = vadd.f32 %v808, %v868
    %v893 = vadd.f32 %v809, %v888
    %v894 = vxor.u32 %v890, 2147483648
    %v895 = vmul.f32 %v894, 1.442695
    %v896 = vpow.pop %v895
    %v897 = vadd.f32 %v896, 1.0
    %v898 = vrcp.pop %v897
    %v899 = vmul.f32 %v897, %v898
    %v900 = vsub.f32 1.0, %v899
    %v901 = vmul.f32 %v898, %v900
    %v902 = vadd.f32 %v898, %v901
    %vm903 = vweird.f32 %v897
    %vm904 = vweird.f32 %v898
    %vm905 = vmor %vm903, %vm904
    %v906 = vsel %vm905, %v898, %v902
    %v907 = vand.u32 2147483647, %v897
    %vm908 = vcmp.eq.f32.partialorder %v907, 8.507059e+37
    %v909 = vand.u32 %v897, 2147483648
    %v910 = vor.u32 1.1754944e-38, %v909
    %v911 = vsel %vm908, %v910, %v906
    %v912 = vmul.f32 1.0, %v911
    %v913 = vxor.u32 %v891, 2147483648
    %v914 = vmul.f32 %v913, 1.442695
    %v915 = vpow.pop %v914
    %v916 = vadd.f32 %v915, 1.0
    %v917 = vrcp.pop %v916
    %v918 = vmul.f32 %v916, %v917
    %v919 = vsub.f32 1.0, %v918
    %v920 = vmul.f32 %v917, %v919
    %v921 = vadd.f32 %v917, %v920
    %vm922 = vweird.f32 %v916
    %vm923 = vweird.f32 %v917
    %vm924 = vmor %vm922, %vm923
    %v925 = vsel %vm924, %v917, %v921
    %v926 = vand.u32 2147483647, %v916
    %vm927 = vcmp.eq.f32.partialorder %v926, 8.507059e+37
    %v928 = vand.u32 %v916, 2147483648
    %v929 = vor.u32 1.1754944e-38, %v928
    %v930 = vsel %vm927, %v929, %v925
    %v931 = vmul.f32 1.0, %v930
    %v932 = vtanh.pop %v892
    %v933 = vxor.u32 %v893, 2147483648
    %v934 = vmul.f32 %v933, 1.442695
    %v935 = vpow.pop %v934
    %v936 = vadd.f32 %v935, 1.0
    %v937 = vrcp.pop %v936
    %v938 = vmul.f32 %v936, %v937
    %v939 = vsub.f32 1.0, %v938
    %v940 = vmul.f32 %v937, %v939
    %v941 = vadd.f32 %v937, %v940
    %vm942 = vweird.f32 %v936
    %vm943 = vweird.f32 %v937
    %vm944 = vmor %vm942, %vm943
    %v945 = vsel %vm944, %v937, %v941
    %v946 = vand.u32 2147483647, %v936
    %vm947 = vcmp.eq.f32.partialorder %v946, 8.507059e+37
    %v948 = vand.u32 %v936, 2147483648
    %v949 = vor.u32 1.1754944e-38, %v948
    %v950 = vsel %vm947, %v949, %v945
    %v951 = vmul.f32 1.0, %v950
    %v952 = vmul.f32 %v931, %v800
    %v953 = vmul.f32 %v912, %v932
    %v954 = vadd.f32 %v952, %v953
    %v955 = vtanh.pop %v954
    %v956 = vmul.f32 %v951, %v955
    %s957 = scalar_lea.vmem [#allocation2], 16
    %958 = vst [vmem:[%s957] sm:$0xff] %v956
    %s959 = scalar_lea.vmem [#allocation4], 96
    %v960 = vld [vmem:[%s959] sm:$0xff]
    %v961 = vld [vmem:[%s959 + $0x8] sm:$0xff]
    %v962 = vld [vmem:[%s959 + $0x10] sm:$0xff]
    %v963 = vld [vmem:[%s959 + $0x18] sm:$0xff]
    %964 = vmatpush.msra.mxu0 %v264
    %965 = vmatpush.msra.mxu0 %v260
    %966 = vmatpush.msra.mxu0 %v256
    %967 = vmatpush.msra.mxu0 %v252
    %968 = vmatpush.msra.mxu0 %v248
    %969 = vmatpush.msra.mxu0 %v244
    %970 = vmatpush.msra.mxu0 %v240
    %971 = vmatpush.msra.mxu0 %v236
    %972 = vmatpush.msra.mxu0 %v232
    %973 = vmatpush.msra.mxu0 %v228
    %974 = vmatpush.msra.mxu0 %v224
    %975 = vmatpush.msra.mxu0 %v220
    %976 = vmatpush.msra.mxu0 %v216
    %977 = vmatpush.msra.mxu0 %v212
    %978 = vmatpush.msra.mxu0 %v208
    %979 = vmatpush.msra.mxu0 %v204
    %980 = vmatmul.f32.gmra.mxu0 %v956
    %v981 = vpop.f32.mrf.mxu0
    %v982 = vadd.f32 0.0, %v981
    %983 = vdwg.mxu0
    %984 = vmatpush.msra.mxu0 %v265
    %985 = vmatpush.msra.mxu0 %v261
    %986 = vmatpush.msra.mxu0 %v257
    %987 = vmatpush.msra.mxu0 %v253
    %988 = vmatpush.msra.mxu0 %v249
    %989 = vmatpush.msra.mxu0 %v245
    %990 = vmatpush.msra.mxu0 %v241
    %991 = vmatpush.msra.mxu0 %v237
    %992 = vmatpush.msra.mxu0 %v233
    %993 = vmatpush.msra.mxu0 %v229
    %994 = vmatpush.msra.mxu0 %v225
    %995 = vmatpush.msra.mxu0 %v221
    %996 = vmatpush.msra.mxu0 %v217
    %997 = vmatpush.msra.mxu0 %v213
    %998 = vmatpush.msra.mxu0 %v209
    %999 = vmatpush.msra.mxu0 %v205
    %1000 = vmatmul.f32.gmra.mxu0 %v956
    %v1001 = vpop.f32.mrf.mxu0
    %v1002 = vadd.f32 0.0, %v1001
    %1003 = vdwg.mxu0
    %1004 = vmatpush.msra.mxu0 %v266
    %1005 = vmatpush.msra.mxu0 %v262
    %1006 = vmatpush.msra.mxu0 %v258
    %1007 = vmatpush.msra.mxu0 %v254
    %1008 = vmatpush.msra.mxu0 %v250
    %1009 = vmatpush.msra.mxu0 %v246
    %1010 = vmatpush.msra.mxu0 %v242
    %1011 = vmatpush.msra.mxu0 %v238
    %1012 = vmatpush.msra.mxu0 %v234
    %1013 = vmatpush.msra.mxu0 %v230
    %1014 = vmatpush.msra.mxu0 %v226
    %1015 = vmatpush.msra.mxu0 %v222
    %1016 = vmatpush.msra.mxu0 %v218
    %1017 = vmatpush.msra.mxu0 %v214
    %1018 = vmatpush.msra.mxu0 %v210
    %1019 = vmatpush.msra.mxu0 %v206
    %1020 = vmatmul.f32.gmra.mxu0 %v956
    %v1021 = vpop.f32.mrf.mxu0
    %v1022 = vadd.f32 0.0, %v1021
    %1023 = vdwg.mxu0
    %1024 = vmatpush.msra.mxu0 %v267
    %1025 = vmatpush.msra.mxu0 %v263
    %1026 = vmatpush.msra.mxu0 %v259
    %1027 = vmatpush.msra.mxu0 %v255
    %1028 = vmatpush.msra.mxu0 %v251
    %1029 = vmatpush.msra.mxu0 %v247
    %1030 = vmatpush.msra.mxu0 %v243
    %1031 = vmatpush.msra.mxu0 %v239
    %1032 = vmatpush.msra.mxu0 %v235
    %1033 = vmatpush.msra.mxu0 %v231
    %1034 = vmatpush.msra.mxu0 %v227
    %1035 = vmatpush.msra.mxu0 %v223
    %1036 = vmatpush.msra.mxu0 %v219
    %1037 = vmatpush.msra.mxu0 %v215
    %1038 = vmatpush.msra.mxu0 %v211
    %1039 = vmatpush.msra.mxu0 %v207
    %1040 = vmatmul.f32.gmra.mxu0 %v956
    %v1041 = vpop.f32.mrf.mxu0
    %v1042 = vadd.f32 0.0, %v1041
    %1043 = vdwg.mxu0
    %v1044 = vadd.f32 %v960, %v982
    %v1045 = vadd.f32 %v961, %v1002
    %v1046 = vadd.f32 %v962, %v1022
    %v1047 = vadd.f32 %v963, %v1042
    %v1048 = vxor.u32 %v1044, 2147483648
    %v1049 = vmul.f32 %v1048, 1.442695
    %v1050 = vpow.pop %v1049
    %v1051 = vadd.f32 %v1050, 1.0
    %v1052 = vrcp.pop %v1051
    %v1053 = vmul.f32 %v1051, %v1052
    %v1054 = vsub.f32 1.0, %v1053
    %v1055 = vmul.f32 %v1052, %v1054
    %v1056 = vadd.f32 %v1052, %v1055
    %vm1057 = vweird.f32 %v1051
    %vm1058 = vweird.f32 %v1052
    %vm1059 = vmor %vm1057, %vm1058
    %v1060 = vsel %vm1059, %v1052, %v1056
    %v1061 = vand.u32 2147483647, %v1051
    %vm1062 = vcmp.eq.f32.partialorder %v1061, 8.507059e+37
    %v1063 = vand.u32 %v1051, 2147483648
    %v1064 = vor.u32 1.1754944e-38, %v1063
    %v1065 = vsel %vm1062, %v1064, %v1060
    %v1066 = vmul.f32 1.0, %v1065
    %v1067 = vxor.u32 %v1045, 2147483648
    %v1068 = vmul.f32 %v1067, 1.442695
    %v1069 = vpow.pop %v1068
    %v1070 = vadd.f32 %v1069, 1.0
    %v1071 = vrcp.pop %v1070
    %v1072 = vmul.f32 %v1070, %v1071
    %v1073 = vsub.f32 1.0, %v1072
    %v1074 = vmul.f32 %v1071, %v1073
    %v1075 = vadd.f32 %v1071, %v1074
    %vm1076 = vweird.f32 %v1070
    %vm1077 = vweird.f32 %v1071
    %vm1078 = vmor %vm1076, %vm1077
    %v1079 = vsel %vm1078, %v1071, %v1075
    %v1080 = vand.u32 2147483647, %v1070
    %vm1081 = vcmp.eq.f32.partialorder %v1080, 8.507059e+37
    %v1082 = vand.u32 %v1070, 2147483648
    %v1083 = vor.u32 1.1754944e-38, %v1082
    %v1084 = vsel %vm1081, %v1083, %v1079
    %v1085 = vmul.f32 1.0, %v1084
    %v1086 = vtanh.pop %v1046
    %v1087 = vxor.u32 %v1047, 2147483648
    %v1088 = vmul.f32 %v1087, 1.442695
    %v1089 = vpow.pop %v1088
    %v1090 = vadd.f32 %v1089, 1.0
    %v1091 = vrcp.pop %v1090
    %v1092 = vmul.f32 %v1090, %v1091
    %v1093 = vsub.f32 1.0, %v1092
    %v1094 = vmul.f32 %v1091, %v1093
    %v1095 = vadd.f32 %v1091, %v1094
    %vm1096 = vweird.f32 %v1090
    %vm1097 = vweird.f32 %v1091
    %vm1098 = vmor %vm1096, %vm1097
    %v1099 = vsel %vm1098, %v1091, %v1095
    %v1100 = vand.u32 2147483647, %v1090
    %vm1101 = vcmp.eq.f32.partialorder %v1100, 8.507059e+37
    %v1102 = vand.u32 %v1090, 2147483648
    %v1103 = vor.u32 1.1754944e-38, %v1102
    %v1104 = vsel %vm1101, %v1103, %v1099
    %v1105 = vmul.f32 1.0, %v1104
    %v1106 = vmul.f32 %v1085, %v954
    %v1107 = vmul.f32 %v1066, %v1086
    %v1108 = vadd.f32 %v1106, %v1107
    %v1109 = vtanh.pop %v1108
    %v1110 = vmul.f32 %v1105, %v1109
    %s1111 = scalar_lea.vmem [#allocation2], 24
    %1112 = vst [vmem:[%s1111] sm:$0xff] %v1110
    %s1113 = scalar_lea.vmem [#allocation4], 128
    %v1114 = vld [vmem:[%s1113] sm:$0xff]
    %v1115 = vld [vmem:[%s1113 + $0x8] sm:$0xff]
    %v1116 = vld [vmem:[%s1113 + $0x10] sm:$0xff]
    %v1117 = vld [vmem:[%s1113 + $0x18] sm:$0xff]
    %1118 = vmatpush.msra.mxu0 %v264
    %1119 = vmatpush.msra.mxu0 %v260
    %1120 = vmatpush.msra.mxu0 %v256
    %1121 = vmatpush.msra.mxu0 %v252
    %1122 = vmatpush.msra.mxu0 %v248
    %1123 = vmatpush.msra.mxu0 %v244
    %1124 = vmatpush.msra.mxu0 %v240
    %1125 = vmatpush.msra.mxu0 %v236
    %1126 = vmatpush.msra.mxu0 %v232
    %1127 = vmatpush.msra.mxu0 %v228
    %1128 = vmatpush.msra.mxu0 %v224
    %1129 = vmatpush.msra.mxu0 %v220
    %1130 = vmatpush.msra.mxu0 %v216
    %1131 = vmatpush.msra.mxu0 %v212
    %1132 = vmatpush.msra.mxu0 %v208
    %1133 = vmatpush.msra.mxu0 %v204
    %1134 = vmatmul.f32.gmra.mxu0 %v1110
    %v1135 = vpop.f32.mrf.mxu0
    %v1136 = vadd.f32 0.0, %v1135
    %1137 = vdwg.mxu0
    %1138 = vmatpush.msra.mxu0 %v265
    %1139 = vmatpush.msra.mxu0 %v261
    %1140 = vmatpush.msra.mxu0 %v257
    %1141 = vmatpush.msra.mxu0 %v253
    %1142 = vmatpush.msra.mxu0 %v249
    %1143 = vmatpush.msra.mxu0 %v245
    %1144 = vmatpush.msra.mxu0 %v241
    %1145 = vmatpush.msra.mxu0 %v237
    %1146 = vmatpush.msra.mxu0 %v233
    %1147 = vmatpush.msra.mxu0 %v229
    %1148 = vmatpush.msra.mxu0 %v225
    %1149 = vmatpush.msra.mxu0 %v221
    %1150 = vmatpush.msra.mxu0 %v217
    %1151 = vmatpush.msra.mxu0 %v213
    %1152 = vmatpush.msra.mxu0 %v209
    %1153 = vmatpush.msra.mxu0 %v205
    %1154 = vmatmul.f32.gmra.mxu0 %v1110
    %v1155 = vpop.f32.mrf.mxu0
    %v1156 = vadd.f32 0.0, %v1155
    %1157 = vdwg.mxu0
    %1158 = vmatpush.msra.mxu0 %v266
    %1159 = vmatpush.msra.mxu0 %v262
    %1160 = vmatpush.msra.mxu0 %v258
    %1161 = vmatpush.msra.mxu0 %v254
    %1162 = vmatpush.msra.mxu0 %v250
    %1163 = vmatpush.msra.mxu0 %v246
    %1164 = vmatpush.msra.mxu0 %v242
    %1165 = vmatpush.msra.mxu0 %v238
    %1166 = vmatpush.msra.mxu0 %v234
    %1167 = vmatpush.msra.mxu0 %v230
    %1168 = vmatpush.msra.mxu0 %v226
    %1169 = vmatpush.msra.mxu0 %v222
    %1170 = vmatpush.msra.mxu0 %v218
    %1171 = vmatpush.msra.mxu0 %v214
    %1172 = vmatpush.msra.mxu0 %v210
    %1173 = vmatpush.msra.mxu0 %v206
    %1174 = vmatmul.f32.gmra.mxu0 %v1110
    %v1175 = vpop.f32.mrf.mxu0
    %v1176 = vadd.f32 0.0, %v1175
    %1177 = vdwg.mxu0
    %1178 = vmatpush.msra.mxu0 %v267
    %1179 = vmatpush.msra.mxu0 %v263
    %1180 = vmatpush.msra.mxu0 %v259
    %1181 = vmatpush.msra.mxu0 %v255
    %1182 = vmatpush.msra.mxu0 %v251
    %1183 = vmatpush.msra.mxu0 %v247
    %1184 = vmatpush.msra.mxu0 %v243
    %1185 = vmatpush.msra.mxu0 %v239
    %1186 = vmatpush.msra.mxu0 %v235
    %1187 = vmatpush.msra.mxu0 %v231
    %1188 = vmatpush.msra.mxu0 %v227
    %1189 = vmatpush.msra.mxu0 %v223
    %1190 = vmatpush.msra.mxu0 %v219
    %1191 = vmatpush.msra.mxu0 %v215
    %1192 = vmatpush.msra.mxu0 %v211
    %1193 = vmatpush.msra.mxu0 %v207
    %1194 = vmatmul.f32.gmra.mxu0 %v1110
    %v1195 = vpop.f32.mrf.mxu0
    %v1196 = vadd.f32 0.0, %v1195
    %1197 = vdwg.mxu0
    %v1198 = vadd.f32 %v1114, %v1136
    %v1199 = vadd.f32 %v1115, %v1156
    %v1200 = vadd.f32 %v1116, %v1176
    %v1201 = vadd.f32 %v1117, %v1196
    %v1202 = vxor.u32 %v1198, 2147483648
    %v1203 = vmul.f32 %v1202, 1.442695
    %v1204 = vpow.pop %v1203
    %v1205 = vadd.f32 %v1204, 1.0
    %v1206 = vrcp.pop %v1205
    %v1207 = vmul.f32 %v1205, %v1206
    %v1208 = vsub.f32 1.0, %v1207
    %v1209 = vmul.f32 %v1206, %v1208
    %v1210 = vadd.f32 %v1206, %v1209
    %vm1211 = vweird.f32 %v1205
    %vm1212 = vweird.f32 %v1206
    %vm1213 = vmor %vm1211, %vm1212
    %v1214 = vsel %vm1213, %v1206, %v1210
    %v1215 = vand.u32 2147483647, %v1205
    %vm1216 = vcmp.eq.f32.partialorder %v1215, 8.507059e+37
    %v1217 = vand.u32 %v1205, 2147483648
    %v1218 = vor.u32 1.1754944e-38, %v1217
    %v1219 = vsel %vm1216, %v1218, %v1214
    %v1220 = vmul.f32 1.0, %v1219
    %v1221 = vxor.u32 %v1199, 2147483648
    %v1222 = vmul.f32 %v1221, 1.442695
    %v1223 = vpow.pop %v1222
    %v1224 = vadd.f32 %v1223, 1.0
    %v1225 = vrcp.pop %v1224
    %v1226 = vmul.f32 %v1224, %v1225
    %v1227 = vsub.f32 1.0, %v1226
    %v1228 = vmul.f32 %v1225, %v1227
    %v1229 = vadd.f32 %v1225, %v1228
    %vm1230 = vweird.f32 %v1224
    %vm1231 = vweird.f32 %v1225
    %vm1232 = vmor %vm1230, %vm1231
    %v1233 = vsel %vm1232, %v1225, %v1229
    %v1234 = vand.u32 2147483647, %v1224
    %vm1235 = vcmp.eq.f32.partialorder %v1234, 8.507059e+37
    %v1236 = vand.u32 %v1224, 2147483648
    %v1237 = vor.u32 1.1754944e-38, %v1236
    %v1238 = vsel %vm1235, %v1237, %v1233
    %v1239 = vmul.f32 1.0, %v1238
    %v1240 = vtanh.pop %v1200
    %v1241 = vxor.u32 %v1201, 2147483648
    %v1242 = vmul.f32 %v1241, 1.442695
    %v1243 = vpow.pop %v1242
    %v1244 = vadd.f32 %v1243, 1.0
    %v1245 = vrcp.pop %v1244
    %v1246 = vmul.f32 %v1244, %v1245
    %v1247 = vsub.f32 1.0, %v1246
    %v1248 = vmul.f32 %v1245, %v1247
    %v1249 = vadd.f32 %v1245, %v1248
    %vm1250 = vweird.f32 %v1244
    %vm1251 = vweird.f32 %v1245
    %vm1252 = vmor %vm1250, %vm1251
    %v1253 = vsel %vm1252, %v1245, %v1249
    %v1254 = vand.u32 2147483647, %v1244
    %vm1255 = vcmp.eq.f32.partialorder %v1254, 8.507059e+37
    %v1256 = vand.u32 %v1244, 2147483648
    %v1257 = vor.u32 1.1754944e-38, %v1256
    %v1258 = vsel %vm1255, %v1257, %v1253
    %v1259 = vmul.f32 1.0, %v1258
    %v1260 = vmul.f32 %v1239, %v1108
    %v1261 = vmul.f32 %v1220, %v1240
    %v1262 = vadd.f32 %v1260, %v1261
    %v1263 = vtanh.pop %v1262
    %v1264 = vmul.f32 %v1259, %v1263
    %s1265 = scalar_lea.vmem [#allocation2], 32
    %1266 = vst [vmem:[%s1265] sm:$0xff] %v1264
    %s1267 = scalar_lea.vmem [#allocation4], 160
    %v1268 = vld [vmem:[%s1267] sm:$0xff]
    %v1269 = vld [vmem:[%s1267 + $0x8] sm:$0xff]
    %v1270 = vld [vmem:[%s1267 + $0x10] sm:$0xff]
    %v1271 = vld [vmem:[%s1267 + $0x18] sm:$0xff]
    %1272 = vmatpush.msra.mxu0 %v264
    %1273 = vmatpush.msra.mxu0 %v260
    %1274 = vmatpush.msra.mxu0 %v256
    %1275 = vmatpush.msra.mxu0 %v252
    %1276 = vmatpush.msra.mxu0 %v248
    %1277 = vmatpush.msra.mxu0 %v244
    %1278 = vmatpush.msra.mxu0 %v240
    %1279 = vmatpush.msra.mxu0 %v236
    %1280 = vmatpush.msra.mxu0 %v232
    %1281 = vmatpush.msra.mxu0 %v228
    %1282 = vmatpush.msra.mxu0 %v224
    %1283 = vmatpush.msra.mxu0 %v220
    %1284 = vmatpush.msra.mxu0 %v216
    %1285 = vmatpush.msra.mxu0 %v212
    %1286 = vmatpush.msra.mxu0 %v208
    %1287 = vmatpush.msra.mxu0 %v204
    %1288 = vmatmul.f32.gmra.mxu0 %v1264
    %v1289 = vpop.f32.mrf.mxu0
    %v1290 = vadd.f32 0.0, %v1289
    %1291 = vdwg.mxu0
    %1292 = vmatpush.msra.mxu0 %v265
    %1293 = vmatpush.msra.mxu0 %v261
    %1294 = vmatpush.msra.mxu0 %v257
    %1295 = vmatpush.msra.mxu0 %v253
    %1296 = vmatpush.msra.mxu0 %v249
    %1297 = vmatpush.msra.mxu0 %v245
    %1298 = vmatpush.msra.mxu0 %v241
    %1299 = vmatpush.msra.mxu0 %v237
    %1300 = vmatpush.msra.mxu0 %v233
    %1301 = vmatpush.msra.mxu0 %v229
    %1302 = vmatpush.msra.mxu0 %v225
    %1303 = vmatpush.msra.mxu0 %v221
    %1304 = vmatpush.msra.mxu0 %v217
    %1305 = vmatpush.msra.mxu0 %v213
    %1306 = vmatpush.msra.mxu0 %v209
    %1307 = vmatpush.msra.mxu0 %v205
    %1308 = vmatmul.f32.gmra.mxu0 %v1264
    %v1309 = vpop.f32.mrf.mxu0
    %v1310 = vadd.f32 0.0, %v1309
    %1311 = vdwg.mxu0
    %1312 = vmatpush.msra.mxu0 %v266
    %1313 = vmatpush.msra.mxu0 %v262
    %1314 = vmatpush.msra.mxu0 %v258
    %1315 = vmatpush.msra.mxu0 %v254
    %1316 = vmatpush.msra.mxu0 %v250
    %1317 = vmatpush.msra.mxu0 %v246
    %1318 = vmatpush.msra.mxu0 %v242
    %1319 = vmatpush.msra.mxu0 %v238
    %1320 = vmatpush.msra.mxu0 %v234
    %1321 = vmatpush.msra.mxu0 %v230
    %1322 = vmatpush.msra.mxu0 %v226
    %1323 = vmatpush.msra.mxu0 %v222
    %1324 = vmatpush.msra.mxu0 %v218
    %1325 = vmatpush.msra.mxu0 %v214
    %1326 = vmatpush.msra.mxu0 %v210
    %1327 = vmatpush.msra.mxu0 %v206
    %1328 = vmatmul.f32.gmra.mxu0 %v1264
    %v1329 = vpop.f32.mrf.mxu0
    %v1330 = vadd.f32 0.0, %v1329
    %1331 = vdwg.mxu0
    %1332 = vmatpush.msra.mxu0 %v267
    %1333 = vmatpush.msra.mxu0 %v263
    %1334 = vmatpush.msra.mxu0 %v259
    %1335 = vmatpush.msra.mxu0 %v255
    %1336 = vmatpush.msra.mxu0 %v251
    %1337 = vmatpush.msra.mxu0 %v247
    %1338 = vmatpush.msra.mxu0 %v243
    %1339 = vmatpush.msra.mxu0 %v239
    %1340 = vmatpush.msra.mxu0 %v235
    %1341 = vmatpush.msra.mxu0 %v231
    %1342 = vmatpush.msra.mxu0 %v227
    %1343 = vmatpush.msra.mxu0 %v223
    %1344 = vmatpush.msra.mxu0 %v219
    %1345 = vmatpush.msra.mxu0 %v215
    %1346 = vmatpush.msra.mxu0 %v211
    %1347 = vmatpush.msra.mxu0 %v207
    %1348 = vmatmul.f32.gmra.mxu0 %v1264
    %v1349 = vpop.f32.mrf.mxu0
    %v1350 = vadd.f32 0.0, %v1349
    %1351 = vdwg.mxu0
    %v1352 = vadd.f32 %v1268, %v1290
    %v1353 = vadd.f32 %v1269, %v1310
    %v1354 = vadd.f32 %v1270, %v1330
    %v1355 = vadd.f32 %v1271, %v1350
    %v1356 = vxor.u32 %v1352, 2147483648
    %v1357 = vmul.f32 %v1356, 1.442695
    %v1358 = vpow.pop %v1357
    %v1359 = vadd.f32 %v1358, 1.0
    %v1360 = vrcp.pop %v1359
    %v1361 = vmul.f32 %v1359, %v1360
    %v1362 = vsub.f32 1.0, %v1361
    %v1363 = vmul.f32 %v1360, %v1362
    %v1364 = vadd.f32 %v1360, %v1363
    %vm1365 = vweird.f32 %v1359
    %vm1366 = vweird.f32 %v1360
    %vm1367 = vmor %vm1365, %vm1366
    %v1368 = vsel %vm1367, %v1360, %v1364
    %v1369 = vand.u32 2147483647, %v1359
    %vm1370 = vcmp.eq.f32.partialorder %v1369, 8.507059e+37
    %v1371 = vand.u32 %v1359, 2147483648
    %v1372 = vor.u32 1.1754944e-38, %v1371
    %v1373 = vsel %vm1370, %v1372, %v1368
    %v1374 = vmul.f32 1.0, %v1373
    %v1375 = vxor.u32 %v1353, 2147483648
    %v1376 = vmul.f32 %v1375, 1.442695
    %v1377 = vpow.pop %v1376
    %v1378 = vadd.f32 %v1377, 1.0
    %v1379 = vrcp.pop %v1378
    %v1380 = vmul.f32 %v1378, %v1379
    %v1381 = vsub.f32 1.0, %v1380
    %v1382 = vmul.f32 %v1379, %v1381
    %v1383 = vadd.f32 %v1379, %v1382
    %vm1384 = vweird.f32 %v1378
    %vm1385 = vweird.f32 %v1379
    %vm1386 = vmor %vm1384, %vm1385
    %v1387 = vsel %vm1386, %v1379, %v1383
    %v1388 = vand.u32 2147483647, %v1378
    %vm1389 = vcmp.eq.f32.partialorder %v1388, 8.507059e+37
    %v1390 = vand.u32 %v1378, 2147483648
    %v1391 = vor.u32 1.1754944e-38, %v1390
    %v1392 = vsel %vm1389, %v1391, %v1387
    %v1393 = vmul.f32 1.0, %v1392
    %v1394 = vtanh.pop %v1354
    %v1395 = vxor.u32 %v1355, 2147483648
    %v1396 = vmul.f32 %v1395, 1.442695
    %v1397 = vpow.pop %v1396
    %v1398 = vadd.f32 %v1397, 1.0
    %v1399 = vrcp.pop %v1398
    %v1400 = vmul.f32 %v1398, %v1399
    %v1401 = vsub.f32 1.0, %v1400
    %v1402 = vmul.f32 %v1399, %v1401
    %v1403 = vadd.f32 %v1399, %v1402
    %vm1404 = vweird.f32 %v1398
    %vm1405 = vweird.f32 %v1399
    %vm1406 = vmor %vm1404, %vm1405
    %v1407 = vsel %vm1406, %v1399, %v1403
    %v1408 = vand.u32 2147483647, %v1398
    %vm1409 = vcmp.eq.f32.partialorder %v1408, 8.507059e+37
    %v1410 = vand.u32 %v1398, 2147483648
    %v1411 = vor.u32 1.1754944e-38, %v1410
    %v1412 = vsel %vm1409, %v1411, %v1407
    %v1413 = vmul.f32 1.0, %v1412
    %v1414 = vmul.f32 %v1393, %v1262
    %v1415 = vmul.f32 %v1374, %v1394
    %v1416 = vadd.f32 %v1414, %v1415
    %v1417 = vtanh.pop %v1416
    %v1418 = vmul.f32 %v1413, %v1417
    %s1419 = scalar_lea.vmem [#allocation2], 40
    %1420 = vst [vmem:[%s1419] sm:$0xff] %v1418
    %s1421 = scalar_lea.vmem [#allocation4], 192
    %v1422 = vld [vmem:[%s1421] sm:$0xff]
    %v1423 = vld [vmem:[%s1421 + $0x8] sm:$0xff]
    %v1424 = vld [vmem:[%s1421 + $0x10] sm:$0xff]
    %v1425 = vld [vmem:[%s1421 + $0x18] sm:$0xff]
    %1426 = vmatpush.msra.mxu0 %v264
    %1427 = vmatpush.msra.mxu0 %v260
    %1428 = vmatpush.msra.mxu0 %v256
    %1429 = vmatpush.msra.mxu0 %v252
    %1430 = vmatpush.msra.mxu0 %v248
    %1431 = vmatpush.msra.mxu0 %v244
    %1432 = vmatpush.msra.mxu0 %v240
    %1433 = vmatpush.msra.mxu0 %v236
    %1434 = vmatpush.msra.mxu0 %v232
    %1435 = vmatpush.msra.mxu0 %v228
    %1436 = vmatpush.msra.mxu0 %v224
    %1437 = vmatpush.msra.mxu0 %v220
    %1438 = vmatpush.msra.mxu0 %v216
    %1439 = vmatpush.msra.mxu0 %v212
    %1440 = vmatpush.msra.mxu0 %v208
    %1441 = vmatpush.msra.mxu0 %v204
    %1442 = vmatmul.f32.gmra.mxu0 %v1418
    %v1443 = vpop.f32.mrf.mxu0
    %v1444 = vadd.f32 0.0, %v1443
    %1445 = vdwg.mxu0
    %1446 = vmatpush.msra.mxu0 %v265
    %1447 = vmatpush.msra.mxu0 %v261
    %1448 = vmatpush.msra.mxu0 %v257
    %1449 = vmatpush.msra.mxu0 %v253
    %1450 = vmatpush.msra.mxu0 %v249
    %1451 = vmatpush.msra.mxu0 %v245
    %1452 = vmatpush.msra.mxu0 %v241
    %1453 = vmatpush.msra.mxu0 %v237
    %1454 = vmatpush.msra.mxu0 %v233
    %1455 = vmatpush.msra.mxu0 %v229
    %1456 = vmatpush.msra.mxu0 %v225
    %1457 = vmatpush.msra.mxu0 %v221
    %1458 = vmatpush.msra.mxu0 %v217
    %1459 = vmatpush.msra.mxu0 %v213
    %1460 = vmatpush.msra.mxu0 %v209
    %1461 = vmatpush.msra.mxu0 %v205
    %1462 = vmatmul.f32.gmra.mxu0 %v1418
    %v1463 = vpop.f32.mrf.mxu0
    %v1464 = vadd.f32 0.0, %v1463
    %1465 = vdwg.mxu0
    %1466 = vmatpush.msra.mxu0 %v266
    %1467 = vmatpush.msra.mxu0 %v262
    %1468 = vmatpush.msra.mxu0 %v258
    %1469 = vmatpush.msra.mxu0 %v254
    %1470 = vmatpush.msra.mxu0 %v250
    %1471 = vmatpush.msra.mxu0 %v246
    %1472 = vmatpush.msra.mxu0 %v242
    %1473 = vmatpush.msra.mxu0 %v238
    %1474 = vmatpush.msra.mxu0 %v234
    %1475 = vmatpush.msra.mxu0 %v230
    %1476 = vmatpush.msra.mxu0 %v226
    %1477 = vmatpush.msra.mxu0 %v222
    %1478 = vmatpush.msra.mxu0 %v218
    %1479 = vmatpush.msra.mxu0 %v214
    %1480 = vmatpush.msra.mxu0 %v210
    %1481 = vmatpush.msra.mxu0 %v206
    %1482 = vmatmul.f32.gmra.mxu0 %v1418
    %v1483 = vpop.f32.mrf.mxu0
    %v1484 = vadd.f32 0.0, %v1483
    %1485 = vdwg.mxu0
    %1486 = vmatpush.msra.mxu0 %v267
    %1487 = vmatpush.msra.mxu0 %v263
    %1488 = vmatpush.msra.mxu0 %v259
    %1489 = vmatpush.msra.mxu0 %v255
    %1490 = vmatpush.msra.mxu0 %v251
    %1491 = vmatpush.msra.mxu0 %v247
    %1492 = vmatpush.msra.mxu0 %v243
    %1493 = vmatpush.msra.mxu0 %v239
    %1494 = vmatpush.msra.mxu0 %v235
    %1495 = vmatpush.msra.mxu0 %v231
    %1496 = vmatpush.msra.mxu0 %v227
    %1497 = vmatpush.msra.mxu0 %v223
    %1498 = vmatpush.msra.mxu0 %v219
    %1499 = vmatpush.msra.mxu0 %v215
    %1500 = vmatpush.msra.mxu0 %v211
    %1501 = vmatpush.msra.mxu0 %v207
    %1502 = vmatmul.f32.gmra.mxu0 %v1418
    %v1503 = vpop.f32.mrf.mxu0
    %v1504 = vadd.f32 0.0, %v1503
    %1505 = vdwg.mxu0
    %v1506 = vadd.f32 %v1422, %v1444
    %v1507 = vadd.f32 %v1423, %v1464
    %v1508 = vadd.f32 %v1424, %v1484
    %v1509 = vadd.f32 %v1425, %v1504
    %v1510 = vxor.u32 %v1506, 2147483648
    %v1511 = vmul.f32 %v1510, 1.442695
    %v1512 = vpow.pop %v1511
    %v1513 = vadd.f32 %v1512, 1.0
    %v1514 = vrcp.pop %v1513
    %v1515 = vmul.f32 %v1513, %v1514
    %v1516 = vsub.f32 1.0, %v1515
    %v1517 = vmul.f32 %v1514, %v1516
    %v1518 = vadd.f32 %v1514, %v1517
    %vm1519 = vweird.f32 %v1513
    %vm1520 = vweird.f32 %v1514
    %vm1521 = vmor %vm1519, %vm1520
    %v1522 = vsel %vm1521, %v1514, %v1518
    %v1523 = vand.u32 2147483647, %v1513
    %vm1524 = vcmp.eq.f32.partialorder %v1523, 8.507059e+37
    %v1525 = vand.u32 %v1513, 2147483648
    %v1526 = vor.u32 1.1754944e-38, %v1525
    %v1527 = vsel %vm1524, %v1526, %v1522
    %v1528 = vmul.f32 1.0, %v1527
    %v1529 = vxor.u32 %v1507, 2147483648
    %v1530 = vmul.f32 %v1529, 1.442695
    %v1531 = vpow.pop %v1530
    %v1532 = vadd.f32 %v1531, 1.0
    %v1533 = vrcp.pop %v1532
    %v1534 = vmul.f32 %v1532, %v1533
    %v1535 = vsub.f32 1.0, %v1534
    %v1536 = vmul.f32 %v1533, %v1535
    %v1537 = vadd.f32 %v1533, %v1536
    %vm1538 = vweird.f32 %v1532
    %vm1539 = vweird.f32 %v1533
    %vm1540 = vmor %vm1538, %vm1539
    %v1541 = vsel %vm1540, %v1533, %v1537
    %v1542 = vand.u32 2147483647, %v1532
    %vm1543 = vcmp.eq.f32.partialorder %v1542, 8.507059e+37
    %v1544 = vand.u32 %v1532, 2147483648
    %v1545 = vor.u32 1.1754944e-38, %v1544
    %v1546 = vsel %vm1543, %v1545, %v1541
    %v1547 = vmul.f32 1.0, %v1546
    %v1548 = vtanh.pop %v1508
    %v1549 = vxor.u32 %v1509, 2147483648
    %v1550 = vmul.f32 %v1549, 1.442695
    %v1551 = vpow.pop %v1550
    %v1552 = vadd.f32 %v1551, 1.0
    %v1553 = vrcp.pop %v1552
    %v1554 = vmul.f32 %v1552, %v1553
    %v1555 = vsub.f32 1.0, %v1554
    %v1556 = vmul.f32 %v1553, %v1555
    %v1557 = vadd.f32 %v1553, %v1556
    %vm1558 = vweird.f32 %v1552
    %vm1559 = vweird.f32 %v1553
    %vm1560 = vmor %vm1558, %vm1559
    %v1561 = vsel %vm1560, %v1553, %v1557
    %v1562 = vand.u32 2147483647, %v1552
    %vm1563 = vcmp.eq.f32.partialorder %v1562, 8.507059e+37
    %v1564 = vand.u32 %v1552, 2147483648
    %v1565 = vor.u32 1.1754944e-38, %v1564
    %v1566 = vsel %vm1563, %v1565, %v1561
    %v1567 = vmul.f32 1.0, %v1566
    %v1568 = vmul.f32 %v1547, %v1416
    %v1569 = vmul.f32 %v1528, %v1548
    %v1570 = vadd.f32 %v1568, %v1569
    %v1571 = vtanh.pop %v1570
    %v1572 = vmul.f32 %v1567, %v1571
    %s1573 = scalar_lea.vmem [#allocation2], 48
    %1574 = vst [vmem:[%s1573] sm:$0xff] %v1572
    %s1575 = scalar_lea.vmem [#allocation4], 224
    %v1576 = vld [vmem:[%s1575] sm:$0xff]
    %v1577 = vld [vmem:[%s1575 + $0x8] sm:$0xff]
    %v1578 = vld [vmem:[%s1575 + $0x10] sm:$0xff]
    %v1579 = vld [vmem:[%s1575 + $0x18] sm:$0xff]
    %1580 = vmatpush.msra.mxu0 %v264
    %1581 = vmatpush.msra.mxu0 %v260
    %1582 = vmatpush.msra.mxu0 %v256
    %1583 = vmatpush.msra.mxu0 %v252
    %1584 = vmatpush.msra.mxu0 %v248
    %1585 = vmatpush.msra.mxu0 %v244
    %1586 = vmatpush.msra.mxu0 %v240
    %1587 = vmatpush.msra.mxu0 %v236
    %1588 = vmatpush.msra.mxu0 %v232
    %1589 = vmatpush.msra.mxu0 %v228
    %1590 = vmatpush.msra.mxu0 %v224
    %1591 = vmatpush.msra.mxu0 %v220
    %1592 = vmatpush.msra.mxu0 %v216
    %1593 = vmatpush.msra.mxu0 %v212
    %1594 = vmatpush.msra.mxu0 %v208
    %1595 = vmatpush.msra.mxu0 %v204
    %1596 = vmatmul.f32.gmra.mxu0 %v1572
    %v1597 = vpop.f32.mrf.mxu0
    %v1598 = vadd.f32 0.0, %v1597
    %1599 = vdwg.mxu0
    %1600 = vmatpush.msra.mxu0 %v265
    %1601 = vmatpush.msra.mxu0 %v261
    %1602 = vmatpush.msra.mxu0 %v257
    %1603 = vmatpush.msra.mxu0 %v253
    %1604 = vmatpush.msra.mxu0 %v249
    %1605 = vmatpush.msra.mxu0 %v245
    %1606 = vmatpush.msra.mxu0 %v241
    %1607 = vmatpush.msra.mxu0 %v237
    %1608 = vmatpush.msra.mxu0 %v233
    %1609 = vmatpush.msra.mxu0 %v229
    %1610 = vmatpush.msra.mxu0 %v225
    %1611 = vmatpush.msra.mxu0 %v221
    %1612 = vmatpush.msra.mxu0 %v217
    %1613 = vmatpush.msra.mxu0 %v213
    %1614 = vmatpush.msra.mxu0 %v209
    %1615 = vmatpush.msra.mxu0 %v205
    %1616 = vmatmul.f32.gmra.mxu0 %v1572
    %v1617 = vpop.f32.mrf.mxu0
    %v1618 = vadd.f32 0.0, %v1617
    %1619 = vdwg.mxu0
    %1620 = vmatpush.msra.mxu0 %v266
    %1621 = vmatpush.msra.mxu0 %v262
    %1622 = vmatpush.msra.mxu0 %v258
    %1623 = vmatpush.msra.mxu0 %v254
    %1624 = vmatpush.msra.mxu0 %v250
    %1625 = vmatpush.msra.mxu0 %v246
    %1626 = vmatpush.msra.mxu0 %v242
    %1627 = vmatpush.msra.mxu0 %v238
    %1628 = vmatpush.msra.mxu0 %v234
    %1629 = vmatpush.msra.mxu0 %v230
    %1630 = vmatpush.msra.mxu0 %v226
    %1631 = vmatpush.msra.mxu0 %v222
    %1632 = vmatpush.msra.mxu0 %v218
    %1633 = vmatpush.msra.mxu0 %v214
    %1634 = vmatpush.msra.mxu0 %v210
    %1635 = vmatpush.msra.mxu0 %v206
    %1636 = vmatmul.f32.gmra.mxu0 %v1572
    %v1637 = vpop.f32.mrf.mxu0
    %v1638 = vadd.f32 0.0, %v1637
    %1639 = vdwg.mxu0
    %1640 = vmatpush.msra.mxu0 %v267
    %1641 = vmatpush.msra.mxu0 %v263
    %1642 = vmatpush.msra.mxu0 %v259
    %1643 = vmatpush.msra.mxu0 %v255
    %1644 = vmatpush.msra.mxu0 %v251
    %1645 = vmatpush.msra.mxu0 %v247
    %1646 = vmatpush.msra.mxu0 %v243
    %1647 = vmatpush.msra.mxu0 %v239
    %1648 = vmatpush.msra.mxu0 %v235
    %1649 = vmatpush.msra.mxu0 %v231
    %1650 = vmatpush.msra.mxu0 %v227
    %1651 = vmatpush.msra.mxu0 %v223
    %1652 = vmatpush.msra.mxu0 %v219
    %1653 = vmatpush.msra.mxu0 %v215
    %1654 = vmatpush.msra.mxu0 %v211
    %1655 = vmatpush.msra.mxu0 %v207
    %1656 = vmatmul.f32.gmra.mxu0 %v1572
    %v1657 = vpop.f32.mrf.mxu0
    %v1658 = vadd.f32 0.0, %v1657
    %1659 = vdwg.mxu0
    %v1660 = vadd.f32 %v1576, %v1598
    %v1661 = vadd.f32 %v1577, %v1618
    %v1662 = vadd.f32 %v1578, %v1638
    %v1663 = vadd.f32 %v1579, %v1658
    %v1664 = vxor.u32 %v1660, 2147483648
    %v1665 = vmul.f32 %v1664, 1.442695
    %v1666 = vpow.pop %v1665
    %v1667 = vadd.f32 %v1666, 1.0
    %v1668 = vrcp.pop %v1667
    %v1669 = vmul.f32 %v1667, %v1668
    %v1670 = vsub.f32 1.0, %v1669
    %v1671 = vmul.f32 %v1668, %v1670
    %v1672 = vadd.f32 %v1668, %v1671
    %vm1673 = vweird.f32 %v1667
    %vm1674 = vweird.f32 %v1668
    %vm1675 = vmor %vm1673, %vm1674
    %v1676 = vsel %vm1675, %v1668, %v1672
    %v1677 = vand.u32 2147483647, %v1667
    %vm1678 = vcmp.eq.f32.partialorder %v1677, 8.507059e+37
    %v1679 = vand.u32 %v1667, 2147483648
    %v1680 = vor.u32 1.1754944e-38, %v1679
    %v1681 = vsel %vm1678, %v1680, %v1676
    %v1682 = vmul.f32 1.0, %v1681
    %v1683 = vxor.u32 %v1661, 2147483648
    %v1684 = vmul.f32 %v1683, 1.442695
    %v1685 = vpow.pop %v1684
    %v1686 = vadd.f32 %v1685, 1.0
    %v1687 = vrcp.pop %v1686
    %v1688 = vmul.f32 %v1686, %v1687
    %v1689 = vsub.f32 1.0, %v1688
    %v1690 = vmul.f32 %v1687, %v1689
    %v1691 = vadd.f32 %v1687, %v1690
    %vm1692 = vweird.f32 %v1686
    %vm1693 = vweird.f32 %v1687
    %vm1694 = vmor %vm1692, %vm1693
    %v1695 = vsel %vm1694, %v1687, %v1691
    %v1696 = vand.u32 2147483647, %v1686
    %vm1697 = vcmp.eq.f32.partialorder %v1696, 8.507059e+37
    %v1698 = vand.u32 %v1686, 2147483648
    %v1699 = vor.u32 1.1754944e-38, %v1698
    %v1700 = vsel %vm1697, %v1699, %v1695
    %v1701 = vmul.f32 1.0, %v1700
    %v1702 = vtanh.pop %v1662
    %v1703 = vxor.u32 %v1663, 2147483648
    %v1704 = vmul.f32 %v1703, 1.442695
    %v1705 = vpow.pop %v1704
    %v1706 = vadd.f32 %v1705, 1.0
    %v1707 = vrcp.pop %v1706
    %v1708 = vmul.f32 %v1706, %v1707
    %v1709 = vsub.f32 1.0, %v1708
    %v1710 = vmul.f32 %v1707, %v1709
    %v1711 = vadd.f32 %v1707, %v1710
    %vm1712 = vweird.f32 %v1706
    %vm1713 = vweird.f32 %v1707
    %vm1714 = vmor %vm1712, %vm1713
    %v1715 = vsel %vm1714, %v1707, %v1711
    %v1716 = vand.u32 2147483647, %v1706
    %vm1717 = vcmp.eq.f32.partialorder %v1716, 8.507059e+37
    %v1718 = vand.u32 %v1706, 2147483648
    %v1719 = vor.u32 1.1754944e-38, %v1718
    %v1720 = vsel %vm1717, %v1719, %v1715
    %v1721 = vmul.f32 1.0, %v1720
    %v1722 = vmul.f32 %v1701, %v1570
    %v1723 = vmul.f32 %v1682, %v1702
    %v1724 = vadd.f32 %v1722, %v1723
    %v1725 = vtanh.pop %v1724
    %v1726 = vmul.f32 %v1721, %v1725
    %s1727 = scalar_lea.vmem [#allocation2], 56
    %1728 = vst [vmem:[%s1727] sm:$0xff] %v1726
    %s1729 = scalar_lea.vmem [#allocation4], 256
    %v1730 = vld [vmem:[%s1729] sm:$0xff]
    %v1731 = vld [vmem:[%s1729 + $0x8] sm:$0xff]
    %v1732 = vld [vmem:[%s1729 + $0x10] sm:$0xff]
    %v1733 = vld [vmem:[%s1729 + $0x18] sm:$0xff]
    %1734 = vmatpush.msra.mxu0 %v264
    %1735 = vmatpush.msra.mxu0 %v260
    %1736 = vmatpush.msra.mxu0 %v256
    %1737 = vmatpush.msra.mxu0 %v252
    %1738 = vmatpush.msra.mxu0 %v248
    %1739 = vmatpush.msra.mxu0 %v244
    %1740 = vmatpush.msra.mxu0 %v240
    %1741 = vmatpush.msra.mxu0 %v236
    %1742 = vmatpush.msra.mxu0 %v232
    %1743 = vmatpush.msra.mxu0 %v228
    %1744 = vmatpush.msra.mxu0 %v224
    %1745 = vmatpush.msra.mxu0 %v220
    %1746 = vmatpush.msra.mxu0 %v216
    %1747 = vmatpush.msra.mxu0 %v212
    %1748 = vmatpush.msra.mxu0 %v208
    %1749 = vmatpush.msra.mxu0 %v204
    %1750 = vmatmul.f32.gmra.mxu0 %v1726
    %v1751 = vpop.f32.mrf.mxu0
    %v1752 = vadd.f32 0.0, %v1751
    %1753 = vdwg.mxu0
    %1754 = vmatpush.msra.mxu0 %v265
    %1755 = vmatpush.msra.mxu0 %v261
    %1756 = vmatpush.msra.mxu0 %v257
    %1757 = vmatpush.msra.mxu0 %v253
    %1758 = vmatpush.msra.mxu0 %v249
    %1759 = vmatpush.msra.mxu0 %v245
    %1760 = vmatpush.msra.mxu0 %v241
    %1761 = vmatpush.msra.mxu0 %v237
    %1762 = vmatpush.msra.mxu0 %v233
    %1763 = vmatpush.msra.mxu0 %v229
    %1764 = vmatpush.msra.mxu0 %v225
    %1765 = vmatpush.msra.mxu0 %v221
    %1766 = vmatpush.msra.mxu0 %v217
    %1767 = vmatpush.msra.mxu0 %v213
    %1768 = vmatpush.msra.mxu0 %v209
    %1769 = vmatpush.msra.mxu0 %v205
    %1770 = vmatmul.f32.gmra.mxu0 %v1726
    %v1771 = vpop.f32.mrf.mxu0
    %v1772 = vadd.f32 0.0, %v1771
    %1773 = vdwg.mxu0
    %1774 = vmatpush.msra.mxu0 %v266
    %1775 = vmatpush.msra.mxu0 %v262
    %1776 = vmatpush.msra.mxu0 %v258
    %1777 = vmatpush.msra.mxu0 %v254
    %1778 = vmatpush.msra.mxu0 %v250
    %1779 = vmatpush.msra.mxu0 %v246
    %1780 = vmatpush.msra.mxu0 %v242
    %1781 = vmatpush.msra.mxu0 %v238
    %1782 = vmatpush.msra.mxu0 %v234
    %1783 = vmatpush.msra.mxu0 %v230
    %1784 = vmatpush.msra.mxu0 %v226
    %1785 = vmatpush.msra.mxu0 %v222
    %1786 = vmatpush.msra.mxu0 %v218
    %1787 = vmatpush.msra.mxu0 %v214
    %1788 = vmatpush.msra.mxu0 %v210
    %1789 = vmatpush.msra.mxu0 %v206
    %1790 = vmatmul.f32.gmra.mxu0 %v1726
    %v1791 = vpop.f32.mrf.mxu0
    %v1792 = vadd.f32 0.0, %v1791
    %1793 = vdwg.mxu0
    %1794 = vmatpush.msra.mxu0 %v267
    %1795 = vmatpush.msra.mxu0 %v263
    %1796 = vmatpush.msra.mxu0 %v259
    %1797 = vmatpush.msra.mxu0 %v255
    %1798 = vmatpush.msra.mxu0 %v251
    %1799 = vmatpush.msra.mxu0 %v247
    %1800 = vmatpush.msra.mxu0 %v243
    %1801 = vmatpush.msra.mxu0 %v239
    %1802 = vmatpush.msra.mxu0 %v235
    %1803 = vmatpush.msra.mxu0 %v231
    %1804 = vmatpush.msra.mxu0 %v227
    %1805 = vmatpush.msra.mxu0 %v223
    %1806 = vmatpush.msra.mxu0 %v219
    %1807 = vmatpush.msra.mxu0 %v215
    %1808 = vmatpush.msra.mxu0 %v211
    %1809 = vmatpush.msra.mxu0 %v207
    %1810 = vmatmul.f32.gmra.mxu0 %v1726
    %v1811 = vpop.f32.mrf.mxu0
    %v1812 = vadd.f32 0.0, %v1811
    %1813 = vdwg.mxu0
    %v1814 = vadd.f32 %v1730, %v1752
    %v1815 = vadd.f32 %v1731, %v1772
    %v1816 = vadd.f32 %v1732, %v1792
    %v1817 = vadd.f32 %v1733, %v1812
    %v1818 = vxor.u32 %v1814, 2147483648
    %v1819 = vmul.f32 %v1818, 1.442695
    %v1820 = vpow.pop %v1819
    %v1821 = vadd.f32 %v1820, 1.0
    %v1822 = vrcp.pop %v1821
    %v1823 = vmul.f32 %v1821, %v1822
    %v1824 = vsub.f32 1.0, %v1823
    %v1825 = vmul.f32 %v1822, %v1824
    %v1826 = vadd.f32 %v1822, %v1825
    %vm1827 = vweird.f32 %v1821
    %vm1828 = vweird.f32 %v1822
    %vm1829 = vmor %vm1827, %vm1828
    %v1830 = vsel %vm1829, %v1822, %v1826
    %v1831 = vand.u32 2147483647, %v1821
    %vm1832 = vcmp.eq.f32.partialorder %v1831, 8.507059e+37
    %v1833 = vand.u32 %v1821, 2147483648
    %v1834 = vor.u32 1.1754944e-38, %v1833
    %v1835 = vsel %vm1832, %v1834, %v1830
    %v1836 = vmul.f32 1.0, %v1835
    %v1837 = vxor.u32 %v1815, 2147483648
    %v1838 = vmul.f32 %v1837, 1.442695
    %v1839 = vpow.pop %v1838
    %v1840 = vadd.f32 %v1839, 1.0
    %v1841 = vrcp.pop %v1840
    %v1842 = vmul.f32 %v1840, %v1841
    %v1843 = vsub.f32 1.0, %v1842
    %v1844 = vmul.f32 %v1841, %v1843
    %v1845 = vadd.f32 %v1841, %v1844
    %vm1846 = vweird.f32 %v1840
    %vm1847 = vweird.f32 %v1841
    %vm1848 = vmor %vm1846, %vm1847
    %v1849 = vsel %vm1848, %v1841, %v1845
    %v1850 = vand.u32 2147483647, %v1840
    %vm1851 = vcmp.eq.f32.partialorder %v1850, 8.507059e+37
    %v1852 = vand.u32 %v1840, 2147483648
    %v1853 = vor.u32 1.1754944e-38, %v1852
    %v1854 = vsel %vm1851, %v1853, %v1849
    %v1855 = vmul.f32 1.0, %v1854
    %v1856 = vtanh.pop %v1816
    %v1857 = vxor.u32 %v1817, 2147483648
    %v1858 = vmul.f32 %v1857, 1.442695
    %v1859 = vpow.pop %v1858
    %v1860 = vadd.f32 %v1859, 1.0
    %v1861 = vrcp.pop %v1860
    %v1862 = vmul.f32 %v1860, %v1861
    %v1863 = vsub.f32 1.0, %v1862
    %v1864 = vmul.f32 %v1861, %v1863
    %v1865 = vadd.f32 %v1861, %v1864
    %vm1866 = vweird.f32 %v1860
    %vm1867 = vweird.f32 %v1861
    %vm1868 = vmor %vm1866, %vm1867
    %v1869 = vsel %vm1868, %v1861, %v1865
    %v1870 = vand.u32 2147483647, %v1860
    %vm1871 = vcmp.eq.f32.partialorder %v1870, 8.507059e+37
    %v1872 = vand.u32 %v1860, 2147483648
    %v1873 = vor.u32 1.1754944e-38, %v1872
    %v1874 = vsel %vm1871, %v1873, %v1869
    %v1875 = vmul.f32 1.0, %v1874
    %v1876 = vmul.f32 %v1855, %v1724
    %v1877 = vmul.f32 %v1836, %v1856
    %v1878 = vadd.f32 %v1876, %v1877
    %v1879 = vtanh.pop %v1878
    %v1880 = vmul.f32 %v1875, %v1879
    %s1881 = scalar_lea.vmem [#allocation2], 64
    %1882 = vst [vmem:[%s1881] sm:$0xff] %v1880
    %v1883 = vld [vmem:[#allocation13] sm:$0xff]
    %v1884 = vld [vmem:[#allocation13 + $0x8] sm:$0xff]
    %v1885 = vld [vmem:[#allocation13 + $0x10] sm:$0xff]
    %v1886 = vld [vmem:[#allocation13 + $0x18] sm:$0xff]
    %v1887 = vld [vmem:[#allocation13 + $0x20] sm:$0xff]
    %v1888 = vld [vmem:[#allocation13 + $0x28] sm:$0xff]
    %v1889 = vld [vmem:[#allocation13 + $0x30] sm:$0xff]
    %v1890 = vld [vmem:[#allocation13 + $0x38] sm:$0xff]
    %v1891 = vld [vmem:[#allocation13 + $0x40] sm:$0xff]
    %v1892 = vld [vmem:[#allocation13 + $0x48] sm:$0xff]
    %v1893 = vld [vmem:[#allocation13 + $0x50] sm:$0xff]
    %v1894 = vld [vmem:[#allocation13 + $0x58] sm:$0xff]
    %v1895 = vld [vmem:[#allocation13 + $0x60] sm:$0xff]
    %v1896 = vld [vmem:[#allocation13 + $0x68] sm:$0xff]
    %v1897 = vld [vmem:[#allocation13 + $0x70] sm:$0xff]
    %v1898 = vld [vmem:[#allocation13 + $0x78] sm:$0xff]
    %v1899 = vld [vmem:[#allocation13 + $0x80] sm:$0xff]
    %v1900 = vld [vmem:[#allocation13 + $0x88] sm:$0xff]
    %v1901 = vld [vmem:[#allocation13 + $0x90] sm:$0xff]
    %v1902 = vld [vmem:[#allocation13 + $0x98] sm:$0xff]
    %v1903 = vld [vmem:[#allocation13 + $0xa0] sm:$0xff]
    %v1904 = vld [vmem:[#allocation13 + $0xa8] sm:$0xff]
    %v1905 = vld [vmem:[#allocation13 + $0xb0] sm:$0xff]
    %v1906 = vld [vmem:[#allocation13 + $0xb8] sm:$0xff]
    %v1907 = vld [vmem:[#allocation13 + $0xc0] sm:$0xff]
    %v1908 = vld [vmem:[#allocation13 + $0xc8] sm:$0xff]
    %v1909 = vld [vmem:[#allocation13 + $0xd0] sm:$0xff]
    %v1910 = vld [vmem:[#allocation13 + $0xd8] sm:$0xff]
    %v1911 = vld [vmem:[#allocation13 + $0xe0] sm:$0xff]
    %v1912 = vld [vmem:[#allocation13 + $0xe8] sm:$0xff]
    %v1913 = vld [vmem:[#allocation13 + $0xf0] sm:$0xff]
    %v1914 = vld [vmem:[#allocation13 + $0xf8] sm:$0xff]
    %v1915 = vld [vmem:[#allocation13 + $0x100] sm:$0xff]
    %v1916 = vld [vmem:[#allocation13 + $0x108] sm:$0xff]
    %v1917 = vld [vmem:[#allocation13 + $0x110] sm:$0xff]
    %v1918 = vld [vmem:[#allocation13 + $0x118] sm:$0xff]
    %v1919 = vld [vmem:[#allocation13 + $0x120] sm:$0xff]
    %v1920 = vld [vmem:[#allocation13 + $0x128] sm:$0xff]
    %v1921 = vld [vmem:[#allocation13 + $0x130] sm:$0xff]
    %v1922 = vld [vmem:[#allocation13 + $0x138] sm:$0xff]
    %v1923 = vld [vmem:[#allocation13 + $0x140] sm:$0xff]
    %v1924 = vld [vmem:[#allocation13 + $0x148] sm:$0xff]
    %v1925 = vld [vmem:[#allocation13 + $0x150] sm:$0xff]
    %v1926 = vld [vmem:[#allocation13 + $0x158] sm:$0xff]
    %v1927 = vld [vmem:[#allocation13 + $0x160] sm:$0xff]
    %v1928 = vld [vmem:[#allocation13 + $0x168] sm:$0xff]
    %v1929 = vld [vmem:[#allocation13 + $0x170] sm:$0xff]
    %v1930 = vld [vmem:[#allocation13 + $0x178] sm:$0xff]
    %v1931 = vld [vmem:[#allocation13 + $0x180] sm:$0xff]
    %v1932 = vld [vmem:[#allocation13 + $0x188] sm:$0xff]
    %v1933 = vld [vmem:[#allocation13 + $0x190] sm:$0xff]
    %v1934 = vld [vmem:[#allocation13 + $0x198] sm:$0xff]
    %v1935 = vld [vmem:[#allocation13 + $0x1a0] sm:$0xff]
    %v1936 = vld [vmem:[#allocation13 + $0x1a8] sm:$0xff]
    %v1937 = vld [vmem:[#allocation13 + $0x1b0] sm:$0xff]
    %v1938 = vld [vmem:[#allocation13 + $0x1b8] sm:$0xff]
    %v1939 = vld [vmem:[#allocation13 + $0x1c0] sm:$0xff]
    %v1940 = vld [vmem:[#allocation13 + $0x1c8] sm:$0xff]
    %v1941 = vld [vmem:[#allocation13 + $0x1d0] sm:$0xff]
    %v1942 = vld [vmem:[#allocation13 + $0x1d8] sm:$0xff]
    %v1943 = vld [vmem:[#allocation13 + $0x1e0] sm:$0xff]
    %v1944 = vld [vmem:[#allocation13 + $0x1e8] sm:$0xff]
    %v1945 = vld [vmem:[#allocation13 + $0x1f0] sm:$0xff]
    %v1946 = vld [vmem:[#allocation13 + $0x1f8] sm:$0xff]
    %v1947 = vld [vmem:[#allocation14] sm:$0xff]
    %v1948 = vld [vmem:[#allocation14 + $0x8] sm:$0xff]
    %v1949 = vld [vmem:[#allocation14 + $0x10] sm:$0xff]
    %v1950 = vld [vmem:[#allocation14 + $0x18] sm:$0xff]
    %v1951 = vld [vmem:[#allocation14 + $0x20] sm:$0xff]
    %v1952 = vld [vmem:[#allocation14 + $0x28] sm:$0xff]
    %v1953 = vld [vmem:[#allocation14 + $0x30] sm:$0xff]
    %v1954 = vld [vmem:[#allocation14 + $0x38] sm:$0xff]
    %v1955 = vld [vmem:[#allocation14 + $0x40] sm:$0xff]
    %v1956 = vld [vmem:[#allocation14 + $0x48] sm:$0xff]
    %v1957 = vld [vmem:[#allocation14 + $0x50] sm:$0xff]
    %v1958 = vld [vmem:[#allocation14 + $0x58] sm:$0xff]
    %v1959 = vld [vmem:[#allocation14 + $0x60] sm:$0xff]
    %v1960 = vld [vmem:[#allocation14 + $0x68] sm:$0xff]
    %v1961 = vld [vmem:[#allocation14 + $0x70] sm:$0xff]
    %v1962 = vld [vmem:[#allocation14 + $0x78] sm:$0xff]
    %v1963 = vld [vmem:[#allocation14 + $0x80] sm:$0xff]
    %v1964 = vld [vmem:[#allocation14 + $0x88] sm:$0xff]
    %v1965 = vld [vmem:[#allocation14 + $0x90] sm:$0xff]
    %v1966 = vld [vmem:[#allocation14 + $0x98] sm:$0xff]
    %v1967 = vld [vmem:[#allocation14 + $0xa0] sm:$0xff]
    %v1968 = vld [vmem:[#allocation14 + $0xa8] sm:$0xff]
    %v1969 = vld [vmem:[#allocation14 + $0xb0] sm:$0xff]
    %v1970 = vld [vmem:[#allocation14 + $0xb8] sm:$0xff]
    %v1971 = vld [vmem:[#allocation14 + $0xc0] sm:$0xff]
    %v1972 = vld [vmem:[#allocation14 + $0xc8] sm:$0xff]
    %v1973 = vld [vmem:[#allocation14 + $0xd0] sm:$0xff]
    %v1974 = vld [vmem:[#allocation14 + $0xd8] sm:$0xff]
    %v1975 = vld [vmem:[#allocation14 + $0xe0] sm:$0xff]
    %v1976 = vld [vmem:[#allocation14 + $0xe8] sm:$0xff]
    %v1977 = vld [vmem:[#allocation14 + $0xf0] sm:$0xff]
    %v1978 = vld [vmem:[#allocation14 + $0xf8] sm:$0xff]
    %v1979 = vld [vmem:[#allocation14 + $0x100] sm:$0xff]
    %v1980 = vld [vmem:[#allocation14 + $0x108] sm:$0xff]
    %v1981 = vld [vmem:[#allocation14 + $0x110] sm:$0xff]
    %v1982 = vld [vmem:[#allocation14 + $0x118] sm:$0xff]
    %v1983 = vld [vmem:[#allocation14 + $0x120] sm:$0xff]
    %v1984 = vld [vmem:[#allocation14 + $0x128] sm:$0xff]
    %v1985 = vld [vmem:[#allocation14 + $0x130] sm:$0xff]
    %v1986 = vld [vmem:[#allocation14 + $0x138] sm:$0xff]
    %v1987 = vld [vmem:[#allocation14 + $0x140] sm:$0xff]
    %v1988 = vld [vmem:[#allocation14 + $0x148] sm:$0xff]
    %v1989 = vld [vmem:[#allocation14 + $0x150] sm:$0xff]
    %v1990 = vld [vmem:[#allocation14 + $0x158] sm:$0xff]
    %v1991 = vld [vmem:[#allocation14 + $0x160] sm:$0xff]
    %v1992 = vld [vmem:[#allocation14 + $0x168] sm:$0xff]
    %v1993 = vld [vmem:[#allocation14 + $0x170] sm:$0xff]
    %v1994 = vld [vmem:[#allocation14 + $0x178] sm:$0xff]
    %v1995 = vld [vmem:[#allocation14 + $0x180] sm:$0xff]
    %v1996 = vld [vmem:[#allocation14 + $0x188] sm:$0xff]
    %v1997 = vld [vmem:[#allocation14 + $0x190] sm:$0xff]
    %v1998 = vld [vmem:[#allocation14 + $0x198] sm:$0xff]
    %v1999 = vld [vmem:[#allocation14 + $0x1a0] sm:$0xff]
    %v2000 = vld [vmem:[#allocation14 + $0x1a8] sm:$0xff]
    %v2001 = vld [vmem:[#allocation14 + $0x1b0] sm:$0xff]
    %v2002 = vld [vmem:[#allocation14 + $0x1b8] sm:$0xff]
    %v2003 = vld [vmem:[#allocation14 + $0x1c0] sm:$0xff]
    %v2004 = vld [vmem:[#allocation14 + $0x1c8] sm:$0xff]
    %v2005 = vld [vmem:[#allocation14 + $0x1d0] sm:$0xff]
    %v2006 = vld [vmem:[#allocation14 + $0x1d8] sm:$0xff]
    %v2007 = vld [vmem:[#allocation14 + $0x1e0] sm:$0xff]
    %v2008 = vld [vmem:[#allocation14 + $0x1e8] sm:$0xff]
    %v2009 = vld [vmem:[#allocation14 + $0x1f0] sm:$0xff]
    %v2010 = vld [vmem:[#allocation14 + $0x1f8] sm:$0xff]
    %v2011 = vld [vmem:[%s6] sm:$0xf]
    %v2012 = vld [vmem:[#allocation2] sm:$0xff]
    %v2013 = vld [vmem:[#allocation2 + $0x8] sm:$0xff]
    %v2014 = vld [vmem:[#allocation2 + $0x10] sm:$0xff]
    %v2015 = vld [vmem:[#allocation2 + $0x18] sm:$0xff]
    %v2016 = vld [vmem:[#allocation2 + $0x20] sm:$0xff]
    %v2017 = vld [vmem:[#allocation2 + $0x28] sm:$0xff]
    %v2018 = vld [vmem:[#allocation2 + $0x30] sm:$0xff]
    %v2019 = vld [vmem:[#allocation2 + $0x38] sm:$0xff]
    %v2020 = vld [vmem:[#allocation2 + $0x40] sm:$0xff]
    %v2022 = vperm.slane %v2011, 0
    %v2023 = vperm.slane %v2011, 1
    %v2024 = vperm.slane %v2011, 2
    %v2025 = vperm.slane %v2011, 3
    %2030 = vmatpush.msra.mxu0 %v1943
    %2031 = vmatpush.msra.mxu0 %v1939
    %2032 = vmatpush.msra.mxu0 %v1935
    %2033 = vmatpush.msra.mxu0 %v1931
    %2034 = vmatpush.msra.mxu0 %v1927
    %2035 = vmatpush.msra.mxu0 %v1923
    %2036 = vmatpush.msra.mxu0 %v1919
    %2037 = vmatpush.msra.mxu0 %v1915
    %2038 = vmatpush.msra.mxu0 %v1911
    %2039 = vmatpush.msra.mxu0 %v1907
    %2040 = vmatpush.msra.mxu0 %v1903
    %2041 = vmatpush.msra.mxu0 %v1899
    %2042 = vmatpush.msra.mxu0 %v1895
    %2043 = vmatpush.msra.mxu0 %v1891
    %2044 = vmatpush.msra.mxu0 %v1887
    %2045 = vmatpush.msra.mxu0 %v1883
    %2046 = vmatmul.f32.gmra.mxu0 %v2012
    %v2047 = vpop.f32.mrf.mxu0
    %v2048 = vadd.f32 %v2022, %v2047
    %2049 = vmatmul.f32.gmra.mxu0 %v2013
    %v2050 = vpop.f32.mrf.mxu0
    %v2051 = vadd.f32 %v2022, %v2050
    %2052 = vmatmul.f32.gmra.mxu0 %v2014
    %v2053 = vpop.f32.mrf.mxu0
    %v2054 = vadd.f32 %v2022, %v2053
    %2055 = vmatmul.f32.gmra.mxu0 %v2015
    %v2056 = vpop.f32.mrf.mxu0
    %v2057 = vadd.f32 %v2022, %v2056
    %2058 = vmatmul.f32.gmra.mxu0 %v2016
    %v2059 = vpop.f32.mrf.mxu0
    %v2060 = vadd.f32 %v2022, %v2059
    %2061 = vmatmul.f32.gmra.mxu0 %v2017
    %v2062 = vpop.f32.mrf.mxu0
    %v2063 = vadd.f32 %v2022, %v2062
    %2064 = vmatmul.f32.gmra.mxu0 %v2018
    %v2065 = vpop.f32.mrf.mxu0
    %v2066 = vadd.f32 %v2022, %v2065
    %2067 = vmatmul.f32.gmra.mxu0 %v2019
    %v2068 = vpop.f32.mrf.mxu0
    %v2069 = vadd.f32 %v2022, %v2068
    %2070 = vmatmul.f32.gmra.mxu0 %v2020
    %v2071 = vpop.f32.mrf.mxu0
    %v2072 = vadd.f32 %v2022, %v2071
    %2073 = vdwg.mxu0
    %2074 = vmatpush.msra.mxu0 %v1944
    %2075 = vmatpush.msra.mxu0 %v1940
    %2076 = vmatpush.msra.mxu0 %v1936
    %2077 = vmatpush.msra.mxu0 %v1932
    %2078 = vmatpush.msra.mxu0 %v1928
    %2079 = vmatpush.msra.mxu0 %v1924
    %2080 = vmatpush.msra.mxu0 %v1920
    %2081 = vmatpush.msra.mxu0 %v1916
    %2082 = vmatpush.msra.mxu0 %v1912
    %2083 = vmatpush.msra.mxu0 %v1908
    %2084 = vmatpush.msra.mxu0 %v1904
    %2085 = vmatpush.msra.mxu0 %v1900
    %2086 = vmatpush.msra.mxu0 %v1896
    %2087 = vmatpush.msra.mxu0 %v1892
    %2088 = vmatpush.msra.mxu0 %v1888
    %2089 = vmatpush.msra.mxu0 %v1884
    %2090 = vmatmul.f32.gmra.mxu0 %v2012
    %v2091 = vpop.f32.mrf.mxu0
    %v2092 = vadd.f32 %v2023, %v2091
    %2093 = vmatmul.f32.gmra.mxu0 %v2013
    %v2094 = vpop.f32.mrf.mxu0
    %v2095 = vadd.f32 %v2023, %v2094
    %2096 = vmatmul.f32.gmra.mxu0 %v2014
    %v2097 = vpop.f32.mrf.mxu0
    %v2098 = vadd.f32 %v2023, %v2097
    %2099 = vmatmul.f32.gmra.mxu0 %v2015
    %v2100 = vpop.f32.mrf.mxu0
    %v2101 = vadd.f32 %v2023, %v2100
    %2102 = vmatmul.f32.gmra.mxu0 %v2016
    %v2103 = vpop.f32.mrf.mxu0
    %v2104 = vadd.f32 %v2023, %v2103
    %2105 = vmatmul.f32.gmra.mxu0 %v2017
    %v2106 = vpop.f32.mrf.mxu0
    %v2107 = vadd.f32 %v2023, %v2106
    %2108 = vmatmul.f32.gmra.mxu0 %v2018
    %v2109 = vpop.f32.mrf.mxu0
    %v2110 = vadd.f32 %v2023, %v2109
    %2111 = vmatmul.f32.gmra.mxu0 %v2019
    %v2112 = vpop.f32.mrf.mxu0
    %v2113 = vadd.f32 %v2023, %v2112
    %2114 = vmatmul.f32.gmra.mxu0 %v2020
    %v2115 = vpop.f32.mrf.mxu0
    %v2116 = vadd.f32 %v2023, %v2115
    %2117 = vdwg.mxu0
    %2118 = vmatpush.msra.mxu0 %v1945
    %2119 = vmatpush.msra.mxu0 %v1941
    %2120 = vmatpush.msra.mxu0 %v1937
    %2121 = vmatpush.msra.mxu0 %v1933
    %2122 = vmatpush.msra.mxu0 %v1929
    %2123 = vmatpush.msra.mxu0 %v1925
    %2124 = vmatpush.msra.mxu0 %v1921
    %2125 = vmatpush.msra.mxu0 %v1917
    %2126 = vmatpush.msra.mxu0 %v1913
    %2127 = vmatpush.msra.mxu0 %v1909
    %2128 = vmatpush.msra.mxu0 %v1905
    %2129 = vmatpush.msra.mxu0 %v1901
    %2130 = vmatpush.msra.mxu0 %v1897
    %2131 = vmatpush.msra.mxu0 %v1893
    %2132 = vmatpush.msra.mxu0 %v1889
    %2133 = vmatpush.msra.mxu0 %v1885
    %2134 = vmatmul.f32.gmra.mxu0 %v2012
    %v2135 = vpop.f32.mrf.mxu0
    %v2136 = vadd.f32 %v2024, %v2135
    %2137 = vmatmul.f32.gmra.mxu0 %v2013
    %v2138 = vpop.f32.mrf.mxu0
    %v2139 = vadd.f32 %v2024, %v2138
    %2140 = vmatmul.f32.gmra.mxu0 %v2014
    %v2141 = vpop.f32.mrf.mxu0
    %v2142 = vadd.f32 %v2024, %v2141
    %2143 = vmatmul.f32.gmra.mxu0 %v2015
    %v2144 = vpop.f32.mrf.mxu0
    %v2145 = vadd.f32 %v2024, %v2144
    %2146 = vmatmul.f32.gmra.mxu0 %v2016
    %v2147 = vpop.f32.mrf.mxu0
    %v2148 = vadd.f32 %v2024, %v2147
    %2149 = vmatmul.f32.gmra.mxu0 %v2017
    %v2150 = vpop.f32.mrf.mxu0
    %v2151 = vadd.f32 %v2024, %v2150
    %2152 = vmatmul.f32.gmra.mxu0 %v2018
    %v2153 = vpop.f32.mrf.mxu0
    %v2154 = vadd.f32 %v2024, %v2153
    %2155 = vmatmul.f32.gmra.mxu0 %v2019
    %v2156 = vpop.f32.mrf.mxu0
    %v2157 = vadd.f32 %v2024, %v2156
    %2158 = vmatmul.f32.gmra.mxu0 %v2020
    %v2159 = vpop.f32.mrf.mxu0
    %v2160 = vadd.f32 %v2024, %v2159
    %2161 = vdwg.mxu0
    %2162 = vmatpush.msra.mxu0 %v1946
    %2163 = vmatpush.msra.mxu0 %v1942
    %2164 = vmatpush.msra.mxu0 %v1938
    %2165 = vmatpush.msra.mxu0 %v1934
    %2166 = vmatpush.msra.mxu0 %v1930
    %2167 = vmatpush.msra.mxu0 %v1926
    %2168 = vmatpush.msra.mxu0 %v1922
    %2169 = vmatpush.msra.mxu0 %v1918
    %2170 = vmatpush.msra.mxu0 %v1914
    %2171 = vmatpush.msra.mxu0 %v1910
    %2172 = vmatpush.msra.mxu0 %v1906
    %2173 = vmatpush.msra.mxu0 %v1902
    %2174 = vmatpush.msra.mxu0 %v1898
    %2175 = vmatpush.msra.mxu0 %v1894
    %2176 = vmatpush.msra.mxu0 %v1890
    %2177 = vmatpush.msra.mxu0 %v1886
    %2178 = vmatmul.f32.gmra.mxu0 %v2012
    %v2179 = vpop.f32.mrf.mxu0
    %v2180 = vadd.f32 %v2025, %v2179
    %2181 = vmatmul.f32.gmra.mxu0 %v2013
    %v2182 = vpop.f32.mrf.mxu0
    %v2183 = vadd.f32 %v2025, %v2182
    %2184 = vmatmul.f32.gmra.mxu0 %v2014
    %v2185 = vpop.f32.mrf.mxu0
    %v2186 = vadd.f32 %v2025, %v2185
    %2187 = vmatmul.f32.gmra.mxu0 %v2015
    %v2188 = vpop.f32.mrf.mxu0
    %v2189 = vadd.f32 %v2025, %v2188
    %2190 = vmatmul.f32.gmra.mxu0 %v2016
    %v2191 = vpop.f32.mrf.mxu0
    %v2192 = vadd.f32 %v2025, %v2191
    %2193 = vmatmul.f32.gmra.mxu0 %v2017
    %v2194 = vpop.f32.mrf.mxu0
    %v2195 = vadd.f32 %v2025, %v2194
    %2196 = vmatmul.f32.gmra.mxu0 %v2018
    %v2197 = vpop.f32.mrf.mxu0
    %v2198 = vadd.f32 %v2025, %v2197
    %2199 = vmatmul.f32.gmra.mxu0 %v2019
    %v2200 = vpop.f32.mrf.mxu0
    %v2201 = vadd.f32 %v2025, %v2200
    %2202 = vmatmul.f32.gmra.mxu0 %v2020
    %v2203 = vpop.f32.mrf.mxu0
    %v2204 = vadd.f32 %v2025, %v2203
    %2205 = vdwg.mxu0
    %2206 = vst [vmem:[#allocation4] sm:$0xff] %v2048
    %2207 = vst [vmem:[#allocation4 + $0x8] sm:$0xff] %v2092
    %2208 = vst [vmem:[#allocation4 + $0x10] sm:$0xff] %v2136
    %2209 = vst [vmem:[#allocation4 + $0x18] sm:$0xff] %v2180
    %2210 = vst [vmem:[#allocation4 + $0x20] sm:$0xff] %v2051
    %2211 = vst [vmem:[#allocation4 + $0x28] sm:$0xff] %v2095
    %2212 = vst [vmem:[#allocation4 + $0x30] sm:$0xff] %v2139
    %2213 = vst [vmem:[#allocation4 + $0x38] sm:$0xff] %v2183
    %2214 = vst [vmem:[#allocation4 + $0x40] sm:$0xff] %v2054
    %2215 = vst [vmem:[#allocation4 + $0x48] sm:$0xff] %v2098
    %2216 = vst [vmem:[#allocation4 + $0x50] sm:$0xff] %v2142
    %2217 = vst [vmem:[#allocation4 + $0x58] sm:$0xff] %v2186
    %2218 = vst [vmem:[#allocation4 + $0x60] sm:$0xff] %v2057
    %2219 = vst [vmem:[#allocation4 + $0x68] sm:$0xff] %v2101
    %2220 = vst [vmem:[#allocation4 + $0x70] sm:$0xff] %v2145
    %2221 = vst [vmem:[#allocation4 + $0x78] sm:$0xff] %v2189
    %2222 = vst [vmem:[#allocation4 + $0x80] sm:$0xff] %v2060
    %2223 = vst [vmem:[#allocation4 + $0x88] sm:$0xff] %v2104
    %2224 = vst [vmem:[#allocation4 + $0x90] sm:$0xff] %v2148
    %2225 = vst [vmem:[#allocation4 + $0x98] sm:$0xff] %v2192
    %2226 = vst [vmem:[#allocation4 + $0xa0] sm:$0xff] %v2063
    %2227 = vst [vmem:[#allocation4 + $0xa8] sm:$0xff] %v2107
    %2228 = vst [vmem:[#allocation4 + $0xb0] sm:$0xff] %v2151
    %2229 = vst [vmem:[#allocation4 + $0xb8] sm:$0xff] %v2195
    %2230 = vst [vmem:[#allocation4 + $0xc0] sm:$0xff] %v2066
    %2231 = vst [vmem:[#allocation4 + $0xc8] sm:$0xff] %v2110
    %2232 = vst [vmem:[#allocation4 + $0xd0] sm:$0xff] %v2154
    %2233 = vst [vmem:[#allocation4 + $0xd8] sm:$0xff] %v2198
    %2234 = vst [vmem:[#allocation4 + $0xe0] sm:$0xff] %v2069
    %2235 = vst [vmem:[#allocation4 + $0xe8] sm:$0xff] %v2113
    %2236 = vst [vmem:[#allocation4 + $0xf0] sm:$0xff] %v2157
    %2237 = vst [vmem:[#allocation4 + $0xf8] sm:$0xff] %v2201
    %2238 = vst [vmem:[#allocation4 + $0x100] sm:$0xff] %v2072
    %2239 = vst [vmem:[#allocation4 + $0x108] sm:$0xff] %v2116
    %2240 = vst [vmem:[#allocation4 + $0x110] sm:$0xff] %v2160
    %2241 = vst [vmem:[#allocation4 + $0x118] sm:$0xff] %v2204
    %v2242 = vld [vmem:[#allocation4] sm:$0xff]
    %v2243 = vld [vmem:[#allocation4 + $0x8] sm:$0xff]
    %v2244 = vld [vmem:[#allocation4 + $0x10] sm:$0xff]
    %v2245 = vld [vmem:[#allocation4 + $0x18] sm:$0xff]
    %2246 = vmatpush.msra.mxu0 %v2007
    %2247 = vmatpush.msra.mxu0 %v2003
    %2248 = vmatpush.msra.mxu0 %v1999
    %2249 = vmatpush.msra.mxu0 %v1995
    %2250 = vmatpush.msra.mxu0 %v1991
    %2251 = vmatpush.msra.mxu0 %v1987
    %2252 = vmatpush.msra.mxu0 %v1983
    %2253 = vmatpush.msra.mxu0 %v1979
    %2254 = vmatpush.msra.mxu0 %v1975
    %2255 = vmatpush.msra.mxu0 %v1971
    %2256 = vmatpush.msra.mxu0 %v1967
    %2257 = vmatpush.msra.mxu0 %v1963
    %2258 = vmatpush.msra.mxu0 %v1959
    %2259 = vmatpush.msra.mxu0 %v1955
    %2260 = vmatpush.msra.mxu0 %v1951
    %2261 = vmatpush.msra.mxu0 %v1947
    %2262 = vmatmul.f32.gmra.mxu0 0.0
    %v2263 = vpop.f32.mrf.mxu0
    %v2264 = vadd.f32 0.0, %v2263
    %2265 = vdwg.mxu0
    %2266 = vmatpush.msra.mxu0 %v2008
    %2267 = vmatpush.msra.mxu0 %v2004
    %2268 = vmatpush.msra.mxu0 %v2000
    %2269 = vmatpush.msra.mxu0 %v1996
    %2270 = vmatpush.msra.mxu0 %v1992
    %2271 = vmatpush.msra.mxu0 %v1988
    %2272 = vmatpush.msra.mxu0 %v1984
    %2273 = vmatpush.msra.mxu0 %v1980
    %2274 = vmatpush.msra.mxu0 %v1976
    %2275 = vmatpush.msra.mxu0 %v1972
    %2276 = vmatpush.msra.mxu0 %v1968
    %2277 = vmatpush.msra.mxu0 %v1964
    %2278 = vmatpush.msra.mxu0 %v1960
    %2279 = vmatpush.msra.mxu0 %v1956
    %2280 = vmatpush.msra.mxu0 %v1952
    %2281 = vmatpush.msra.mxu0 %v1948
    %2282 = vmatmul.f32.gmra.mxu0 0.0
    %v2283 = vpop.f32.mrf.mxu0
    %v2284 = vadd.f32 0.0, %v2283
    %2285 = vdwg.mxu0
    %2286 = vmatpush.msra.mxu0 %v2009
    %2287 = vmatpush.msra.mxu0 %v2005
    %2288 = vmatpush.msra.mxu0 %v2001
    %2289 = vmatpush.msra.mxu0 %v1997
    %2290 = vmatpush.msra.mxu0 %v1993
    %2291 = vmatpush.msra.mxu0 %v1989
    %2292 = vmatpush.msra.mxu0 %v1985
    %2293 = vmatpush.msra.mxu0 %v1981
    %2294 = vmatpush.msra.mxu0 %v1977
    %2295 = vmatpush.msra.mxu0 %v1973
    %2296 = vmatpush.msra.mxu0 %v1969
    %2297 = vmatpush.msra.mxu0 %v1965
    %2298 = vmatpush.msra.mxu0 %v1961
    %2299 = vmatpush.msra.mxu0 %v1957
    %2300 = vmatpush.msra.mxu0 %v1953
    %2301 = vmatpush.msra.mxu0 %v1949
    %2302 = vmatmul.f32.gmra.mxu0 0.0
    %v2303 = vpop.f32.mrf.mxu0
    %v2304 = vadd.f32 0.0, %v2303
    %2305 = vdwg.mxu0
    %2306 = vmatpush.msra.mxu0 %v2010
    %2307 = vmatpush.msra.mxu0 %v2006
    %2308 = vmatpush.msra.mxu0 %v2002
    %2309 = vmatpush.msra.mxu0 %v1998
    %2310 = vmatpush.msra.mxu0 %v1994
    %2311 = vmatpush.msra.mxu0 %v1990
    %2312 = vmatpush.msra.mxu0 %v1986
    %2313 = vmatpush.msra.mxu0 %v1982
    %2314 = vmatpush.msra.mxu0 %v1978
    %2315 = vmatpush.msra.mxu0 %v1974
    %2316 = vmatpush.msra.mxu0 %v1970
    %2317 = vmatpush.msra.mxu0 %v1966
    %2318 = vmatpush.msra.mxu0 %v1962
    %2319 = vmatpush.msra.mxu0 %v1958
    %2320 = vmatpush.msra.mxu0 %v1954
    %2321 = vmatpush.msra.mxu0 %v1950
    %2322 = vmatmul.f32.gmra.mxu0 0.0
    %v2323 = vpop.f32.mrf.mxu0
    %v2324 = vadd.f32 0.0, %v2323
    %2325 = vdwg.mxu0
    %v2326 = vadd.f32 %v2242, %v2264
    %v2327 = vadd.f32 %v2243, %v2284
    %v2328 = vadd.f32 %v2244, %v2304
    %v2329 = vadd.f32 %v2245, %v2324
    %v2330 = vxor.u32 %v2326, 2147483648
    %v2331 = vmul.f32 %v2330, 1.442695
    %v2332 = vpow.pop %v2331
    %v2333 = vadd.f32 %v2332, 1.0
    %v2334 = vrcp.pop %v2333
    %v2335 = vmul.f32 %v2333, %v2334
    %v2336 = vsub.f32 1.0, %v2335
    %v2337 = vmul.f32 %v2334, %v2336
    %v2338 = vadd.f32 %v2334, %v2337
    %vm2339 = vweird.f32 %v2333
    %vm2340 = vweird.f32 %v2334
    %vm2341 = vmor %vm2339, %vm2340
    %v2342 = vsel %vm2341, %v2334, %v2338
    %v2343 = vand.u32 2147483647, %v2333
    %vm2344 = vcmp.eq.f32.partialorder %v2343, 8.507059e+37
    %v2345 = vand.u32 %v2333, 2147483648
    %v2346 = vor.u32 1.1754944e-38, %v2345
    %v2347 = vsel %vm2344, %v2346, %v2342
    %v2348 = vmul.f32 1.0, %v2347
    %v2349 = vxor.u32 %v2327, 2147483648
    %v2350 = vmul.f32 %v2349, 1.442695
    %v2351 = vpow.pop %v2350
    %v2352 = vadd.f32 %v2351, 1.0
    %v2353 = vrcp.pop %v2352
    %v2354 = vmul.f32 %v2352, %v2353
    %v2355 = vsub.f32 1.0, %v2354
    %v2356 = vmul.f32 %v2353, %v2355
    %v2357 = vadd.f32 %v2353, %v2356
    %vm2358 = vweird.f32 %v2352
    %vm2359 = vweird.f32 %v2353
    %vm2360 = vmor %vm2358, %vm2359
    %v2361 = vsel %vm2360, %v2353, %v2357
    %v2362 = vand.u32 2147483647, %v2352
    %vm2363 = vcmp.eq.f32.partialorder %v2362, 8.507059e+37
    %v2364 = vand.u32 %v2352, 2147483648
    %v2365 = vor.u32 1.1754944e-38, %v2364
    %v2366 = vsel %vm2363, %v2365, %v2361
    %v2367 = vmul.f32 1.0, %v2366
    %v2368 = vtanh.pop %v2328
    %v2369 = vxor.u32 %v2329, 2147483648
    %v2370 = vmul.f32 %v2369, 1.442695
    %v2371 = vpow.pop %v2370
    %v2372 = vadd.f32 %v2371, 1.0
    %v2373 = vrcp.pop %v2372
    %v2374 = vmul.f32 %v2372, %v2373
    %v2375 = vsub.f32 1.0, %v2374
    %v2376 = vmul.f32 %v2373, %v2375
    %v2377 = vadd.f32 %v2373, %v2376
    %vm2378 = vweird.f32 %v2372
    %vm2379 = vweird.f32 %v2373
    %vm2380 = vmor %vm2378, %vm2379
    %v2381 = vsel %vm2380, %v2373, %v2377
    %v2382 = vand.u32 2147483647, %v2372
    %vm2383 = vcmp.eq.f32.partialorder %v2382, 8.507059e+37
    %v2384 = vand.u32 %v2372, 2147483648
    %v2385 = vor.u32 1.1754944e-38, %v2384
    %v2386 = vsel %vm2383, %v2385, %v2381
    %v2387 = vmul.f32 1.0, %v2386
    %v2388 = vmul.f32 %v2367, 0.0
    %v2389 = vmul.f32 %v2348, %v2368
    %v2390 = vadd.f32 %v2388, %v2389
    %v2391 = vtanh.pop %v2390
    %v2392 = vmul.f32 %v2387, %v2391
    %2393 = vst [vmem:[#allocation3] sm:$0xff] %v2392
    %v2394 = vld [vmem:[%s651] sm:$0xff]
    %v2395 = vld [vmem:[%s651 + $0x8] sm:$0xff]
    %v2396 = vld [vmem:[%s651 + $0x10] sm:$0xff]
    %v2397 = vld [vmem:[%s651 + $0x18] sm:$0xff]
    %2398 = vmatpush.msra.mxu0 %v2007
    %2399 = vmatpush.msra.mxu0 %v2003
    %2400 = vmatpush.msra.mxu0 %v1999
    %2401 = vmatpush.msra.mxu0 %v1995
    %2402 = vmatpush.msra.mxu0 %v1991
    %2403 = vmatpush.msra.mxu0 %v1987
    %2404 = vmatpush.msra.mxu0 %v1983
    %2405 = vmatpush.msra.mxu0 %v1979
    %2406 = vmatpush.msra.mxu0 %v1975
    %2407 = vmatpush.msra.mxu0 %v1971
    %2408 = vmatpush.msra.mxu0 %v1967
    %2409 = vmatpush.msra.mxu0 %v1963
    %2410 = vmatpush.msra.mxu0 %v1959
    %2411 = vmatpush.msra.mxu0 %v1955
    %2412 = vmatpush.msra.mxu0 %v1951
    %2413 = vmatpush.msra.mxu0 %v1947
    %2414 = vmatmul.f32.gmra.mxu0 %v2392
    %v2415 = vpop.f32.mrf.mxu0
    %v2416 = vadd.f32 0.0, %v2415
    %2417 = vdwg.mxu0
    %2418 = vmatpush.msra.mxu0 %v2008
    %2419 = vmatpush.msra.mxu0 %v2004
    %2420 = vmatpush.msra.mxu0 %v2000
    %2421 = vmatpush.msra.mxu0 %v1996
    %2422 = vmatpush.msra.mxu0 %v1992
    %2423 = vmatpush.msra.mxu0 %v1988
    %2424 = vmatpush.msra.mxu0 %v1984
    %2425 = vmatpush.msra.mxu0 %v1980
    %2426 = vmatpush.msra.mxu0 %v1976
    %2427 = vmatpush.msra.mxu0 %v1972
    %2428 = vmatpush.msra.mxu0 %v1968
    %2429 = vmatpush.msra.mxu0 %v1964
    %2430 = vmatpush.msra.mxu0 %v1960
    %2431 = vmatpush.msra.mxu0 %v1956
    %2432 = vmatpush.msra.mxu0 %v1952
    %2433 = vmatpush.msra.mxu0 %v1948
    %2434 = vmatmul.f32.gmra.mxu0 %v2392
    %v2435 = vpop.f32.mrf.mxu0
    %v2436 = vadd.f32 0.0, %v2435
    %2437 = vdwg.mxu0
    %2438 = vmatpush.msra.mxu0 %v2009
    %2439 = vmatpush.msra.mxu0 %v2005
    %2440 = vmatpush.msra.mxu0 %v2001
    %2441 = vmatpush.msra.mxu0 %v1997
    %2442 = vmatpush.msra.mxu0 %v1993
    %2443 = vmatpush.msra.mxu0 %v1989
    %2444 = vmatpush.msra.mxu0 %v1985
    %2445 = vmatpush.msra.mxu0 %v1981
    %2446 = vmatpush.msra.mxu0 %v1977
    %2447 = vmatpush.msra.mxu0 %v1973
    %2448 = vmatpush.msra.mxu0 %v1969
    %2449 = vmatpush.msra.mxu0 %v1965
    %2450 = vmatpush.msra.mxu0 %v1961
    %2451 = vmatpush.msra.mxu0 %v1957
    %2452 = vmatpush.msra.mxu0 %v1953
    %2453 = vmatpush.msra.mxu0 %v1949
    %2454 = vmatmul.f32.gmra.mxu0 %v2392
    %v2455 = vpop.f32.mrf.mxu0
    %v2456 = vadd.f32 0.0, %v2455
    %2457 = vdwg.mxu0
    %2458 = vmatpush.msra.mxu0 %v2010
    %2459 = vmatpush.msra.mxu0 %v2006
    %2460 = vmatpush.msra.mxu0 %v2002
    %2461 = vmatpush.msra.mxu0 %v1998
    %2462 = vmatpush.msra.mxu0 %v1994
    %2463 = vmatpush.msra.mxu0 %v1990
    %2464 = vmatpush.msra.mxu0 %v1986
    %2465 = vmatpush.msra.mxu0 %v1982
    %2466 = vmatpush.msra.mxu0 %v1978
    %2467 = vmatpush.msra.mxu0 %v1974
    %2468 = vmatpush.msra.mxu0 %v1970
    %2469 = vmatpush.msra.mxu0 %v1966
    %2470 = vmatpush.msra.mxu0 %v1962
    %2471 = vmatpush.msra.mxu0 %v1958
    %2472 = vmatpush.msra.mxu0 %v1954
    %2473 = vmatpush.msra.mxu0 %v1950
    %2474 = vmatmul.f32.gmra.mxu0 %v2392
    %v2475 = vpop.f32.mrf.mxu0
    %v2476 = vadd.f32 0.0, %v2475
    %2477 = vdwg.mxu0
    %v2478 = vadd.f32 %v2394, %v2416
    %v2479 = vadd.f32 %v2395, %v2436
    %v2480 = vadd.f32 %v2396, %v2456
    %v2481 = vadd.f32 %v2397, %v2476
    %v2482 = vxor.u32 %v2478, 2147483648
    %v2483 = vmul.f32 %v2482, 1.442695
    %v2484 = vpow.pop %v2483
    %v2485 = vadd.f32 %v2484, 1.0
    %v2486 = vrcp.pop %v2485
    %v2487 = vmul.f32 %v2485, %v2486
    %v2488 = vsub.f32 1.0, %v2487
    %v2489 = vmul.f32 %v2486, %v2488
    %v2490 = vadd.f32 %v2486, %v2489
    %vm2491 = vweird.f32 %v2485
    %vm2492 = vweird.f32 %v2486
    %vm2493 = vmor %vm2491, %vm2492
    %v2494 = vsel %vm2493, %v2486, %v2490
    %v2495 = vand.u32 2147483647, %v2485
    %vm2496 = vcmp.eq.f32.partialorder %v2495, 8.507059e+37
    %v2497 = vand.u32 %v2485, 2147483648
    %v2498 = vor.u32 1.1754944e-38, %v2497
    %v2499 = vsel %vm2496, %v2498, %v2494
    %v2500 = vmul.f32 1.0, %v2499
    %v2501 = vxor.u32 %v2479, 2147483648
    %v2502 = vmul.f32 %v2501, 1.442695
    %v2503 = vpow.pop %v2502
    %v2504 = vadd.f32 %v2503, 1.0
    %v2505 = vrcp.pop %v2504
    %v2506 = vmul.f32 %v2504, %v2505
    %v2507 = vsub.f32 1.0, %v2506
    %v2508 = vmul.f32 %v2505, %v2507
    %v2509 = vadd.f32 %v2505, %v2508
    %vm2510 = vweird.f32 %v2504
    %vm2511 = vweird.f32 %v2505
    %vm2512 = vmor %vm2510, %vm2511
    %v2513 = vsel %vm2512, %v2505, %v2509
    %v2514 = vand.u32 2147483647, %v2504
    %vm2515 = vcmp.eq.f32.partialorder %v2514, 8.507059e+37
    %v2516 = vand.u32 %v2504, 2147483648
    %v2517 = vor.u32 1.1754944e-38, %v2516
    %v2518 = vsel %vm2515, %v2517, %v2513
    %v2519 = vmul.f32 1.0, %v2518
    %v2520 = vtanh.pop %v2480
    %v2521 = vxor.u32 %v2481, 2147483648
    %v2522 = vmul.f32 %v2521, 1.442695
    %v2523 = vpow.pop %v2522
    %v2524 = vadd.f32 %v2523, 1.0
    %v2525 = vrcp.pop %v2524
    %v2526 = vmul.f32 %v2524, %v2525
    %v2527 = vsub.f32 1.0, %v2526
    %v2528 = vmul.f32 %v2525, %v2527
    %v2529 = vadd.f32 %v2525, %v2528
    %vm2530 = vweird.f32 %v2524
    %vm2531 = vweird.f32 %v2525
    %vm2532 = vmor %vm2530, %vm2531
    %v2533 = vsel %vm2532, %v2525, %v2529
    %v2534 = vand.u32 2147483647, %v2524
    %vm2535 = vcmp.eq.f32.partialorder %v2534, 8.507059e+37
    %v2536 = vand.u32 %v2524, 2147483648
    %v2537 = vor.u32 1.1754944e-38, %v2536
    %v2538 = vsel %vm2535, %v2537, %v2533
    %v2539 = vmul.f32 1.0, %v2538
    %v2540 = vmul.f32 %v2519, %v2390
    %v2541 = vmul.f32 %v2500, %v2520
    %v2542 = vadd.f32 %v2540, %v2541
    %v2543 = vtanh.pop %v2542
    %v2544 = vmul.f32 %v2539, %v2543
    %s2545 = scalar_lea.vmem [#allocation3], 8
    %2546 = vst [vmem:[%s2545] sm:$0xff] %v2544
    %v2547 = vld [vmem:[%s805] sm:$0xff]
    %v2548 = vld [vmem:[%s805 + $0x8] sm:$0xff]
    %v2549 = vld [vmem:[%s805 + $0x10] sm:$0xff]
    %v2550 = vld [vmem:[%s805 + $0x18] sm:$0xff]
    %2551 = vmatpush.msra.mxu0 %v2007
    %2552 = vmatpush.msra.mxu0 %v2003
    %2553 = vmatpush.msra.mxu0 %v1999
    %2554 = vmatpush.msra.mxu0 %v1995
    %2555 = vmatpush.msra.mxu0 %v1991
    %2556 = vmatpush.msra.mxu0 %v1987
    %2557 = vmatpush.msra.mxu0 %v1983
    %2558 = vmatpush.msra.mxu0 %v1979
    %2559 = vmatpush.msra.mxu0 %v1975
    %2560 = vmatpush.msra.mxu0 %v1971
    %2561 = vmatpush.msra.mxu0 %v1967
    %2562 = vmatpush.msra.mxu0 %v1963
    %2563 = vmatpush.msra.mxu0 %v1959
    %2564 = vmatpush.msra.mxu0 %v1955
    %2565 = vmatpush.msra.mxu0 %v1951
    %2566 = vmatpush.msra.mxu0 %v1947
    %2567 = vmatmul.f32.gmra.mxu0 %v2544
    %v2568 = vpop.f32.mrf.mxu0
    %v2569 = vadd.f32 0.0, %v2568
    %2570 = vdwg.mxu0
    %2571 = vmatpush.msra.mxu0 %v2008
    %2572 = vmatpush.msra.mxu0 %v2004
    %2573 = vmatpush.msra.mxu0 %v2000
    %2574 = vmatpush.msra.mxu0 %v1996
    %2575 = vmatpush.msra.mxu0 %v1992
    %2576 = vmatpush.msra.mxu0 %v1988
    %2577 = vmatpush.msra.mxu0 %v1984
    %2578 = vmatpush.msra.mxu0 %v1980
    %2579 = vmatpush.msra.mxu0 %v1976
    %2580 = vmatpush.msra.mxu0 %v1972
    %2581 = vmatpush.msra.mxu0 %v1968
    %2582 = vmatpush.msra.mxu0 %v1964
    %2583 = vmatpush.msra.mxu0 %v1960
    %2584 = vmatpush.msra.mxu0 %v1956
    %2585 = vmatpush.msra.mxu0 %v1952
    %2586 = vmatpush.msra.mxu0 %v1948
    %2587 = vmatmul.f32.gmra.mxu0 %v2544
    %v2588 = vpop.f32.mrf.mxu0
    %v2589 = vadd.f32 0.0, %v2588
    %2590 = vdwg.mxu0
    %2591 = vmatpush.msra.mxu0 %v2009
    %2592 = vmatpush.msra.mxu0 %v2005
    %2593 = vmatpush.msra.mxu0 %v2001
    %2594 = vmatpush.msra.mxu0 %v1997
    %2595 = vmatpush.msra.mxu0 %v1993
    %2596 = vmatpush.msra.mxu0 %v1989
    %2597 = vmatpush.msra.mxu0 %v1985
    %2598 = vmatpush.msra.mxu0 %v1981
    %2599 = vmatpush.msra.mxu0 %v1977
    %2600 = vmatpush.msra.mxu0 %v1973
    %2601 = vmatpush.msra.mxu0 %v1969
    %2602 = vmatpush.msra.mxu0 %v1965
    %2603 = vmatpush.msra.mxu0 %v1961
    %2604 = vmatpush.msra.mxu0 %v1957
    %2605 = vmatpush.msra.mxu0 %v1953
    %2606 = vmatpush.msra.mxu0 %v1949
    %2607 = vmatmul.f32.gmra.mxu0 %v2544
    %v2608 = vpop.f32.mrf.mxu0
    %v2609 = vadd.f32 0.0, %v2608
    %2610 = vdwg.mxu0
    %2611 = vmatpush.msra.mxu0 %v2010
    %2612 = vmatpush.msra.mxu0 %v2006
    %2613 = vmatpush.msra.mxu0 %v2002
    %2614 = vmatpush.msra.mxu0 %v1998
    %2615 = vmatpush.msra.mxu0 %v1994
    %2616 = vmatpush.msra.mxu0 %v1990
    %2617 = vmatpush.msra.mxu0 %v1986
    %2618 = vmatpush.msra.mxu0 %v1982
    %2619 = vmatpush.msra.mxu0 %v1978
    %2620 = vmatpush.msra.mxu0 %v1974
    %2621 = vmatpush.msra.mxu0 %v1970
    %2622 = vmatpush.msra.mxu0 %v1966
    %2623 = vmatpush.msra.mxu0 %v1962
    %2624 = vmatpush.msra.mxu0 %v1958
    %2625 = vmatpush.msra.mxu0 %v1954
    %2626 = vmatpush.msra.mxu0 %v1950
    %2627 = vmatmul.f32.gmra.mxu0 %v2544
    %v2628 = vpop.f32.mrf.mxu0
    %v2629 = vadd.f32 0.0, %v2628
    %2630 = vdwg.mxu0
    %v2631 = vadd.f32 %v2547, %v2569
    %v2632 = vadd.f32 %v2548, %v2589
    %v2633 = vadd.f32 %v2549, %v2609
    %v2634 = vadd.f32 %v2550, %v2629
    %v2635 = vxor.u32 %v2631, 2147483648
    %v2636 = vmul.f32 %v2635, 1.442695
    %v2637 = vpow.pop %v2636
    %v2638 = vadd.f32 %v2637, 1.0
    %v2639 = vrcp.pop %v2638
    %v2640 = vmul.f32 %v2638, %v2639
    %v2641 = vsub.f32 1.0, %v2640
    %v2642 = vmul.f32 %v2639, %v2641
    %v2643 = vadd.f32 %v2639, %v2642
    %vm2644 = vweird.f32 %v2638
    %vm2645 = vweird.f32 %v2639
    %vm2646 = vmor %vm2644, %vm2645
    %v2647 = vsel %vm2646, %v2639, %v2643
    %v2648 = vand.u32 2147483647, %v2638
    %vm2649 = vcmp.eq.f32.partialorder %v2648, 8.507059e+37
    %v2650 = vand.u32 %v2638, 2147483648
    %v2651 = vor.u32 1.1754944e-38, %v2650
    %v2652 = vsel %vm2649, %v2651, %v2647
    %v2653 = vmul.f32 1.0, %v2652
    %v2654 = vxor.u32 %v2632, 2147483648
    %v2655 = vmul.f32 %v2654, 1.442695
    %v2656 = vpow.pop %v2655
    %v2657 = vadd.f32 %v2656, 1.0
    %v2658 = vrcp.pop %v2657
    %v2659 = vmul.f32 %v2657, %v2658
    %v2660 = vsub.f32 1.0, %v2659
    %v2661 = vmul.f32 %v2658, %v2660
    %v2662 = vadd.f32 %v2658, %v2661
    %vm2663 = vweird.f32 %v2657
    %vm2664 = vweird.f32 %v2658
    %vm2665 = vmor %vm2663, %vm2664
    %v2666 = vsel %vm2665, %v2658, %v2662
    %v2667 = vand.u32 2147483647, %v2657
    %vm2668 = vcmp.eq.f32.partialorder %v2667, 8.507059e+37
    %v2669 = vand.u32 %v2657, 2147483648
    %v2670 = vor.u32 1.1754944e-38, %v2669
    %v2671 = vsel %vm2668, %v2670, %v2666
    %v2672 = vmul.f32 1.0, %v2671
    %v2673 = vtanh.pop %v2633
    %v2674 = vxor.u32 %v2634, 2147483648
    %v2675 = vmul.f32 %v2674, 1.442695
    %v2676 = vpow.pop %v2675
    %v2677 = vadd.f32 %v2676, 1.0
    %v2678 = vrcp.pop %v2677
    %v2679 = vmul.f32 %v2677, %v2678
    %v2680 = vsub.f32 1.0, %v2679
    %v2681 = vmul.f32 %v2678, %v2680
    %v2682 = vadd.f32 %v2678, %v2681
    %vm2683 = vweird.f32 %v2677
    %vm2684 = vweird.f32 %v2678
    %vm2685 = vmor %vm2683, %vm2684
    %v2686 = vsel %vm2685, %v2678, %v2682
    %v2687 = vand.u32 2147483647, %v2677
    %vm2688 = vcmp.eq.f32.partialorder %v2687, 8.507059e+37
    %v2689 = vand.u32 %v2677, 2147483648
    %v2690 = vor.u32 1.1754944e-38, %v2689
    %v2691 = vsel %vm2688, %v2690, %v2686
    %v2692 = vmul.f32 1.0, %v2691
    %v2693 = vmul.f32 %v2672, %v2542
    %v2694 = vmul.f32 %v2653, %v2673
    %v2695 = vadd.f32 %v2693, %v2694
    %v2696 = vtanh.pop %v2695
    %v2697 = vmul.f32 %v2692, %v2696
    %s2698 = scalar_lea.vmem [#allocation3], 16
    %2699 = vst [vmem:[%s2698] sm:$0xff] %v2697
    %v2700 = vld [vmem:[%s959] sm:$0xff]
    %v2701 = vld [vmem:[%s959 + $0x8] sm:$0xff]
    %v2702 = vld [vmem:[%s959 + $0x10] sm:$0xff]
    %v2703 = vld [vmem:[%s959 + $0x18] sm:$0xff]
    %2704 = vmatpush.msra.mxu0 %v2007
    %2705 = vmatpush.msra.mxu0 %v2003
    %2706 = vmatpush.msra.mxu0 %v1999
    %2707 = vmatpush.msra.mxu0 %v1995
    %2708 = vmatpush.msra.mxu0 %v1991
    %2709 = vmatpush.msra.mxu0 %v1987
    %2710 = vmatpush.msra.mxu0 %v1983
    %2711 = vmatpush.msra.mxu0 %v1979
    %2712 = vmatpush.msra.mxu0 %v1975
    %2713 = vmatpush.msra.mxu0 %v1971
    %2714 = vmatpush.msra.mxu0 %v1967
    %2715 = vmatpush.msra.mxu0 %v1963
    %2716 = vmatpush.msra.mxu0 %v1959
    %2717 = vmatpush.msra.mxu0 %v1955
    %2718 = vmatpush.msra.mxu0 %v1951
    %2719 = vmatpush.msra.mxu0 %v1947
    %2720 = vmatmul.f32.gmra.mxu0 %v2697
    %v2721 = vpop.f32.mrf.mxu0
    %v2722 = vadd.f32 0.0, %v2721
    %2723 = vdwg.mxu0
    %2724 = vmatpush.msra.mxu0 %v2008
    %2725 = vmatpush.msra.mxu0 %v2004
    %2726 = vmatpush.msra.mxu0 %v2000
    %2727 = vmatpush.msra.mxu0 %v1996
    %2728 = vmatpush.msra.mxu0 %v1992
    %2729 = vmatpush.msra.mxu0 %v1988
    %2730 = vmatpush.msra.mxu0 %v1984
    %2731 = vmatpush.msra.mxu0 %v1980
    %2732 = vmatpush.msra.mxu0 %v1976
    %2733 = vmatpush.msra.mxu0 %v1972
    %2734 = vmatpush.msra.mxu0 %v1968
    %2735 = vmatpush.msra.mxu0 %v1964
    %2736 = vmatpush.msra.mxu0 %v1960
    %2737 = vmatpush.msra.mxu0 %v1956
    %2738 = vmatpush.msra.mxu0 %v1952
    %2739 = vmatpush.msra.mxu0 %v1948
    %2740 = vmatmul.f32.gmra.mxu0 %v2697
    %v2741 = vpop.f32.mrf.mxu0
    %v2742 = vadd.f32 0.0, %v2741
    %2743 = vdwg.mxu0
    %2744 = vmatpush.msra.mxu0 %v2009
    %2745 = vmatpush.msra.mxu0 %v2005
    %2746 = vmatpush.msra.mxu0 %v2001
    %2747 = vmatpush.msra.mxu0 %v1997
    %2748 = vmatpush.msra.mxu0 %v1993
    %2749 = vmatpush.msra.mxu0 %v1989
    %2750 = vmatpush.msra.mxu0 %v1985
    %2751 = vmatpush.msra.mxu0 %v1981
    %2752 = vmatpush.msra.mxu0 %v1977
    %2753 = vmatpush.msra.mxu0 %v1973
    %2754 = vmatpush.msra.mxu0 %v1969
    %2755 = vmatpush.msra.mxu0 %v1965
    %2756 = vmatpush.msra.mxu0 %v1961
    %2757 = vmatpush.msra.mxu0 %v1957
    %2758 = vmatpush.msra.mxu0 %v1953
    %2759 = vmatpush.msra.mxu0 %v1949
    %2760 = vmatmul.f32.gmra.mxu0 %v2697
    %v2761 = vpop.f32.mrf.mxu0
    %v2762 = vadd.f32 0.0, %v2761
    %2763 = vdwg.mxu0
    %2764 = vmatpush.msra.mxu0 %v2010
    %2765 = vmatpush.msra.mxu0 %v2006
    %2766 = vmatpush.msra.mxu0 %v2002
    %2767 = vmatpush.msra.mxu0 %v1998
    %2768 = vmatpush.msra.mxu0 %v1994
    %2769 = vmatpush.msra.mxu0 %v1990
    %2770 = vmatpush.msra.mxu0 %v1986
    %2771 = vmatpush.msra.mxu0 %v1982
    %2772 = vmatpush.msra.mxu0 %v1978
    %2773 = vmatpush.msra.mxu0 %v1974
    %2774 = vmatpush.msra.mxu0 %v1970
    %2775 = vmatpush.msra.mxu0 %v1966
    %2776 = vmatpush.msra.mxu0 %v1962
    %2777 = vmatpush.msra.mxu0 %v1958
    %2778 = vmatpush.msra.mxu0 %v1954
    %2779 = vmatpush.msra.mxu0 %v1950
    %2780 = vmatmul.f32.gmra.mxu0 %v2697
    %v2781 = vpop.f32.mrf.mxu0
    %v2782 = vadd.f32 0.0, %v2781
    %2783 = vdwg.mxu0
    %v2784 = vadd.f32 %v2700, %v2722
    %v2785 = vadd.f32 %v2701, %v2742
    %v2786 = vadd.f32 %v2702, %v2762
    %v2787 = vadd.f32 %v2703, %v2782
    %v2788 = vxor.u32 %v2784, 2147483648
    %v2789 = vmul.f32 %v2788, 1.442695
    %v2790 = vpow.pop %v2789
    %v2791 = vadd.f32 %v2790, 1.0
    %v2792 = vrcp.pop %v2791
    %v2793 = vmul.f32 %v2791, %v2792
    %v2794 = vsub.f32 1.0, %v2793
    %v2795 = vmul.f32 %v2792, %v2794
    %v2796 = vadd.f32 %v2792, %v2795
    %vm2797 = vweird.f32 %v2791
    %vm2798 = vweird.f32 %v2792
    %vm2799 = vmor %vm2797, %vm2798
    %v2800 = vsel %vm2799, %v2792, %v2796
    %v2801 = vand.u32 2147483647, %v2791
    %vm2802 = vcmp.eq.f32.partialorder %v2801, 8.507059e+37
    %v2803 = vand.u32 %v2791, 2147483648
    %v2804 = vor.u32 1.1754944e-38, %v2803
    %v2805 = vsel %vm2802, %v2804, %v2800
    %v2806 = vmul.f32 1.0, %v2805
    %v2807 = vxor.u32 %v2785, 2147483648
    %v2808 = vmul.f32 %v2807, 1.442695
    %v2809 = vpow.pop %v2808
    %v2810 = vadd.f32 %v2809, 1.0
    %v2811 = vrcp.pop %v2810
    %v2812 = vmul.f32 %v2810, %v2811
    %v2813 = vsub.f32 1.0, %v2812
    %v2814 = vmul.f32 %v2811, %v2813
    %v2815 = vadd.f32 %v2811, %v2814
    %vm2816 = vweird.f32 %v2810
    %vm2817 = vweird.f32 %v2811
    %vm2818 = vmor %vm2816, %vm2817
    %v2819 = vsel %vm2818, %v2811, %v2815
    %v2820 = vand.u32 2147483647, %v2810
    %vm2821 = vcmp.eq.f32.partialorder %v2820, 8.507059e+37
    %v2822 = vand.u32 %v2810, 2147483648
    %v2823 = vor.u32 1.1754944e-38, %v2822
    %v2824 = vsel %vm2821, %v2823, %v2819
    %v2825 = vmul.f32 1.0, %v2824
    %v2826 = vtanh.pop %v2786
    %v2827 = vxor.u32 %v2787, 2147483648
    %v2828 = vmul.f32 %v2827, 1.442695
    %v2829 = vpow.pop %v2828
    %v2830 = vadd.f32 %v2829, 1.0
    %v2831 = vrcp.pop %v2830
    %v2832 = vmul.f32 %v2830, %v2831
    %v2833 = vsub.f32 1.0, %v2832
    %v2834 = vmul.f32 %v2831, %v2833
    %v2835 = vadd.f32 %v2831, %v2834
    %vm2836 = vweird.f32 %v2830
    %vm2837 = vweird.f32 %v2831
    %vm2838 = vmor %vm2836, %vm2837
    %v2839 = vsel %vm2838, %v2831, %v2835
    %v2840 = vand.u32 2147483647, %v2830
    %vm2841 = vcmp.eq.f32.partialorder %v2840, 8.507059e+37
    %v2842 = vand.u32 %v2830, 2147483648
    %v2843 = vor.u32 1.1754944e-38, %v2842
    %v2844 = vsel %vm2841, %v2843, %v2839
    %v2845 = vmul.f32 1.0, %v2844
    %v2846 = vmul.f32 %v2825, %v2695
    %v2847 = vmul.f32 %v2806, %v2826
    %v2848 = vadd.f32 %v2846, %v2847
    %v2849 = vtanh.pop %v2848
    %v2850 = vmul.f32 %v2845, %v2849
    %s2851 = scalar_lea.vmem [#allocation3], 24
    %2852 = vst [vmem:[%s2851] sm:$0xff] %v2850
    %v2853 = vld [vmem:[%s1113] sm:$0xff]
    %v2854 = vld [vmem:[%s1113 + $0x8] sm:$0xff]
    %v2855 = vld [vmem:[%s1113 + $0x10] sm:$0xff]
    %v2856 = vld [vmem:[%s1113 + $0x18] sm:$0xff]
    %2857 = vmatpush.msra.mxu0 %v2007
    %2858 = vmatpush.msra.mxu0 %v2003
    %2859 = vmatpush.msra.mxu0 %v1999
    %2860 = vmatpush.msra.mxu0 %v1995
    %2861 = vmatpush.msra.mxu0 %v1991
    %2862 = vmatpush.msra.mxu0 %v1987
    %2863 = vmatpush.msra.mxu0 %v1983
    %2864 = vmatpush.msra.mxu0 %v1979
    %2865 = vmatpush.msra.mxu0 %v1975
    %2866 = vmatpush.msra.mxu0 %v1971
    %2867 = vmatpush.msra.mxu0 %v1967
    %2868 = vmatpush.msra.mxu0 %v1963
    %2869 = vmatpush.msra.mxu0 %v1959
    %2870 = vmatpush.msra.mxu0 %v1955
    %2871 = vmatpush.msra.mxu0 %v1951
    %2872 = vmatpush.msra.mxu0 %v1947
    %2873 = vmatmul.f32.gmra.mxu0 %v2850
    %v2874 = vpop.f32.mrf.mxu0
    %v2875 = vadd.f32 0.0, %v2874
    %2876 = vdwg.mxu0
    %2877 = vmatpush.msra.mxu0 %v2008
    %2878 = vmatpush.msra.mxu0 %v2004
    %2879 = vmatpush.msra.mxu0 %v2000
    %2880 = vmatpush.msra.mxu0 %v1996
    %2881 = vmatpush.msra.mxu0 %v1992
    %2882 = vmatpush.msra.mxu0 %v1988
    %2883 = vmatpush.msra.mxu0 %v1984
    %2884 = vmatpush.msra.mxu0 %v1980
    %2885 = vmatpush.msra.mxu0 %v1976
    %2886 = vmatpush.msra.mxu0 %v1972
    %2887 = vmatpush.msra.mxu0 %v1968
    %2888 = vmatpush.msra.mxu0 %v1964
    %2889 = vmatpush.msra.mxu0 %v1960
    %2890 = vmatpush.msra.mxu0 %v1956
    %2891 = vmatpush.msra.mxu0 %v1952
    %2892 = vmatpush.msra.mxu0 %v1948
    %2893 = vmatmul.f32.gmra.mxu0 %v2850
    %v2894 = vpop.f32.mrf.mxu0
    %v2895 = vadd.f32 0.0, %v2894
    %2896 = vdwg.mxu0
    %2897 = vmatpush.msra.mxu0 %v2009
    %2898 = vmatpush.msra.mxu0 %v2005
    %2899 = vmatpush.msra.mxu0 %v2001
    %2900 = vmatpush.msra.mxu0 %v1997
    %2901 = vmatpush.msra.mxu0 %v1993
    %2902 = vmatpush.msra.mxu0 %v1989
    %2903 = vmatpush.msra.mxu0 %v1985
    %2904 = vmatpush.msra.mxu0 %v1981
    %2905 = vmatpush.msra.mxu0 %v1977
    %2906 = vmatpush.msra.mxu0 %v1973
    %2907 = vmatpush.msra.mxu0 %v1969
    %2908 = vmatpush.msra.mxu0 %v1965
    %2909 = vmatpush.msra.mxu0 %v1961
    %2910 = vmatpush.msra.mxu0 %v1957
    %2911 = vmatpush.msra.mxu0 %v1953
    %2912 = vmatpush.msra.mxu0 %v1949
    %2913 = vmatmul.f32.gmra.mxu0 %v2850
    %v2914 = vpop.f32.mrf.mxu0
    %v2915 = vadd.f32 0.0, %v2914
    %2916 = vdwg.mxu0
    %2917 = vmatpush.msra.mxu0 %v2010
    %2918 = vmatpush.msra.mxu0 %v2006
    %2919 = vmatpush.msra.mxu0 %v2002
    %2920 = vmatpush.msra.mxu0 %v1998
    %2921 = vmatpush.msra.mxu0 %v1994
    %2922 = vmatpush.msra.mxu0 %v1990
    %2923 = vmatpush.msra.mxu0 %v1986
    %2924 = vmatpush.msra.mxu0 %v1982
    %2925 = vmatpush.msra.mxu0 %v1978
    %2926 = vmatpush.msra.mxu0 %v1974
    %2927 = vmatpush.msra.mxu0 %v1970
    %2928 = vmatpush.msra.mxu0 %v1966
    %2929 = vmatpush.msra.mxu0 %v1962
    %2930 = vmatpush.msra.mxu0 %v1958
    %2931 = vmatpush.msra.mxu0 %v1954
    %2932 = vmatpush.msra.mxu0 %v1950
    %2933 = vmatmul.f32.gmra.mxu0 %v2850
    %v2934 = vpop.f32.mrf.mxu0
    %v2935 = vadd.f32 0.0, %v2934
    %2936 = vdwg.mxu0
    %v2937 = vadd.f32 %v2853, %v2875
    %v2938 = vadd.f32 %v2854, %v2895
    %v2939 = vadd.f32 %v2855, %v2915
    %v2940 = vadd.f32 %v2856, %v2935
    %v2941 = vxor.u32 %v2937, 2147483648
    %v2942 = vmul.f32 %v2941, 1.442695
    %v2943 = vpow.pop %v2942
    %v2944 = vadd.f32 %v2943, 1.0
    %v2945 = vrcp.pop %v2944
    %v2946 = vmul.f32 %v2944, %v2945
    %v2947 = vsub.f32 1.0, %v2946
    %v2948 = vmul.f32 %v2945, %v2947
    %v2949 = vadd.f32 %v2945, %v2948
    %vm2950 = vweird.f32 %v2944
    %vm2951 = vweird.f32 %v2945
    %vm2952 = vmor %vm2950, %vm2951
    %v2953 = vsel %vm2952, %v2945, %v2949
    %v2954 = vand.u32 2147483647, %v2944
    %vm2955 = vcmp.eq.f32.partialorder %v2954, 8.507059e+37
    %v2956 = vand.u32 %v2944, 2147483648
    %v2957 = vor.u32 1.1754944e-38, %v2956
    %v2958 = vsel %vm2955, %v2957, %v2953
    %v2959 = vmul.f32 1.0, %v2958
    %v2960 = vxor.u32 %v2938, 2147483648
    %v2961 = vmul.f32 %v2960, 1.442695
    %v2962 = vpow.pop %v2961
    %v2963 = vadd.f32 %v2962, 1.0
    %v2964 = vrcp.pop %v2963
    %v2965 = vmul.f32 %v2963, %v2964
    %v2966 = vsub.f32 1.0, %v2965
    %v2967 = vmul.f32 %v2964, %v2966
    %v2968 = vadd.f32 %v2964, %v2967
    %vm2969 = vweird.f32 %v2963
    %vm2970 = vweird.f32 %v2964
    %vm2971 = vmor %vm2969, %vm2970
    %v2972 = vsel %vm2971, %v2964, %v2968
    %v2973 = vand.u32 2147483647, %v2963
    %vm2974 = vcmp.eq.f32.partialorder %v2973, 8.507059e+37
    %v2975 = vand.u32 %v2963, 2147483648
    %v2976 = vor.u32 1.1754944e-38, %v2975
    %v2977 = vsel %vm2974, %v2976, %v2972
    %v2978 = vmul.f32 1.0, %v2977
    %v2979 = vtanh.pop %v2939
    %v2980 = vxor.u32 %v2940, 2147483648
    %v2981 = vmul.f32 %v2980, 1.442695
    %v2982 = vpow.pop %v2981
    %v2983 = vadd.f32 %v2982, 1.0
    %v2984 = vrcp.pop %v2983
    %v2985 = vmul.f32 %v2983, %v2984
    %v2986 = vsub.f32 1.0, %v2985
    %v2987 = vmul.f32 %v2984, %v2986
    %v2988 = vadd.f32 %v2984, %v2987
    %vm2989 = vweird.f32 %v2983
    %vm2990 = vweird.f32 %v2984
    %vm2991 = vmor %vm2989, %vm2990
    %v2992 = vsel %vm2991, %v2984, %v2988
    %v2993 = vand.u32 2147483647, %v2983
    %vm2994 = vcmp.eq.f32.partialorder %v2993, 8.507059e+37
    %v2995 = vand.u32 %v2983, 2147483648
    %v2996 = vor.u32 1.1754944e-38, %v2995
    %v2997 = vsel %vm2994, %v2996, %v2992
    %v2998 = vmul.f32 1.0, %v2997
    %v2999 = vmul.f32 %v2978, %v2848
    %v3000 = vmul.f32 %v2959, %v2979
    %v3001 = vadd.f32 %v2999, %v3000
    %v3002 = vtanh.pop %v3001
    %v3003 = vmul.f32 %v2998, %v3002
    %s3004 = scalar_lea.vmem [#allocation3], 32
    %3005 = vst [vmem:[%s3004] sm:$0xff] %v3003
    %v3006 = vld [vmem:[%s1267] sm:$0xff]
    %v3007 = vld [vmem:[%s1267 + $0x8] sm:$0xff]
    %v3008 = vld [vmem:[%s1267 + $0x10] sm:$0xff]
    %v3009 = vld [vmem:[%s1267 + $0x18] sm:$0xff]
    %3010 = vmatpush.msra.mxu0 %v2007
    %3011 = vmatpush.msra.mxu0 %v2003
    %3012 = vmatpush.msra.mxu0 %v1999
    %3013 = vmatpush.msra.mxu0 %v1995
    %3014 = vmatpush.msra.mxu0 %v1991
    %3015 = vmatpush.msra.mxu0 %v1987
    %3016 = vmatpush.msra.mxu0 %v1983
    %3017 = vmatpush.msra.mxu0 %v1979
    %3018 = vmatpush.msra.mxu0 %v1975
    %3019 = vmatpush.msra.mxu0 %v1971
    %3020 = vmatpush.msra.mxu0 %v1967
    %3021 = vmatpush.msra.mxu0 %v1963
    %3022 = vmatpush.msra.mxu0 %v1959
    %3023 = vmatpush.msra.mxu0 %v1955
    %3024 = vmatpush.msra.mxu0 %v1951
    %3025 = vmatpush.msra.mxu0 %v1947
    %3026 = vmatmul.f32.gmra.mxu0 %v3003
    %v3027 = vpop.f32.mrf.mxu0
    %v3028 = vadd.f32 0.0, %v3027
    %3029 = vdwg.mxu0
    %3030 = vmatpush.msra.mxu0 %v2008
    %3031 = vmatpush.msra.mxu0 %v2004
    %3032 = vmatpush.msra.mxu0 %v2000
    %3033 = vmatpush.msra.mxu0 %v1996
    %3034 = vmatpush.msra.mxu0 %v1992
    %3035 = vmatpush.msra.mxu0 %v1988
    %3036 = vmatpush.msra.mxu0 %v1984
    %3037 = vmatpush.msra.mxu0 %v1980
    %3038 = vmatpush.msra.mxu0 %v1976
    %3039 = vmatpush.msra.mxu0 %v1972
    %3040 = vmatpush.msra.mxu0 %v1968
    %3041 = vmatpush.msra.mxu0 %v1964
    %3042 = vmatpush.msra.mxu0 %v1960
    %3043 = vmatpush.msra.mxu0 %v1956
    %3044 = vmatpush.msra.mxu0 %v1952
    %3045 = vmatpush.msra.mxu0 %v1948
    %3046 = vmatmul.f32.gmra.mxu0 %v3003
    %v3047 = vpop.f32.mrf.mxu0
    %v3048 = vadd.f32 0.0, %v3047
    %3049 = vdwg.mxu0
    %3050 = vmatpush.msra.mxu0 %v2009
    %3051 = vmatpush.msra.mxu0 %v2005
    %3052 = vmatpush.msra.mxu0 %v2001
    %3053 = vmatpush.msra.mxu0 %v1997
    %3054 = vmatpush.msra.mxu0 %v1993
    %3055 = vmatpush.msra.mxu0 %v1989
    %3056 = vmatpush.msra.mxu0 %v1985
    %3057 = vmatpush.msra.mxu0 %v1981
    %3058 = vmatpush.msra.mxu0 %v1977
    %3059 = vmatpush.msra.mxu0 %v1973
    %3060 = vmatpush.msra.mxu0 %v1969
    %3061 = vmatpush.msra.mxu0 %v1965
    %3062 = vmatpush.msra.mxu0 %v1961
    %3063 = vmatpush.msra.mxu0 %v1957
    %3064 = vmatpush.msra.mxu0 %v1953
    %3065 = vmatpush.msra.mxu0 %v1949
    %3066 = vmatmul.f32.gmra.mxu0 %v3003
    %v3067 = vpop.f32.mrf.mxu0
    %v3068 = vadd.f32 0.0, %v3067
    %3069 = vdwg.mxu0
    %3070 = vmatpush.msra.mxu0 %v2010
    %3071 = vmatpush.msra.mxu0 %v2006
    %3072 = vmatpush.msra.mxu0 %v2002
    %3073 = vmatpush.msra.mxu0 %v1998
    %3074 = vmatpush.msra.mxu0 %v1994
    %3075 = vmatpush.msra.mxu0 %v1990
    %3076 = vmatpush.msra.mxu0 %v1986
    %3077 = vmatpush.msra.mxu0 %v1982
    %3078 = vmatpush.msra.mxu0 %v1978
    %3079 = vmatpush.msra.mxu0 %v1974
    %3080 = vmatpush.msra.mxu0 %v1970
    %3081 = vmatpush.msra.mxu0 %v1966
    %3082 = vmatpush.msra.mxu0 %v1962
    %3083 = vmatpush.msra.mxu0 %v1958
    %3084 = vmatpush.msra.mxu0 %v1954
    %3085 = vmatpush.msra.mxu0 %v1950
    %3086 = vmatmul.f32.gmra.mxu0 %v3003
    %v3087 = vpop.f32.mrf.mxu0
    %v3088 = vadd.f32 0.0, %v3087
    %3089 = vdwg.mxu0
    %v3090 = vadd.f32 %v3006, %v3028
    %v3091 = vadd.f32 %v3007, %v3048
    %v3092 = vadd.f32 %v3008, %v3068
    %v3093 = vadd.f32 %v3009, %v3088
    %v3094 = vxor.u32 %v3090, 2147483648
    %v3095 = vmul.f32 %v3094, 1.442695
    %v3096 = vpow.pop %v3095
    %v3097 = vadd.f32 %v3096, 1.0
    %v3098 = vrcp.pop %v3097
    %v3099 = vmul.f32 %v3097, %v3098
    %v3100 = vsub.f32 1.0, %v3099
    %v3101 = vmul.f32 %v3098, %v3100
    %v3102 = vadd.f32 %v3098, %v3101
    %vm3103 = vweird.f32 %v3097
    %vm3104 = vweird.f32 %v3098
    %vm3105 = vmor %vm3103, %vm3104
    %v3106 = vsel %vm3105, %v3098, %v3102
    %v3107 = vand.u32 2147483647, %v3097
    %vm3108 = vcmp.eq.f32.partialorder %v3107, 8.507059e+37
    %v3109 = vand.u32 %v3097, 2147483648
    %v3110 = vor.u32 1.1754944e-38, %v3109
    %v3111 = vsel %vm3108, %v3110, %v3106
    %v3112 = vmul.f32 1.0, %v3111
    %v3113 = vxor.u32 %v3091, 2147483648
    %v3114 = vmul.f32 %v3113, 1.442695
    %v3115 = vpow.pop %v3114
    %v3116 = vadd.f32 %v3115, 1.0
    %v3117 = vrcp.pop %v3116
    %v3118 = vmul.f32 %v3116, %v3117
    %v3119 = vsub.f32 1.0, %v3118
    %v3120 = vmul.f32 %v3117, %v3119
    %v3121 = vadd.f32 %v3117, %v3120
    %vm3122 = vweird.f32 %v3116
    %vm3123 = vweird.f32 %v3117
    %vm3124 = vmor %vm3122, %vm3123
    %v3125 = vsel %vm3124, %v3117, %v3121
    %v3126 = vand.u32 2147483647, %v3116
    %vm3127 = vcmp.eq.f32.partialorder %v3126, 8.507059e+37
    %v3128 = vand.u32 %v3116, 2147483648
    %v3129 = vor.u32 1.1754944e-38, %v3128
    %v3130 = vsel %vm3127, %v3129, %v3125
    %v3131 = vmul.f32 1.0, %v3130
    %v3132 = vtanh.pop %v3092
    %v3133 = vxor.u32 %v3093, 2147483648
    %v3134 = vmul.f32 %v3133, 1.442695
    %v3135 = vpow.pop %v3134
    %v3136 = vadd.f32 %v3135, 1.0
    %v3137 = vrcp.pop %v3136
    %v3138 = vmul.f32 %v3136, %v3137
    %v3139 = vsub.f32 1.0, %v3138
    %v3140 = vmul.f32 %v3137, %v3139
    %v3141 = vadd.f32 %v3137, %v3140
    %vm3142 = vweird.f32 %v3136
    %vm3143 = vweird.f32 %v3137
    %vm3144 = vmor %vm3142, %vm3143
    %v3145 = vsel %vm3144, %v3137, %v3141
    %v3146 = vand.u32 2147483647, %v3136
    %vm3147 = vcmp.eq.f32.partialorder %v3146, 8.507059e+37
    %v3148 = vand.u32 %v3136, 2147483648
    %v3149 = vor.u32 1.1754944e-38, %v3148
    %v3150 = vsel %vm3147, %v3149, %v3145
    %v3151 = vmul.f32 1.0, %v3150
    %v3152 = vmul.f32 %v3131, %v3001
    %v3153 = vmul.f32 %v3112, %v3132
    %v3154 = vadd.f32 %v3152, %v3153
    %v3155 = vtanh.pop %v3154
    %v3156 = vmul.f32 %v3151, %v3155
    %s3157 = scalar_lea.vmem [#allocation3], 40
    %3158 = vst [vmem:[%s3157] sm:$0xff] %v3156
    %v3159 = vld [vmem:[%s1421] sm:$0xff]
    %v3160 = vld [vmem:[%s1421 + $0x8] sm:$0xff]
    %v3161 = vld [vmem:[%s1421 + $0x10] sm:$0xff]
    %v3162 = vld [vmem:[%s1421 + $0x18] sm:$0xff]
    %3163 = vmatpush.msra.mxu0 %v2007
    %3164 = vmatpush.msra.mxu0 %v2003
    %3165 = vmatpush.msra.mxu0 %v1999
    %3166 = vmatpush.msra.mxu0 %v1995
    %3167 = vmatpush.msra.mxu0 %v1991
    %3168 = vmatpush.msra.mxu0 %v1987
    %3169 = vmatpush.msra.mxu0 %v1983
    %3170 = vmatpush.msra.mxu0 %v1979
    %3171 = vmatpush.msra.mxu0 %v1975
    %3172 = vmatpush.msra.mxu0 %v1971
    %3173 = vmatpush.msra.mxu0 %v1967
    %3174 = vmatpush.msra.mxu0 %v1963
    %3175 = vmatpush.msra.mxu0 %v1959
    %3176 = vmatpush.msra.mxu0 %v1955
    %3177 = vmatpush.msra.mxu0 %v1951
    %3178 = vmatpush.msra.mxu0 %v1947
    %3179 = vmatmul.f32.gmra.mxu0 %v3156
    %v3180 = vpop.f32.mrf.mxu0
    %v3181 = vadd.f32 0.0, %v3180
    %3182 = vdwg.mxu0
    %3183 = vmatpush.msra.mxu0 %v2008
    %3184 = vmatpush.msra.mxu0 %v2004
    %3185 = vmatpush.msra.mxu0 %v2000
    %3186 = vmatpush.msra.mxu0 %v1996
    %3187 = vmatpush.msra.mxu0 %v1992
    %3188 = vmatpush.msra.mxu0 %v1988
    %3189 = vmatpush.msra.mxu0 %v1984
    %3190 = vmatpush.msra.mxu0 %v1980
    %3191 = vmatpush.msra.mxu0 %v1976
    %3192 = vmatpush.msra.mxu0 %v1972
    %3193 = vmatpush.msra.mxu0 %v1968
    %3194 = vmatpush.msra.mxu0 %v1964
    %3195 = vmatpush.msra.mxu0 %v1960
    %3196 = vmatpush.msra.mxu0 %v1956
    %3197 = vmatpush.msra.mxu0 %v1952
    %3198 = vmatpush.msra.mxu0 %v1948
    %3199 = vmatmul.f32.gmra.mxu0 %v3156
    %v3200 = vpop.f32.mrf.mxu0
    %v3201 = vadd.f32 0.0, %v3200
    %3202 = vdwg.mxu0
    %3203 = vmatpush.msra.mxu0 %v2009
    %3204 = vmatpush.msra.mxu0 %v2005
    %3205 = vmatpush.msra.mxu0 %v2001
    %3206 = vmatpush.msra.mxu0 %v1997
    %3207 = vmatpush.msra.mxu0 %v1993
    %3208 = vmatpush.msra.mxu0 %v1989
    %3209 = vmatpush.msra.mxu0 %v1985
    %3210 = vmatpush.msra.mxu0 %v1981
    %3211 = vmatpush.msra.mxu0 %v1977
    %3212 = vmatpush.msra.mxu0 %v1973
    %3213 = vmatpush.msra.mxu0 %v1969
    %3214 = vmatpush.msra.mxu0 %v1965
    %3215 = vmatpush.msra.mxu0 %v1961
    %3216 = vmatpush.msra.mxu0 %v1957
    %3217 = vmatpush.msra.mxu0 %v1953
    %3218 = vmatpush.msra.mxu0 %v1949
    %3219 = vmatmul.f32.gmra.mxu0 %v3156
    %v3220 = vpop.f32.mrf.mxu0
    %v3221 = vadd.f32 0.0, %v3220
    %3222 = vdwg.mxu0
    %3223 = vmatpush.msra.mxu0 %v2010
    %3224 = vmatpush.msra.mxu0 %v2006
    %3225 = vmatpush.msra.mxu0 %v2002
    %3226 = vmatpush.msra.mxu0 %v1998
    %3227 = vmatpush.msra.mxu0 %v1994
    %3228 = vmatpush.msra.mxu0 %v1990
    %3229 = vmatpush.msra.mxu0 %v1986
    %3230 = vmatpush.msra.mxu0 %v1982
    %3231 = vmatpush.msra.mxu0 %v1978
    %3232 = vmatpush.msra.mxu0 %v1974
    %3233 = vmatpush.msra.mxu0 %v1970
    %3234 = vmatpush.msra.mxu0 %v1966
    %3235 = vmatpush.msra.mxu0 %v1962
    %3236 = vmatpush.msra.mxu0 %v1958
    %3237 = vmatpush.msra.mxu0 %v1954
    %3238 = vmatpush.msra.mxu0 %v1950
    %3239 = vmatmul.f32.gmra.mxu0 %v3156
    %v3240 = vpop.f32.mrf.mxu0
    %v3241 = vadd.f32 0.0, %v3240
    %3242 = vdwg.mxu0
    %v3243 = vadd.f32 %v3159, %v3181
    %v3244 = vadd.f32 %v3160, %v3201
    %v3245 = vadd.f32 %v3161, %v3221
    %v3246 = vadd.f32 %v3162, %v3241
    %v3247 = vxor.u32 %v3243, 2147483648
    %v3248 = vmul.f32 %v3247, 1.442695
    %v3249 = vpow.pop %v3248
    %v3250 = vadd.f32 %v3249, 1.0
    %v3251 = vrcp.pop %v3250
    %v3252 = vmul.f32 %v3250, %v3251
    %v3253 = vsub.f32 1.0, %v3252
    %v3254 = vmul.f32 %v3251, %v3253
    %v3255 = vadd.f32 %v3251, %v3254
    %vm3256 = vweird.f32 %v3250
    %vm3257 = vweird.f32 %v3251
    %vm3258 = vmor %vm3256, %vm3257
    %v3259 = vsel %vm3258, %v3251, %v3255
    %v3260 = vand.u32 2147483647, %v3250
    %vm3261 = vcmp.eq.f32.partialorder %v3260, 8.507059e+37
    %v3262 = vand.u32 %v3250, 2147483648
    %v3263 = vor.u32 1.1754944e-38, %v3262
    %v3264 = vsel %vm3261, %v3263, %v3259
    %v3265 = vmul.f32 1.0, %v3264
    %v3266 = vxor.u32 %v3244, 2147483648
    %v3267 = vmul.f32 %v3266, 1.442695
    %v3268 = vpow.pop %v3267
    %v3269 = vadd.f32 %v3268, 1.0
    %v3270 = vrcp.pop %v3269
    %v3271 = vmul.f32 %v3269, %v3270
    %v3272 = vsub.f32 1.0, %v3271
    %v3273 = vmul.f32 %v3270, %v3272
    %v3274 = vadd.f32 %v3270, %v3273
    %vm3275 = vweird.f32 %v3269
    %vm3276 = vweird.f32 %v3270
    %vm3277 = vmor %vm3275, %vm3276
    %v3278 = vsel %vm3277, %v3270, %v3274
    %v3279 = vand.u32 2147483647, %v3269
    %vm3280 = vcmp.eq.f32.partialorder %v3279, 8.507059e+37
    %v3281 = vand.u32 %v3269, 2147483648
    %v3282 = vor.u32 1.1754944e-38, %v3281
    %v3283 = vsel %vm3280, %v3282, %v3278
    %v3284 = vmul.f32 1.0, %v3283
    %v3285 = vtanh.pop %v3245
    %v3286 = vxor.u32 %v3246, 2147483648
    %v3287 = vmul.f32 %v3286, 1.442695
    %v3288 = vpow.pop %v3287
    %v3289 = vadd.f32 %v3288, 1.0
    %v3290 = vrcp.pop %v3289
    %v3291 = vmul.f32 %v3289, %v3290
    %v3292 = vsub.f32 1.0, %v3291
    %v3293 = vmul.f32 %v3290, %v3292
    %v3294 = vadd.f32 %v3290, %v3293
    %vm3295 = vweird.f32 %v3289
    %vm3296 = vweird.f32 %v3290
    %vm3297 = vmor %vm3295, %vm3296
    %v3298 = vsel %vm3297, %v3290, %v3294
    %v3299 = vand.u32 2147483647, %v3289
    %vm3300 = vcmp.eq.f32.partialorder %v3299, 8.507059e+37
    %v3301 = vand.u32 %v3289, 2147483648
    %v3302 = vor.u32 1.1754944e-38, %v3301
    %v3303 = vsel %vm3300, %v3302, %v3298
    %v3304 = vmul.f32 1.0, %v3303
    %v3305 = vmul.f32 %v3284, %v3154
    %v3306 = vmul.f32 %v3265, %v3285
    %v3307 = vadd.f32 %v3305, %v3306
    %v3308 = vtanh.pop %v3307
    %v3309 = vmul.f32 %v3304, %v3308
    %s3310 = scalar_lea.vmem [#allocation3], 48
    %3311 = vst [vmem:[%s3310] sm:$0xff] %v3309
    %v3312 = vld [vmem:[%s1575] sm:$0xff]
    %v3313 = vld [vmem:[%s1575 + $0x8] sm:$0xff]
    %v3314 = vld [vmem:[%s1575 + $0x10] sm:$0xff]
    %v3315 = vld [vmem:[%s1575 + $0x18] sm:$0xff]
    %3316 = vmatpush.msra.mxu0 %v2007
    %3317 = vmatpush.msra.mxu0 %v2003
    %3318 = vmatpush.msra.mxu0 %v1999
    %3319 = vmatpush.msra.mxu0 %v1995
    %3320 = vmatpush.msra.mxu0 %v1991
    %3321 = vmatpush.msra.mxu0 %v1987
    %3322 = vmatpush.msra.mxu0 %v1983
    %3323 = vmatpush.msra.mxu0 %v1979
    %3324 = vmatpush.msra.mxu0 %v1975
    %3325 = vmatpush.msra.mxu0 %v1971
    %3326 = vmatpush.msra.mxu0 %v1967
    %3327 = vmatpush.msra.mxu0 %v1963
    %3328 = vmatpush.msra.mxu0 %v1959
    %3329 = vmatpush.msra.mxu0 %v1955
    %3330 = vmatpush.msra.mxu0 %v1951
    %3331 = vmatpush.msra.mxu0 %v1947
    %3332 = vmatmul.f32.gmra.mxu0 %v3309
    %v3333 = vpop.f32.mrf.mxu0
    %v3334 = vadd.f32 0.0, %v3333
    %3335 = vdwg.mxu0
    %3336 = vmatpush.msra.mxu0 %v2008
    %3337 = vmatpush.msra.mxu0 %v2004
    %3338 = vmatpush.msra.mxu0 %v2000
    %3339 = vmatpush.msra.mxu0 %v1996
    %3340 = vmatpush.msra.mxu0 %v1992
    %3341 = vmatpush.msra.mxu0 %v1988
    %3342 = vmatpush.msra.mxu0 %v1984
    %3343 = vmatpush.msra.mxu0 %v1980
    %3344 = vmatpush.msra.mxu0 %v1976
    %3345 = vmatpush.msra.mxu0 %v1972
    %3346 = vmatpush.msra.mxu0 %v1968
    %3347 = vmatpush.msra.mxu0 %v1964
    %3348 = vmatpush.msra.mxu0 %v1960
    %3349 = vmatpush.msra.mxu0 %v1956
    %3350 = vmatpush.msra.mxu0 %v1952
    %3351 = vmatpush.msra.mxu0 %v1948
    %3352 = vmatmul.f32.gmra.mxu0 %v3309
    %v3353 = vpop.f32.mrf.mxu0
    %v3354 = vadd.f32 0.0, %v3353
    %3355 = vdwg.mxu0
    %3356 = vmatpush.msra.mxu0 %v2009
    %3357 = vmatpush.msra.mxu0 %v2005
    %3358 = vmatpush.msra.mxu0 %v2001
    %3359 = vmatpush.msra.mxu0 %v1997
    %3360 = vmatpush.msra.mxu0 %v1993
    %3361 = vmatpush.msra.mxu0 %v1989
    %3362 = vmatpush.msra.mxu0 %v1985
    %3363 = vmatpush.msra.mxu0 %v1981
    %3364 = vmatpush.msra.mxu0 %v1977
    %3365 = vmatpush.msra.mxu0 %v1973
    %3366 = vmatpush.msra.mxu0 %v1969
    %3367 = vmatpush.msra.mxu0 %v1965
    %3368 = vmatpush.msra.mxu0 %v1961
    %3369 = vmatpush.msra.mxu0 %v1957
    %3370 = vmatpush.msra.mxu0 %v1953
    %3371 = vmatpush.msra.mxu0 %v1949
    %3372 = vmatmul.f32.gmra.mxu0 %v3309
    %v3373 = vpop.f32.mrf.mxu0
    %v3374 = vadd.f32 0.0, %v3373
    %3375 = vdwg.mxu0
    %3376 = vmatpush.msra.mxu0 %v2010
    %3377 = vmatpush.msra.mxu0 %v2006
    %3378 = vmatpush.msra.mxu0 %v2002
    %3379 = vmatpush.msra.mxu0 %v1998
    %3380 = vmatpush.msra.mxu0 %v1994
    %3381 = vmatpush.msra.mxu0 %v1990
    %3382 = vmatpush.msra.mxu0 %v1986
    %3383 = vmatpush.msra.mxu0 %v1982
    %3384 = vmatpush.msra.mxu0 %v1978
    %3385 = vmatpush.msra.mxu0 %v1974
    %3386 = vmatpush.msra.mxu0 %v1970
    %3387 = vmatpush.msra.mxu0 %v1966
    %3388 = vmatpush.msra.mxu0 %v1962
    %3389 = vmatpush.msra.mxu0 %v1958
    %3390 = vmatpush.msra.mxu0 %v1954
    %3391 = vmatpush.msra.mxu0 %v1950
    %3392 = vmatmul.f32.gmra.mxu0 %v3309
    %v3393 = vpop.f32.mrf.mxu0
    %v3394 = vadd.f32 0.0, %v3393
    %3395 = vdwg.mxu0
    %v3396 = vadd.f32 %v3312, %v3334
    %v3397 = vadd.f32 %v3313, %v3354
    %v3398 = vadd.f32 %v3314, %v3374
    %v3399 = vadd.f32 %v3315, %v3394
    %v3400 = vxor.u32 %v3396, 2147483648
    %v3401 = vmul.f32 %v3400, 1.442695
    %v3402 = vpow.pop %v3401
    %v3403 = vadd.f32 %v3402, 1.0
    %v3404 = vrcp.pop %v3403
    %v3405 = vmul.f32 %v3403, %v3404
    %v3406 = vsub.f32 1.0, %v3405
    %v3407 = vmul.f32 %v3404, %v3406
    %v3408 = vadd.f32 %v3404, %v3407
    %vm3409 = vweird.f32 %v3403
    %vm3410 = vweird.f32 %v3404
    %vm3411 = vmor %vm3409, %vm3410
    %v3412 = vsel %vm3411, %v3404, %v3408
    %v3413 = vand.u32 2147483647, %v3403
    %vm3414 = vcmp.eq.f32.partialorder %v3413, 8.507059e+37
    %v3415 = vand.u32 %v3403, 2147483648
    %v3416 = vor.u32 1.1754944e-38, %v3415
    %v3417 = vsel %vm3414, %v3416, %v3412
    %v3418 = vmul.f32 1.0, %v3417
    %v3419 = vxor.u32 %v3397, 2147483648
    %v3420 = vmul.f32 %v3419, 1.442695
    %v3421 = vpow.pop %v3420
    %v3422 = vadd.f32 %v3421, 1.0
    %v3423 = vrcp.pop %v3422
    %v3424 = vmul.f32 %v3422, %v3423
    %v3425 = vsub.f32 1.0, %v3424
    %v3426 = vmul.f32 %v3423, %v3425
    %v3427 = vadd.f32 %v3423, %v3426
    %vm3428 = vweird.f32 %v3422
    %vm3429 = vweird.f32 %v3423
    %vm3430 = vmor %vm3428, %vm3429
    %v3431 = vsel %vm3430, %v3423, %v3427
    %v3432 = vand.u32 2147483647, %v3422
    %vm3433 = vcmp.eq.f32.partialorder %v3432, 8.507059e+37
    %v3434 = vand.u32 %v3422, 2147483648
    %v3435 = vor.u32 1.1754944e-38, %v3434
    %v3436 = vsel %vm3433, %v3435, %v3431
    %v3437 = vmul.f32 1.0, %v3436
    %v3438 = vtanh.pop %v3398
    %v3439 = vxor.u32 %v3399, 2147483648
    %v3440 = vmul.f32 %v3439, 1.442695
    %v3441 = vpow.pop %v3440
    %v3442 = vadd.f32 %v3441, 1.0
    %v3443 = vrcp.pop %v3442
    %v3444 = vmul.f32 %v3442, %v3443
    %v3445 = vsub.f32 1.0, %v3444
    %v3446 = vmul.f32 %v3443, %v3445
    %v3447 = vadd.f32 %v3443, %v3446
    %vm3448 = vweird.f32 %v3442
    %vm3449 = vweird.f32 %v3443
    %vm3450 = vmor %vm3448, %vm3449
    %v3451 = vsel %vm3450, %v3443, %v3447
    %v3452 = vand.u32 2147483647, %v3442
    %vm3453 = vcmp.eq.f32.partialorder %v3452, 8.507059e+37
    %v3454 = vand.u32 %v3442, 2147483648
    %v3455 = vor.u32 1.1754944e-38, %v3454
    %v3456 = vsel %vm3453, %v3455, %v3451
    %v3457 = vmul.f32 1.0, %v3456
    %v3458 = vmul.f32 %v3437, %v3307
    %v3459 = vmul.f32 %v3418, %v3438
    %v3460 = vadd.f32 %v3458, %v3459
    %v3461 = vtanh.pop %v3460
    %v3462 = vmul.f32 %v3457, %v3461
    %s3463 = scalar_lea.vmem [#allocation3], 56
    %3464 = vst [vmem:[%s3463] sm:$0xff] %v3462
    %v3465 = vld [vmem:[%s1729] sm:$0xff]
    %v3466 = vld [vmem:[%s1729 + $0x8] sm:$0xff]
    %v3467 = vld [vmem:[%s1729 + $0x10] sm:$0xff]
    %v3468 = vld [vmem:[%s1729 + $0x18] sm:$0xff]
    %3469 = vmatpush.msra.mxu0 %v2007
    %3470 = vmatpush.msra.mxu0 %v2003
    %3471 = vmatpush.msra.mxu0 %v1999
    %3472 = vmatpush.msra.mxu0 %v1995
    %3473 = vmatpush.msra.mxu0 %v1991
    %3474 = vmatpush.msra.mxu0 %v1987
    %3475 = vmatpush.msra.mxu0 %v1983
    %3476 = vmatpush.msra.mxu0 %v1979
    %3477 = vmatpush.msra.mxu0 %v1975
    %3478 = vmatpush.msra.mxu0 %v1971
    %3479 = vmatpush.msra.mxu0 %v1967
    %3480 = vmatpush.msra.mxu0 %v1963
    %3481 = vmatpush.msra.mxu0 %v1959
    %3482 = vmatpush.msra.mxu0 %v1955
    %3483 = vmatpush.msra.mxu0 %v1951
    %3484 = vmatpush.msra.mxu0 %v1947
    %3485 = vmatmul.f32.gmra.mxu0 %v3462
    %v3486 = vpop.f32.mrf.mxu0
    %v3487 = vadd.f32 0.0, %v3486
    %3488 = vdwg.mxu0
    %3489 = vmatpush.msra.mxu0 %v2008
    %3490 = vmatpush.msra.mxu0 %v2004
    %3491 = vmatpush.msra.mxu0 %v2000
    %3492 = vmatpush.msra.mxu0 %v1996
    %3493 = vmatpush.msra.mxu0 %v1992
    %3494 = vmatpush.msra.mxu0 %v1988
    %3495 = vmatpush.msra.mxu0 %v1984
    %3496 = vmatpush.msra.mxu0 %v1980
    %3497 = vmatpush.msra.mxu0 %v1976
    %3498 = vmatpush.msra.mxu0 %v1972
    %3499 = vmatpush.msra.mxu0 %v1968
    %3500 = vmatpush.msra.mxu0 %v1964
    %3501 = vmatpush.msra.mxu0 %v1960
    %3502 = vmatpush.msra.mxu0 %v1956
    %3503 = vmatpush.msra.mxu0 %v1952
    %3504 = vmatpush.msra.mxu0 %v1948
    %3505 = vmatmul.f32.gmra.mxu0 %v3462
    %v3506 = vpop.f32.mrf.mxu0
    %v3507 = vadd.f32 0.0, %v3506
    %3508 = vdwg.mxu0
    %3509 = vmatpush.msra.mxu0 %v2009
    %3510 = vmatpush.msra.mxu0 %v2005
    %3511 = vmatpush.msra.mxu0 %v2001
    %3512 = vmatpush.msra.mxu0 %v1997
    %3513 = vmatpush.msra.mxu0 %v1993
    %3514 = vmatpush.msra.mxu0 %v1989
    %3515 = vmatpush.msra.mxu0 %v1985
    %3516 = vmatpush.msra.mxu0 %v1981
    %3517 = vmatpush.msra.mxu0 %v1977
    %3518 = vmatpush.msra.mxu0 %v1973
    %3519 = vmatpush.msra.mxu0 %v1969
    %3520 = vmatpush.msra.mxu0 %v1965
    %3521 = vmatpush.msra.mxu0 %v1961
    %3522 = vmatpush.msra.mxu0 %v1957
    %3523 = vmatpush.msra.mxu0 %v1953
    %3524 = vmatpush.msra.mxu0 %v1949
    %3525 = vmatmul.f32.gmra.mxu0 %v3462
    %v3526 = vpop.f32.mrf.mxu0
    %v3527 = vadd.f32 0.0, %v3526
    %3528 = vdwg.mxu0
    %3529 = vmatpush.msra.mxu0 %v2010
    %3530 = vmatpush.msra.mxu0 %v2006
    %3531 = vmatpush.msra.mxu0 %v2002
    %3532 = vmatpush.msra.mxu0 %v1998
    %3533 = vmatpush.msra.mxu0 %v1994
    %3534 = vmatpush.msra.mxu0 %v1990
    %3535 = vmatpush.msra.mxu0 %v1986
    %3536 = vmatpush.msra.mxu0 %v1982
    %3537 = vmatpush.msra.mxu0 %v1978
    %3538 = vmatpush.msra.mxu0 %v1974
    %3539 = vmatpush.msra.mxu0 %v1970
    %3540 = vmatpush.msra.mxu0 %v1966
    %3541 = vmatpush.msra.mxu0 %v1962
    %3542 = vmatpush.msra.mxu0 %v1958
    %3543 = vmatpush.msra.mxu0 %v1954
    %3544 = vmatpush.msra.mxu0 %v1950
    %3545 = vmatmul.f32.gmra.mxu0 %v3462
    %v3546 = vpop.f32.mrf.mxu0
    %v3547 = vadd.f32 0.0, %v3546
    %3548 = vdwg.mxu0
    %v3549 = vadd.f32 %v3465, %v3487
    %v3550 = vadd.f32 %v3466, %v3507
    %v3551 = vadd.f32 %v3467, %v3527
    %v3552 = vadd.f32 %v3468, %v3547
    %v3553 = vxor.u32 %v3549, 2147483648
    %v3554 = vmul.f32 %v3553, 1.442695
    %v3555 = vpow.pop %v3554
    %v3556 = vadd.f32 %v3555, 1.0
    %v3557 = vrcp.pop %v3556
    %v3558 = vmul.f32 %v3556, %v3557
    %v3559 = vsub.f32 1.0, %v3558
    %v3560 = vmul.f32 %v3557, %v3559
    %v3561 = vadd.f32 %v3557, %v3560
    %vm3562 = vweird.f32 %v3556
    %vm3563 = vweird.f32 %v3557
    %vm3564 = vmor %vm3562, %vm3563
    %v3565 = vsel %vm3564, %v3557, %v3561
    %v3566 = vand.u32 2147483647, %v3556
    %vm3567 = vcmp.eq.f32.partialorder %v3566, 8.507059e+37
    %v3568 = vand.u32 %v3556, 2147483648
    %v3569 = vor.u32 1.1754944e-38, %v3568
    %v3570 = vsel %vm3567, %v3569, %v3565
    %v3571 = vmul.f32 1.0, %v3570
    %v3572 = vxor.u32 %v3550, 2147483648
    %v3573 = vmul.f32 %v3572, 1.442695
    %v3574 = vpow.pop %v3573
    %v3575 = vadd.f32 %v3574, 1.0
    %v3576 = vrcp.pop %v3575
    %v3577 = vmul.f32 %v3575, %v3576
    %v3578 = vsub.f32 1.0, %v3577
    %v3579 = vmul.f32 %v3576, %v3578
    %v3580 = vadd.f32 %v3576, %v3579
    %vm3581 = vweird.f32 %v3575
    %vm3582 = vweird.f32 %v3576
    %vm3583 = vmor %vm3581, %vm3582
    %v3584 = vsel %vm3583, %v3576, %v3580
    %v3585 = vand.u32 2147483647, %v3575
    %vm3586 = vcmp.eq.f32.partialorder %v3585, 8.507059e+37
    %v3587 = vand.u32 %v3575, 2147483648
    %v3588 = vor.u32 1.1754944e-38, %v3587
    %v3589 = vsel %vm3586, %v3588, %v3584
    %v3590 = vmul.f32 1.0, %v3589
    %v3591 = vtanh.pop %v3551
    %v3592 = vxor.u32 %v3552, 2147483648
    %v3593 = vmul.f32 %v3592, 1.442695
    %v3594 = vpow.pop %v3593
    %v3595 = vadd.f32 %v3594, 1.0
    %v3596 = vrcp.pop %v3595
    %v3597 = vmul.f32 %v3595, %v3596
    %v3598 = vsub.f32 1.0, %v3597
    %v3599 = vmul.f32 %v3596, %v3598
    %v3600 = vadd.f32 %v3596, %v3599
    %vm3601 = vweird.f32 %v3595
    %vm3602 = vweird.f32 %v3596
    %vm3603 = vmor %vm3601, %vm3602
    %v3604 = vsel %vm3603, %v3596, %v3600
    %v3605 = vand.u32 2147483647, %v3595
    %vm3606 = vcmp.eq.f32.partialorder %v3605, 8.507059e+37
    %v3607 = vand.u32 %v3595, 2147483648
    %v3608 = vor.u32 1.1754944e-38, %v3607
    %v3609 = vsel %vm3606, %v3608, %v3604
    %v3610 = vmul.f32 1.0, %v3609
    %v3611 = vmul.f32 %v3590, %v3460
    %v3612 = vmul.f32 %v3571, %v3591
    %v3613 = vadd.f32 %v3611, %v3612
    %v3614 = vtanh.pop %v3613
    %v3615 = vmul.f32 %v3610, %v3614
    %s3616 = scalar_lea.vmem [#allocation3], 64
    %3617 = vst [vmem:[%s3616] sm:$0xff] %v3615
    %v3618 = vld [vmem:[#allocation3] sm:$0xff]
    %v3619 = vld [vmem:[#allocation3 + $0x8] sm:$0xff]
    %v3620 = vld [vmem:[#allocation3 + $0x10] sm:$0xff]
    %v3621 = vld [vmem:[#allocation3 + $0x18] sm:$0xff]
    %v3622 = vld [vmem:[#allocation3 + $0x20] sm:$0xff]
    %v3623 = vld [vmem:[#allocation3 + $0x28] sm:$0xff]
    %v3624 = vld [vmem:[#allocation3 + $0x30] sm:$0xff]
    %v3625 = vld [vmem:[#allocation3 + $0x38] sm:$0xff]
    %v3626 = vld [vmem:[#allocation3 + $0x40] sm:$0xff]
    %v3627 = vld [vmem:[#allocation16] sm:$0xff]
    %v3628 = vld [vmem:[#allocation16 + $0x8] sm:$0xff]
    %v3629 = vld [vmem:[#allocation16 + $0x10] sm:$0xff]
    %v3630 = vld [vmem:[#allocation16 + $0x18] sm:$0xff]
    %v3631 = vld [vmem:[#allocation16 + $0x20] sm:$0xff]
    %v3632 = vld [vmem:[#allocation16 + $0x28] sm:$0xff]
    %v3633 = vld [vmem:[#allocation16 + $0x30] sm:$0xff]
    %v3634 = vld [vmem:[#allocation16 + $0x38] sm:$0xff]
    %v3635 = vld [vmem:[#allocation16 + $0x40] sm:$0xff]
    %v3636 = vld [vmem:[#allocation16 + $0x48] sm:$0xff]
    %v3637 = vld [vmem:[#allocation16 + $0x50] sm:$0xff]
    %v3638 = vld [vmem:[#allocation16 + $0x58] sm:$0xff]
    %v3639 = vld [vmem:[#allocation16 + $0x60] sm:$0xff]
    %v3640 = vld [vmem:[#allocation16 + $0x68] sm:$0xff]
    %v3641 = vld [vmem:[#allocation16 + $0x70] sm:$0xff]
    %v3642 = vld [vmem:[#allocation16 + $0x78] sm:$0xff]
    %v3643 = vld [vmem:[%s8] sm:$0x1]
    %v3645 = vperm.slane %v3643, 0
    %3647 = vmatpush.msra.mxu0 %v3642
    %3648 = vmatpush.msra.mxu0 %v3641
    %3649 = vmatpush.msra.mxu0 %v3640
    %3650 = vmatpush.msra.mxu0 %v3639
    %3651 = vmatpush.msra.mxu0 %v3638
    %3652 = vmatpush.msra.mxu0 %v3637
    %3653 = vmatpush.msra.mxu0 %v3636
    %3654 = vmatpush.msra.mxu0 %v3635
    %3655 = vmatpush.msra.mxu0 %v3634
    %3656 = vmatpush.msra.mxu0 %v3633
    %3657 = vmatpush.msra.mxu0 %v3632
    %3658 = vmatpush.msra.mxu0 %v3631
    %3659 = vmatpush.msra.mxu0 %v3630
    %3660 = vmatpush.msra.mxu0 %v3629
    %3661 = vmatpush.msra.mxu0 %v3628
    %3662 = vmatpush.msra.mxu0 %v3627
    %3663 = vmatmul.f32.gmra.mxu0 %v3618
    %v3664 = vpop.f32.mrf.mxu0
    %v3665 = vadd.f32 %v3645, %v3664
    %3666 = vmatmul.f32.gmra.mxu0 %v3619
    %v3667 = vpop.f32.mrf.mxu0
    %v3668 = vadd.f32 %v3645, %v3667
    %3669 = vmatmul.f32.gmra.mxu0 %v3620
    %v3670 = vpop.f32.mrf.mxu0
    %v3671 = vadd.f32 %v3645, %v3670
    %3672 = vmatmul.f32.gmra.mxu0 %v3621
    %v3673 = vpop.f32.mrf.mxu0
    %v3674 = vadd.f32 %v3645, %v3673
    %3675 = vmatmul.f32.gmra.mxu0 %v3622
    %v3676 = vpop.f32.mrf.mxu0
    %v3677 = vadd.f32 %v3645, %v3676
    %3678 = vmatmul.f32.gmra.mxu0 %v3623
    %v3679 = vpop.f32.mrf.mxu0
    %v3680 = vadd.f32 %v3645, %v3679
    %3681 = vmatmul.f32.gmra.mxu0 %v3624
    %v3682 = vpop.f32.mrf.mxu0
    %v3683 = vadd.f32 %v3645, %v3682
    %3684 = vmatmul.f32.gmra.mxu0 %v3625
    %v3685 = vpop.f32.mrf.mxu0
    %v3686 = vadd.f32 %v3645, %v3685
    %3687 = vmatmul.f32.gmra.mxu0 %v3626
    %v3688 = vpop.f32.mrf.mxu0
    %v3689 = vadd.f32 %v3645, %v3688
    %3690 = vdwg.mxu0
    %3691 = vst [vmem:[#allocation17] sm:$0xff] %v3665
    %3692 = vst [vmem:[#allocation17 + $0x8] sm:$0xff] %v3668
    %3693 = vst [vmem:[#allocation17 + $0x10] sm:$0xff] %v3671
    %3694 = vst [vmem:[#allocation17 + $0x18] sm:$0xff] %v3674
    %3695 = vst [vmem:[#allocation17 + $0x20] sm:$0xff] %v3677
    %3696 = vst [vmem:[#allocation17 + $0x28] sm:$0xff] %v3680
    %3697 = vst [vmem:[#allocation17 + $0x30] sm:$0xff] %v3683
    %3698 = vst [vmem:[#allocation17 + $0x38] sm:$0xff] %v3686
    %3699 = vst [vmem:[#allocation17 + $0x40] sm:$0xff] %v3689
    // Predicated region
    $region66: #{tpu_custom_call.1} parent=1 // pred_check
      _
    $region67: #{tpu_custom_call.1} parent=1 // pred_check_branch
      %3701 = sbr.rel (0) target = $region69
    $region68: #{tpu_custom_call.1} parent=1 // pred_region
      %3703 = vsyncadd [#allocation7], 0
      %s3704 = sshll.u32 [#allocation17], 4
      %s3705 = int_to_ptr.vmem [resolvable:$true] %s3704
      %s3706 = sshll.u32 %s9, 4
      %s3707 = int_to_ptr.hbm [resolvable:$true] %s3706
      %3712 = dma.vmem_to_hbm [thread:$0]  %s3705, 1152, %s3707, [#allocation7], 128, 128, 8
    $region69: #{tpu_custom_call.1} parent=1 // pred_fallthru
      _
    // Predicated region
    $region70: #{tpu_custom_call.1} parent=1 // pred_check
      _
    $region71: #{tpu_custom_call.1} parent=1 // pred_check_branch
      %3714 = sbr.rel (0) target = $region73
    $region72: #{tpu_custom_call.1} parent=1 // pred_region
      %3716 = dma.done [#allocation7], 1152
    $region73: #{tpu_custom_call.1} parent=1 // pred_fallthru
      _
    %3717 = vsyncpa [#allocation6], 1
    %3718 = vsyncpa [#allocation9], 1
    %3719 = vsyncpa [#allocation12], 1
    %3720 = vsyncpa [#allocation15], 1
    %3721 = vsyncpa [#allocation7], 1

</llo_original>
